<compile_context>
chip_gen: v7x
topology: tpu7x:2x2x1
jax: 0.10.0
libtpu: 0.0.40
codegen_flags: <defaults>
</compile_context>

<pallas_src>
import numpy as np
import jax
import jax.numpy as jnp
from jax.experimental import pallas as pl
from jax.experimental.pallas import tpu as pltpu


# ----------------------------- host-side helpers -----------------------------
def _make_masks(hh, ww, dil, group):
    """Per-tap boundary masks for a 3x3 'same' conv (stride 1, pad == dilation).

    Returns (9, 1, group*hh*ww) float32; mask[k, 0, p] == 1 iff the input pixel read
    by tap k for output pixel p lies inside the image (zero-padding otherwise).
    Tiled `group` times because images sit side-by-side along the lane axis, which
    also kills any cross-image contamination from the wrapped lane roll.
    """
    s = hh * ww
    m = np.zeros((9, 1, s), np.float32)
    for ky in range(3):
        dy = (ky - 1) * dil
        for kx in range(3):
            dx = (kx - 1) * dil
            k = ky * 3 + kx
            for oh in range(hh):
                if not (0 <= oh + dy < hh):
                    continue
                base = oh * ww
                for ow in range(ww):
                    if 0 <= ow + dx < ww:
                        m[k, 0, base + ow] = 1.0
    return np.tile(m, (1, 1, group))


def _tap_shifts(ww, dil, length):
    """Static lane-roll amounts (one per tap) over the folded spatial axis."""
    return [(-(((ky - 1) * dil) * ww + (kx - 1) * dil)) % length
            for ky in range(3) for kx in range(3)]


def _make_subsample(h, w, stride):
    """(H*W, Ho*Wo) 0/1 matrix: right-multiplication keeps pixels (s*oh, s*ow)."""
    ho = (h - 1) // stride + 1
    wo = (w - 1) // stride + 1
    d = np.zeros((h * w, ho * wo), np.float32)
    for oh in range(ho):
        for ow in range(wo):
            d[(oh * stride) * w + ow * stride, oh * wo + ow] = 1.0
    return d


def _fold(p, eps=1e-5):
    s = p["gamma"] / jnp.sqrt(p["var"] + eps)
    b = p["beta"] - p["mean"] * s
    return s, b


def _fold_1x1_cf(p):
    """1x1 Conv + BN -> (Cout, Cin) bf16 weight, (Cout, 1) f32 bias (channels-first)."""
    s, b = _fold(p)
    wt = p["w"][:, :, 0, 0] * s[:, None]
    return wt.astype(jnp.bfloat16), b[:, None].astype(jnp.float32)


def _fold_3x3_cf(p, cout_pad=0, cin_pad=0):
    """3x3 Conv + BN -> tap-stacked (9*Cout, Cin) bf16 weight, (Cout, 1) f32 bias.

    Row block k = ky*3+kx holds W[:, :, ky, kx] * bn_scale.  Cout / Cin may be
    zero-padded to a multiple of 8 so in-kernel sublane slices stay aligned.
    """
    s, b = _fold(p)
    w = p["w"] * s[:, None, None, None]
    b = b[:, None]
    co, ci = w.shape[0], w.shape[1]
    if cout_pad > co:
        w = jnp.pad(w, ((0, cout_pad - co), (0, 0), (0, 0), (0, 0)))
        b = jnp.pad(b, ((0, cout_pad - co), (0, 0)))
        co = cout_pad
    if cin_pad > ci:
        w = jnp.pad(w, ((0, 0), (0, cin_pad - ci), (0, 0), (0, 0)))
        ci = cin_pad
    wstk = jnp.transpose(w, (2, 3, 0, 1)).reshape(9 * co, ci)
    return wstk.astype(jnp.bfloat16), b.astype(jnp.float32)


# ----------------------------- Pallas wrapper ---------------------------------
def basic_rfb(x, params, stride=2, scale=1.0, visual=2):
    n, cin, h, w = x.shape
    inter = cin // 8
    two_i = 2 * inter
    c2b = (inter // 2) * 3
    c2b_p = ((c2b + 7) // 8) * 8            # pad branch2's middle width for aligned slices
    cout = params["cl"]["w"].shape[0]
    ho = (h - 1) // stride + 1
    wo = (w - 1) // stride + 1
    s_full, s_half = h * w, ho * wo

    # Fold `g` images side-by-side along the lane axis so matmul N dims and the
    # output store are lane-dense (multiples of 128); remaining image groups are a
    # "parallel" grid axis (keeps both v7x TensorCores fed for larger batches).
    g = n
    for cand in range(1, n + 1):
        if n % cand == 0 and (cand * s_half) % 128 == 0:
            g = cand
            break
    groups = n // g
    lf, lh = g * s_full, g * s_half

    # per-tap boundary masks + static lane-roll amounts (O(H*W), not O((H*W)^2))
    m_f1 = jnp.asarray(_make_masks(h, w, 1, g))                       # b1b, b2b, b2c
    m_hv = jnp.asarray(_make_masks(ho, wo, visual, g))                # b0b
    m_h1 = jnp.asarray(_make_masks(ho, wo, visual + 1, g))            # b1c
    m_h2 = jnp.asarray(_make_masks(ho, wo, 2 * visual + 1, g))        # b2d
    sh_f1 = _tap_shifts(w, 1, lf)
    sh_hv = _tap_shifts(wo, visual, lh)
    sh_h1 = _tap_shifts(wo, visual + 1, lh)
    sh_h2 = _tap_shifts(wo, 2 * visual + 1, lh)
    dsub = jnp.asarray(_make_subsample(h, w, stride)).astype(jnp.bfloat16)

    # BN (eval mode) folded into bf16 weights / f32 biases; sibling 1x1 stems fused.
    w_b1a, b_b1a = _fold_1x1_cf(params["b1a"])
    w_b2a, b_b2a = _fold_1x1_cf(params["b2a"])
    w_stem_f = jnp.concatenate([w_b1a, w_b2a], axis=0)               # x  -> (b1a | b2a)
    b_stem_f = jnp.concatenate([b_b1a, b_b2a], axis=0)
    w_b0a, b_b0a = _fold_1x1_cf(params["b0a"])
    w_sc, b_sc = _fold_1x1_cf(params["sc"])
    w_stem_h = jnp.concatenate([w_b0a, w_sc], axis=0)                 # xs -> (b0a | shortcut)
    b_stem_h = jnp.concatenate([b_b0a, b_sc], axis=0)
    w_b0b, b_b0b = _fold_3x3_cf(params["b0b"])
    w_b1b, b_b1b = _fold_3x3_cf(params["b1b"])
    w_b1c, b_b1c = _fold_3x3_cf(params["b1c"])
    w_b2b, b_b2b = _fold_3x3_cf(params["b2b"], cout_pad=c2b_p)
    w_b2c, b_b2c = _fold_3x3_cf(params["b2c"], cin_pad=c2b_p)
    w_b2d, b_b2d = _fold_3x3_cf(params["b2d"])
    w_cl, b_cl = _fold_1x1_cf(params["cl"])

    # channels-first, group-folded activations (bf16 MXU operands); xs is the
    # 1x1-stride-s spatial subsample of x done as a free strided slice on the host.
    def fold_groups(t4):
        _, c, hh, ww = t4.shape
        t = t4.reshape(groups, g, c, hh * ww)
        return jnp.transpose(t, (0, 2, 1, 3)).reshape(groups, c, g * hh * ww)

    x_cf = fold_groups(x).astype(jnp.bfloat16)
    xs_cf = fold_groups(x[:, :, ::stride, ::stride]).astype(jnp.bfloat16)

    consts = [m_f1, m_hv, m_h1, m_h2, dsub,
              w_stem_f, b_stem_f, w_stem_h, b_stem_h,
              w_b0b, b_b0b, w_b1b, b_b1b, w_b1c, b_b1c,
              w_b2b, b_b2b, w_b2c, b_b2c, w_b2d, b_b2d,
              w_cl, b_cl]

    def kernel(x_ref, xs_ref, mf1, mhv, mh1, mh2, dsub_ref,
               wsf, bsf, wsh, bsh,
               w0b, b0b, w1b, b1b, w1c, b1c,
               w2b, b2b, w2c, b2c, w2d, b2d,
               wcl, bcl, out_ref):
        bf16 = jnp.bfloat16

        def mm(a, b):
            return jnp.dot(a, b, preferred_element_type=jnp.float32)

        def conv3x3(a, w_ref, b_ref, m_ref, shifts, co, relu):
            # ONE stacked-tap MXU matmul; per-tap spatial shifts via XLU lane rolls,
            # zero-padding boundaries via precomputed VPU masks.
            big = mm(w_ref[...], a)                         # (9*co, L) f32
            acc = None
            for k in range(9):                              # static unroll
                piece = big[k * co:(k + 1) * co, :]
                if shifts[k]:
                    piece = pltpu.roll(piece, shifts[k], 1)
                piece = piece * m_ref[k]
                acc = piece if acc is None else acc + piece
            acc = acc + b_ref[...]
            return jnp.maximum(acc, 0.0) if relu else acc

        def downsample(y):
            # stride-s spatial subsample of an in-kernel intermediate, per image
            # (avoids the g^2 MAC blow-up of a block-diagonal selection matrix).
            y = y.astype(bf16)
            if stride == 1:
                return y
            parts = [mm(y[:, i * s_full:(i + 1) * s_full],
                        dsub_ref[...]).astype(bf16) for i in range(g)]
            return parts[0] if g == 1 else jnp.concatenate(parts, axis=1)

        xin = x_ref[0]                                      # (Cin, lf)  bf16
        xs = xs_ref[0]                                      # (Cin, lh)  bf16

        # fused sibling 1x1 stems
        stem = jnp.maximum(mm(wsf[...], xin) + bsf[...], 0.0)       # b1a | b2a
        x1 = stem[:inter, :].astype(bf16)
        x2 = stem[inter:, :].astype(bf16)
        sh = mm(wsh[...], xs) + bsh[...]                            # b0a | shortcut
        x0 = jnp.maximum(sh[:two_i, :], 0.0).astype(bf16)
        short = sh[two_i:, :]                                       # (cout, lh) f32

        # branch0: 3x3 dil=visual at output resolution
        y0 = conv3x3(x0, w0b, b0b, mhv, sh_hv, two_i, False)

        # branch1: 3x3 stride=s (same conv at full res + subsample) -> 3x3 dil=v+1
        y1 = conv3x3(x1, w1b, b1b, mf1, sh_f1, two_i, True)
        y1 = downsample(y1)
        y1 = conv3x3(y1, w1c, b1c, mh1, sh_h1, two_i, False)

        # branch2: 3x3 -> 3x3 stride=s -> 3x3 dil=2v+1
        y2 = conv3x3(x2, w2b, b2b, mf1, sh_f1, c2b_p, True).astype(bf16)
        y2 = conv3x3(y2, w2c, b2c, mf1, sh_f1, two_i, True)
        y2 = downsample(y2)
        y2 = conv3x3(y2, w2d, b2d, mh2, sh_h2, two_i, False)

        # ConvLinear over concat(x0,x1,x2) + scaled residual + ReLU (lane-dense store)
        cat = jnp.concatenate(
            [y0.astype(bf16), y1.astype(bf16), y2.astype(bf16)], axis=0)
        lin = mm(wcl[...], cat) + bcl[...]
        out_ref[0] = jnp.maximum(lin * scale + short, 0.0)

    in_specs = [pl.BlockSpec((1, cin, lf), lambda i: (i, 0, 0)),
                pl.BlockSpec((1, cin, lh), lambda i: (i, 0, 0))]
    for c in consts:            # grid-invariant constants (~100 KB total)
        in_specs.append(pl.BlockSpec(c.shape, lambda i, nd=c.ndim: (0,) * nd))

    out = pl.pallas_call(
        kernel,
        grid=(groups,),
        in_specs=in_specs,
        out_specs=pl.BlockSpec((1, cout, lh), lambda i: (i, 0, 0)),
        out_shape=jax.ShapeDtypeStruct((groups, cout, lh), jnp.float32),
        compiler_params=pltpu.CompilerParams(
            dimension_semantics=("parallel",),
            vmem_limit_bytes=32 * 1024 * 1024),
    )(x_cf, xs_cf, *consts)

    out = out.reshape(groups, cout, g, s_half)
    return jnp.transpose(out, (0, 2, 1, 3)).reshape(n, cout, ho, wo)


# ----------------------------- pure-JAX reference -----------------------------
def reference(x, params, stride=2, scale=1.0, visual=2):
    def bc(y, p, stride_, pad, dil, relu):
        s, b = _fold(p)
        out = jax.lax.conv_general_dilated(
            y, p["w"], window_strides=(stride_, stride_),
            padding=((pad, pad), (pad, pad)),
            rhs_dilation=(dil, dil),
            dimension_numbers=("NCHW", "OIHW", "NCHW"))
        out = out * s[None, :, None, None] + b[None, :, None, None]
        return jnp.maximum(out, 0.0) if relu else out

    x0 = bc(x, params["b0a"], stride, 0, 1, True)
    x0 = bc(x0, params["b0b"], 1, visual, visual, False)
    x1 = bc(x, params["b1a"], 1, 0, 1, True)
    x1 = bc(x1, params["b1b"], stride, 1, 1, True)
    x1 = bc(x1, params["b1c"], 1, visual + 1, visual + 1, False)
    x2 = bc(x, params["b2a"], 1, 0, 1, True)
    x2 = bc(x2, params["b2b"], 1, 1, 1, True)
    x2 = bc(x2, params["b2c"], stride, 1, 1, True)
    x2 = bc(x2, params["b2d"], 1, 2 * visual + 1, 2 * visual + 1, False)
    out = jnp.concatenate([x0, x1, x2], axis=1)
    out = bc(out, params["cl"], 1, 0, 1, False)
    short = bc(x, params["sc"], stride, 0, 1, False)
    return jnp.maximum(out * scale + short, 0.0)


# ----------------------------- main --------------------------------------------
def _init_conv(key, cin, cout, k):
    kw, kg, kb, km, kv = jax.random.split(key, 5)
    fan = cin * k * k
    return {
        "w": jax.random.normal(kw, (cout, cin, k, k), jnp.float32) / np.sqrt(fan),
        "gamma": 1.0 + 0.1 * jax.random.normal(kg, (cout,), jnp.float32),
        "beta": 0.1 * jax.random.normal(kb, (cout,), jnp.float32),
        "mean": 0.1 * jax.random.normal(km, (cout,), jnp.float32),
        "var": 1.0 + 0.1 * jax.random.uniform(kv, (cout,), jnp.float32),
    }


if __name__ == "__main__":
    N, Cin, H, W = 2, 64, 16, 16
    Cout = 64
    stride, scale, visual = 2, 1.0, 2
    inter = Cin // 8                      # 8

    key = jax.random.PRNGKey(0)
    keys = jax.random.split(key, 12)
    x = jax.random.normal(keys[0], (N, Cin, H, W), jnp.float32)

    params = {
        "b0a": _init_conv(keys[1], Cin, 2 * inter, 1),
        "b0b": _init_conv(keys[2], 2 * inter, 2 * inter, 3),
        "b1a": _init_conv(keys[3], Cin, inter, 1),
        "b1b": _init_conv(keys[4], inter, 2 * inter, 3),
        "b1c": _init_conv(keys[5], 2 * inter, 2 * inter, 3),
        "b2a": _init_conv(keys[6], Cin, inter, 1),
        "b2b": _init_conv(keys[7], inter, (inter // 2) * 3, 3),
        "b2c": _init_conv(keys[8], (inter // 2) * 3, 2 * inter, 3),
        "b2d": _init_conv(keys[9], 2 * inter, 2 * inter, 3),
        "cl":  _init_conv(keys[10], 6 * inter, Cout, 1),
        "sc":  _init_conv(keys[11], Cin, Cout, 1),
    }

    out = jax.block_until_ready(
        basic_rfb(x, params, stride=stride, scale=scale, visual=visual))
    ref = jax.block_until_ready(
        reference(x, params, stride=stride, scale=scale, visual=visual))

    # bf16 MXU path with f32 accumulation -> slightly looser tolerance than pure f32
    np.testing.assert_allclose(np.asarray(out), np.asarray(ref),
                               rtol=3e-2, atol=3e-2)
    print("KERNEL_OK")
</pallas_src>

<mosaic_0001>
module attributes {stable_mosaic.version = 11 : i64} {
  func.func @kernel(%arg0: i32, %arg1: memref<1x64x512xbf16, #tpu.memory_space<vmem>>, %arg2: memref<1x64x128xbf16, #tpu.memory_space<vmem>>, %arg3: memref<9x1x512xf32, #tpu.memory_space<vmem>>, %arg4: memref<9x1x128xf32, #tpu.memory_space<vmem>>, %arg5: memref<9x1x128xf32, #tpu.memory_space<vmem>>, %arg6: memref<9x1x128xf32, #tpu.memory_space<vmem>>, %arg7: memref<256x64xbf16, #tpu.memory_space<vmem>>, %arg8: memref<16x64xbf16, #tpu.memory_space<vmem>>, %arg9: memref<16x1xf32, #tpu.memory_space<vmem>>, %arg10: memref<80x64xbf16, #tpu.memory_space<vmem>>, %arg11: memref<80x1xf32, #tpu.memory_space<vmem>>, %arg12: memref<144x16xbf16, #tpu.memory_space<vmem>>, %arg13: memref<16x1xf32, #tpu.memory_space<vmem>>, %arg14: memref<144x8xbf16, #tpu.memory_space<vmem>>, %arg15: memref<16x1xf32, #tpu.memory_space<vmem>>, %arg16: memref<144x16xbf16, #tpu.memory_space<vmem>>, %arg17: memref<16x1xf32, #tpu.memory_space<vmem>>, %arg18: memref<144x8xbf16, #tpu.memory_space<vmem>>, %arg19: memref<16x1xf32, #tpu.memory_space<vmem>>, %arg20: memref<144x16xbf16, #tpu.memory_space<vmem>>, %arg21: memref<16x1xf32, #tpu.memory_space<vmem>>, %arg22: memref<144x16xbf16, #tpu.memory_space<vmem>>, %arg23: memref<16x1xf32, #tpu.memory_space<vmem>>, %arg24: memref<64x48xbf16, #tpu.memory_space<vmem>>, %arg25: memref<64x1xf32, #tpu.memory_space<vmem>>, %arg26: memref<1x64x128xf32, #tpu.memory_space<vmem>>) attributes {dimension_semantics = [#tpu.dimension_semantics<parallel>], iteration_bounds = array<i64: 1>, scalar_prefetch = 0 : i64, scratch_operands = 0 : i64, tpu.core_type = #tpu.core_type<tc>, window_params = [{transform_indices = @transform_0, window_bounds = array<i64: 1, 64, 512>}, {transform_indices = @transform_1, window_bounds = array<i64: 1, 64, 128>}, {pipeline_mode = #tpu.pipeline_mode<synchronous>, transform_indices = @transform_2, window_bounds = array<i64: 9, 1, 512>}, {pipeline_mode = #tpu.pipeline_mode<synchronous>, transform_indices = @transform_3, window_bounds = array<i64: 9, 1, 128>}, {pipeline_mode = #tpu.pipeline_mode<synchronous>, transform_indices = @transform_4, window_bounds = array<i64: 9, 1, 128>}, {pipeline_mode = #tpu.pipeline_mode<synchronous>, transform_indices = @transform_5, window_bounds = array<i64: 9, 1, 128>}, {pipeline_mode = #tpu.pipeline_mode<synchronous>, transform_indices = @transform_6, window_bounds = array<i64: 256, 64>}, {pipeline_mode = #tpu.pipeline_mode<synchronous>, transform_indices = @transform_7, window_bounds = array<i64: 16, 64>}, {pipeline_mode = #tpu.pipeline_mode<synchronous>, transform_indices = @transform_8, window_bounds = array<i64: 16, 1>}, {pipeline_mode = #tpu.pipeline_mode<synchronous>, transform_indices = @transform_9, window_bounds = array<i64: 80, 64>}, {pipeline_mode = #tpu.pipeline_mode<synchronous>, transform_indices = @transform_10, window_bounds = array<i64: 80, 1>}, {pipeline_mode = #tpu.pipeline_mode<synchronous>, transform_indices = @transform_11, window_bounds = array<i64: 144, 16>}, {pipeline_mode = #tpu.pipeline_mode<synchronous>, transform_indices = @transform_12, window_bounds = array<i64: 16, 1>}, {pipeline_mode = #tpu.pipeline_mode<synchronous>, transform_indices = @transform_13, window_bounds = array<i64: 144, 8>}, {pipeline_mode = #tpu.pipeline_mode<synchronous>, transform_indices = @transform_14, window_bounds = array<i64: 16, 1>}, {pipeline_mode = #tpu.pipeline_mode<synchronous>, transform_indices = @transform_15, window_bounds = array<i64: 144, 16>}, {pipeline_mode = #tpu.pipeline_mode<synchronous>, transform_indices = @transform_16, window_bounds = array<i64: 16, 1>}, {pipeline_mode = #tpu.pipeline_mode<synchronous>, transform_indices = @transform_17, window_bounds = array<i64: 144, 8>}, {pipeline_mode = #tpu.pipeline_mode<synchronous>, transform_indices = @transform_18, window_bounds = array<i64: 16, 1>}, {pipeline_mode = #tpu.pipeline_mode<synchronous>, transform_indices = @transform_19, window_bounds = array<i64: 144, 16>}, {pipeline_mode = #tpu.pipeline_mode<synchronous>, transform_indices = @transform_20, window_bounds = array<i64: 16, 1>}, {pipeline_mode = #tpu.pipeline_mode<synchronous>, transform_indices = @transform_21, window_bounds = array<i64: 144, 16>}, {pipeline_mode = #tpu.pipeline_mode<synchronous>, transform_indices = @transform_22, window_bounds = array<i64: 16, 1>}, {pipeline_mode = #tpu.pipeline_mode<synchronous>, transform_indices = @transform_23, window_bounds = array<i64: 64, 48>}, {pipeline_mode = #tpu.pipeline_mode<synchronous>, transform_indices = @transform_24, window_bounds = array<i64: 64, 1>}, {transform_indices = @transform_25, window_bounds = array<i64: 1, 64, 128>}]} {
    %c0 = arith.constant 0 : index
    %c0_0 = arith.constant 0 : index
    %c0_1 = arith.constant 0 : index
    %0 = vector.load %arg1[%c0, %c0_0, %c0_1] : memref<1x64x512xbf16, #tpu.memory_space<vmem>>, vector<1x64x512xbf16>
    %1 = vector.shape_cast %0 : vector<1x64x512xbf16> to vector<64x512xbf16>
    %c0_2 = arith.constant 0 : index
    %c0_3 = arith.constant 0 : index
    %c0_4 = arith.constant 0 : index
    %2 = vector.load %arg2[%c0_2, %c0_3, %c0_4] : memref<1x64x128xbf16, #tpu.memory_space<vmem>>, vector<1x64x128xbf16>
    %3 = vector.shape_cast %2 : vector<1x64x128xbf16> to vector<64x128xbf16>
    %c0_5 = arith.constant 0 : index
    %c0_6 = arith.constant 0 : index
    %4 = vector.load %arg8[%c0_5, %c0_6] : memref<16x64xbf16, #tpu.memory_space<vmem>>, vector<16x64xbf16>
    %cst = arith.constant dense<0.000000e+00> : vector<16x512xf32>
    %5 = tpu.matmul %4, %1, %cst {dimension_numbers = #tpu.dot_dimension_numbers<[1], [0], [0], [1], [0, 0, 1, 1], [], []>} : vector<16x64xbf16>, vector<64x512xbf16>, vector<16x512xf32> -> vector<16x512xf32>
    %c0_7 = arith.constant 0 : index
    %c0_8 = arith.constant 0 : index
    %6 = vector.load %arg9[%c0_7, %c0_8] : memref<16x1xf32, #tpu.memory_space<vmem>>, vector<16x1xf32>
    %7 = vector.broadcast %6 : vector<16x1xf32> to vector<16x512xf32>
    %8 = arith.addf %5, %7 : vector<16x512xf32>
    %cst_9 = arith.constant 0.000000e+00 : f32
    %9 = vector.broadcast %cst_9 : f32 to vector<16x512xf32>
    %10 = arith.maximumf %8, %9 : vector<16x512xf32>
    %11 = vector.extract_strided_slice %10 {offsets = [0, 0], sizes = [8, 512], strides = [1, 1]} : vector<16x512xf32> to vector<8x512xf32>
    %12 = arith.truncf %11 : vector<8x512xf32> to vector<8x512xbf16>
    %13 = vector.extract_strided_slice %10 {offsets = [8, 0], sizes = [8, 512], strides = [1, 1]} : vector<16x512xf32> to vector<8x512xf32>
    %14 = arith.truncf %13 : vector<8x512xf32> to vector<8x512xbf16>
    %c0_10 = arith.constant 0 : index
    %c0_11 = arith.constant 0 : index
    %15 = vector.load %arg10[%c0_10, %c0_11] : memref<80x64xbf16, #tpu.memory_space<vmem>>, vector<80x64xbf16>
    %cst_12 = arith.constant dense<0.000000e+00> : vector<80x128xf32>
    %16 = tpu.matmul %15, %3, %cst_12 {dimension_numbers = #tpu.dot_dimension_numbers<[1], [0], [0], [1], [0, 0, 1, 1], [], []>} : vector<80x64xbf16>, vector<64x128xbf16>, vector<80x128xf32> -> vector<80x128xf32>
    %c0_13 = arith.constant 0 : index
    %c0_14 = arith.constant 0 : index
    %17 = vector.load %arg11[%c0_13, %c0_14] : memref<80x1xf32, #tpu.memory_space<vmem>>, vector<80x1xf32>
    %18 = vector.broadcast %17 : vector<80x1xf32> to vector<80x128xf32>
    %19 = arith.addf %16, %18 : vector<80x128xf32>
    %20 = vector.extract_strided_slice %19 {offsets = [0, 0], sizes = [16, 128], strides = [1, 1]} : vector<80x128xf32> to vector<16x128xf32>
    %cst_15 = arith.constant 0.000000e+00 : f32
    %21 = vector.broadcast %cst_15 : f32 to vector<16x128xf32>
    %22 = arith.maximumf %20, %21 : vector<16x128xf32>
    %23 = arith.truncf %22 : vector<16x128xf32> to vector<16x128xbf16>
    %24 = vector.extract_strided_slice %19 {offsets = [16, 0], sizes = [64, 128], strides = [1, 1]} : vector<80x128xf32> to vector<64x128xf32>
    %c0_16 = arith.constant 0 : index
    %c0_17 = arith.constant 0 : index
    %25 = vector.load %arg12[%c0_16, %c0_17] : memref<144x16xbf16, #tpu.memory_space<vmem>>, vector<144x16xbf16>
    %cst_18 = arith.constant dense<0.000000e+00> : vector<144x128xf32>
    %26 = tpu.matmul %25, %23, %cst_18 {dimension_numbers = #tpu.dot_dimension_numbers<[1], [0], [0], [1], [0, 0, 1, 1], [], []>} : vector<144x16xbf16>, vector<16x128xbf16>, vector<144x128xf32> -> vector<144x128xf32>
    %27 = vector.extract_strided_slice %26 {offsets = [0, 0], sizes = [16, 128], strides = [1, 1]} : vector<144x128xf32> to vector<16x128xf32>
    %c18_i32 = arith.constant 18 : i32
    %28 = tpu.dynamic_rotate %27 by %c18_i32 dim 1 : vector<16x128xf32>, i32 -> vector<16x128xf32>
    %c0_19 = arith.constant 0 : index
    %c0_20 = arith.constant 0 : index
    %c0_21 = arith.constant 0 : index
    %29 = vector.load %arg4[%c0_19, %c0_20, %c0_21] : memref<9x1x128xf32, #tpu.memory_space<vmem>>, vector<1x1x128xf32>
    %30 = vector.shape_cast %29 : vector<1x1x128xf32> to vector<1x128xf32>
    %31 = vector.broadcast %30 : vector<1x128xf32> to vector<16x128xf32>
    %32 = arith.mulf %28, %31 : vector<16x128xf32>
    %33 = vector.extract_strided_slice %26 {offsets = [16, 0], sizes = [16, 128], strides = [1, 1]} : vector<144x128xf32> to vector<16x128xf32>
    %c16_i32 = arith.constant 16 : i32
    %34 = tpu.dynamic_rotate %33 by %c16_i32 dim 1 : vector<16x128xf32>, i32 -> vector<16x128xf32>
    %c1 = arith.constant 1 : index
    %c0_22 = arith.constant 0 : index
    %c0_23 = arith.constant 0 : index
    %35 = vector.load %arg4[%c1, %c0_22, %c0_23] : memref<9x1x128xf32, #tpu.memory_space<vmem>>, vector<1x1x128xf32>
    %36 = vector.shape_cast %35 : vector<1x1x128xf32> to vector<1x128xf32>
    %37 = vector.broadcast %36 : vector<1x128xf32> to vector<16x128xf32>
    %38 = arith.mulf %34, %37 : vector<16x128xf32>
    %39 = arith.addf %32, %38 : vector<16x128xf32>
    %40 = vector.extract_strided_slice %26 {offsets = [32, 0], sizes = [16, 128], strides = [1, 1]} : vector<144x128xf32> to vector<16x128xf32>
    %c14_i32 = arith.constant 14 : i32
    %41 = tpu.dynamic_rotate %40 by %c14_i32 dim 1 : vector<16x128xf32>, i32 -> vector<16x128xf32>
    %c2 = arith.constant 2 : index
    %c0_24 = arith.constant 0 : index
    %c0_25 = arith.constant 0 : index
    %42 = vector.load %arg4[%c2, %c0_24, %c0_25] : memref<9x1x128xf32, #tpu.memory_space<vmem>>, vector<1x1x128xf32>
    %43 = vector.shape_cast %42 : vector<1x1x128xf32> to vector<1x128xf32>
    %44 = vector.broadcast %43 : vector<1x128xf32> to vector<16x128xf32>
    %45 = arith.mulf %41, %44 : vector<16x128xf32>
    %46 = arith.addf %39, %45 : vector<16x128xf32>
    %47 = vector.extract_strided_slice %26 {offsets = [48, 0], sizes = [16, 128], strides = [1, 1]} : vector<144x128xf32> to vector<16x128xf32>
    %c2_i32 = arith.constant 2 : i32
    %48 = tpu.dynamic_rotate %47 by %c2_i32 dim 1 : vector<16x128xf32>, i32 -> vector<16x128xf32>
    %c3 = arith.constant 3 : index
    %c0_26 = arith.constant 0 : index
    %c0_27 = arith.constant 0 : index
    %49 = vector.load %arg4[%c3, %c0_26, %c0_27] : memref<9x1x128xf32, #tpu.memory_space<vmem>>, vector<1x1x128xf32>
    %50 = vector.shape_cast %49 : vector<1x1x128xf32> to vector<1x128xf32>
    %51 = vector.broadcast %50 : vector<1x128xf32> to vector<16x128xf32>
    %52 = arith.mulf %48, %51 : vector<16x128xf32>
    %53 = arith.addf %46, %52 : vector<16x128xf32>
    %54 = vector.extract_strided_slice %26 {offsets = [64, 0], sizes = [16, 128], strides = [1, 1]} : vector<144x128xf32> to vector<16x128xf32>
    %c4 = arith.constant 4 : index
    %c0_28 = arith.constant 0 : index
    %c0_29 = arith.constant 0 : index
    %55 = vector.load %arg4[%c4, %c0_28, %c0_29] : memref<9x1x128xf32, #tpu.memory_space<vmem>>, vector<1x1x128xf32>
    %56 = vector.shape_cast %55 : vector<1x1x128xf32> to vector<1x128xf32>
    %57 = vector.broadcast %56 : vector<1x128xf32> to vector<16x128xf32>
    %58 = arith.mulf %54, %57 : vector<16x128xf32>
    %59 = arith.addf %53, %58 : vector<16x128xf32>
    %60 = vector.extract_strided_slice %26 {offsets = [80, 0], sizes = [16, 128], strides = [1, 1]} : vector<144x128xf32> to vector<16x128xf32>
    %c126_i32 = arith.constant 126 : i32
    %61 = tpu.dynamic_rotate %60 by %c126_i32 dim 1 : vector<16x128xf32>, i32 -> vector<16x128xf32>
    %c5 = arith.constant 5 : index
    %c0_30 = arith.constant 0 : index
    %c0_31 = arith.constant 0 : index
    %62 = vector.load %arg4[%c5, %c0_30, %c0_31] : memref<9x1x128xf32, #tpu.memory_space<vmem>>, vector<1x1x128xf32>
    %63 = vector.shape_cast %62 : vector<1x1x128xf32> to vector<1x128xf32>
    %64 = vector.broadcast %63 : vector<1x128xf32> to vector<16x128xf32>
    %65 = arith.mulf %61, %64 : vector<16x128xf32>
    %66 = arith.addf %59, %65 : vector<16x128xf32>
    %67 = vector.extract_strided_slice %26 {offsets = [96, 0], sizes = [16, 128], strides = [1, 1]} : vector<144x128xf32> to vector<16x128xf32>
    %c114_i32 = arith.constant 114 : i32
    %68 = tpu.dynamic_rotate %67 by %c114_i32 dim 1 : vector<16x128xf32>, i32 -> vector<16x128xf32>
    %c6 = arith.constant 6 : index
    %c0_32 = arith.constant 0 : index
    %c0_33 = arith.constant 0 : index
    %69 = vector.load %arg4[%c6, %c0_32, %c0_33] : memref<9x1x128xf32, #tpu.memory_space<vmem>>, vector<1x1x128xf32>
    %70 = vector.shape_cast %69 : vector<1x1x128xf32> to vector<1x128xf32>
    %71 = vector.broadcast %70 : vector<1x128xf32> to vector<16x128xf32>
    %72 = arith.mulf %68, %71 : vector<16x128xf32>
    %73 = arith.addf %66, %72 : vector<16x128xf32>
    %74 = vector.extract_strided_slice %26 {offsets = [112, 0], sizes = [16, 128], strides = [1, 1]} : vector<144x128xf32> to vector<16x128xf32>
    %c112_i32 = arith.constant 112 : i32
    %75 = tpu.dynamic_rotate %74 by %c112_i32 dim 1 : vector<16x128xf32>, i32 -> vector<16x128xf32>
    %c7 = arith.constant 7 : index
    %c0_34 = arith.constant 0 : index
    %c0_35 = arith.constant 0 : index
    %76 = vector.load %arg4[%c7, %c0_34, %c0_35] : memref<9x1x128xf32, #tpu.memory_space<vmem>>, vector<1x1x128xf32>
    %77 = vector.shape_cast %76 : vector<1x1x128xf32> to vector<1x128xf32>
    %78 = vector.broadcast %77 : vector<1x128xf32> to vector<16x128xf32>
    %79 = arith.mulf %75, %78 : vector<16x128xf32>
    %80 = arith.addf %73, %79 : vector<16x128xf32>
    %81 = vector.extract_strided_slice %26 {offsets = [128, 0], sizes = [16, 128], strides = [1, 1]} : vector<144x128xf32> to vector<16x128xf32>
    %c110_i32 = arith.constant 110 : i32
    %82 = tpu.dynamic_rotate %81 by %c110_i32 dim 1 : vector<16x128xf32>, i32 -> vector<16x128xf32>
    %c8 = arith.constant 8 : index
    %c0_36 = arith.constant 0 : index
    %c0_37 = arith.constant 0 : index
    %83 = vector.load %arg4[%c8, %c0_36, %c0_37] : memref<9x1x128xf32, #tpu.memory_space<vmem>>, vector<1x1x128xf32>
    %84 = vector.shape_cast %83 : vector<1x1x128xf32> to vector<1x128xf32>
    %85 = vector.broadcast %84 : vector<1x128xf32> to vector<16x128xf32>
    %86 = arith.mulf %82, %85 : vector<16x128xf32>
    %87 = arith.addf %80, %86 : vector<16x128xf32>
    %c0_38 = arith.constant 0 : index
    %c0_39 = arith.constant 0 : index
    %88 = vector.load %arg13[%c0_38, %c0_39] : memref<16x1xf32, #tpu.memory_space<vmem>>, vector<16x1xf32>
    %89 = vector.broadcast %88 : vector<16x1xf32> to vector<16x128xf32>
    %90 = arith.addf %87, %89 : vector<16x128xf32>
    %c0_40 = arith.constant 0 : index
    %c0_41 = arith.constant 0 : index
    %91 = vector.load %arg14[%c0_40, %c0_41] : memref<144x8xbf16, #tpu.memory_space<vmem>>, vector<144x8xbf16>
    %cst_42 = arith.constant dense<0.000000e+00> : vector<144x512xf32>
    %92 = tpu.matmul %91, %12, %cst_42 {dimension_numbers = #tpu.dot_dimension_numbers<[1], [0], [0], [1], [0, 0, 1, 1], [], []>} : vector<144x8xbf16>, vector<8x512xbf16>, vector<144x512xf32> -> vector<144x512xf32>
    %93 = vector.extract_strided_slice %92 {offsets = [0, 0], sizes = [16, 512], strides = [1, 1]} : vector<144x512xf32> to vector<16x512xf32>
    %c17_i32 = arith.constant 17 : i32
    %94 = tpu.dynamic_rotate %93 by %c17_i32 dim 1 : vector<16x512xf32>, i32 -> vector<16x512xf32>
    %c0_43 = arith.constant 0 : index
    %c0_44 = arith.constant 0 : index
    %c0_45 = arith.constant 0 : index
    %95 = vector.load %arg3[%c0_43, %c0_44, %c0_45] : memref<9x1x512xf32, #tpu.memory_space<vmem>>, vector<1x1x512xf32>
    %96 = vector.shape_cast %95 : vector<1x1x512xf32> to vector<1x512xf32>
    %97 = vector.broadcast %96 : vector<1x512xf32> to vector<16x512xf32>
    %98 = arith.mulf %94, %97 : vector<16x512xf32>
    %99 = vector.extract_strided_slice %92 {offsets = [16, 0], sizes = [16, 512], strides = [1, 1]} : vector<144x512xf32> to vector<16x512xf32>
    %c16_i32_46 = arith.constant 16 : i32
    %100 = tpu.dynamic_rotate %99 by %c16_i32_46 dim 1 : vector<16x512xf32>, i32 -> vector<16x512xf32>
    %c1_47 = arith.constant 1 : index
    %c0_48 = arith.constant 0 : index
    %c0_49 = arith.constant 0 : index
    %101 = vector.load %arg3[%c1_47, %c0_48, %c0_49] : memref<9x1x512xf32, #tpu.memory_space<vmem>>, vector<1x1x512xf32>
    %102 = vector.shape_cast %101 : vector<1x1x512xf32> to vector<1x512xf32>
    %103 = vector.broadcast %102 : vector<1x512xf32> to vector<16x512xf32>
    %104 = arith.mulf %100, %103 : vector<16x512xf32>
    %105 = arith.addf %98, %104 : vector<16x512xf32>
    %106 = vector.extract_strided_slice %92 {offsets = [32, 0], sizes = [16, 512], strides = [1, 1]} : vector<144x512xf32> to vector<16x512xf32>
    %c15_i32 = arith.constant 15 : i32
    %107 = tpu.dynamic_rotate %106 by %c15_i32 dim 1 : vector<16x512xf32>, i32 -> vector<16x512xf32>
    %c2_50 = arith.constant 2 : index
    %c0_51 = arith.constant 0 : index
    %c0_52 = arith.constant 0 : index
    %108 = vector.load %arg3[%c2_50, %c0_51, %c0_52] : memref<9x1x512xf32, #tpu.memory_space<vmem>>, vector<1x1x512xf32>
    %109 = vector.shape_cast %108 : vector<1x1x512xf32> to vector<1x512xf32>
    %110 = vector.broadcast %109 : vector<1x512xf32> to vector<16x512xf32>
    %111 = arith.mulf %107, %110 : vector<16x512xf32>
    %112 = arith.addf %105, %111 : vector<16x512xf32>
    %113 = vector.extract_strided_slice %92 {offsets = [48, 0], sizes = [16, 512], strides = [1, 1]} : vector<144x512xf32> to vector<16x512xf32>
    %c1_i32 = arith.constant 1 : i32
    %114 = tpu.dynamic_rotate %113 by %c1_i32 dim 1 : vector<16x512xf32>, i32 -> vector<16x512xf32>
    %c3_53 = arith.constant 3 : index
    %c0_54 = arith.constant 0 : index
    %c0_55 = arith.constant 0 : index
    %115 = vector.load %arg3[%c3_53, %c0_54, %c0_55] : memref<9x1x512xf32, #tpu.memory_space<vmem>>, vector<1x1x512xf32>
    %116 = vector.shape_cast %115 : vector<1x1x512xf32> to vector<1x512xf32>
    %117 = vector.broadcast %116 : vector<1x512xf32> to vector<16x512xf32>
    %118 = arith.mulf %114, %117 : vector<16x512xf32>
    %119 = arith.addf %112, %118 : vector<16x512xf32>
    %120 = vector.extract_strided_slice %92 {offsets = [64, 0], sizes = [16, 512], strides = [1, 1]} : vector<144x512xf32> to vector<16x512xf32>
    %c4_56 = arith.constant 4 : index
    %c0_57 = arith.constant 0 : index
    %c0_58 = arith.constant 0 : index
    %121 = vector.load %arg3[%c4_56, %c0_57, %c0_58] : memref<9x1x512xf32, #tpu.memory_space<vmem>>, vector<1x1x512xf32>
    %122 = vector.shape_cast %121 : vector<1x1x512xf32> to vector<1x512xf32>
    %123 = vector.broadcast %122 : vector<1x512xf32> to vector<16x512xf32>
    %124 = arith.mulf %120, %123 : vector<16x512xf32>
    %125 = arith.addf %119, %124 : vector<16x512xf32>
    %126 = vector.extract_strided_slice %92 {offsets = [80, 0], sizes = [16, 512], strides = [1, 1]} : vector<144x512xf32> to vector<16x512xf32>
    %c511_i32 = arith.constant 511 : i32
    %127 = tpu.dynamic_rotate %126 by %c511_i32 dim 1 : vector<16x512xf32>, i32 -> vector<16x512xf32>
    %c5_59 = arith.constant 5 : index
    %c0_60 = arith.constant 0 : index
    %c0_61 = arith.constant 0 : index
    %128 = vector.load %arg3[%c5_59, %c0_60, %c0_61] : memref<9x1x512xf32, #tpu.memory_space<vmem>>, vector<1x1x512xf32>
    %129 = vector.shape_cast %128 : vector<1x1x512xf32> to vector<1x512xf32>
    %130 = vector.broadcast %129 : vector<1x512xf32> to vector<16x512xf32>
    %131 = arith.mulf %127, %130 : vector<16x512xf32>
    %132 = arith.addf %125, %131 : vector<16x512xf32>
    %133 = vector.extract_strided_slice %92 {offsets = [96, 0], sizes = [16, 512], strides = [1, 1]} : vector<144x512xf32> to vector<16x512xf32>
    %c497_i32 = arith.constant 497 : i32
    %134 = tpu.dynamic_rotate %133 by %c497_i32 dim 1 : vector<16x512xf32>, i32 -> vector<16x512xf32>
    %c6_62 = arith.constant 6 : index
    %c0_63 = arith.constant 0 : index
    %c0_64 = arith.constant 0 : index
    %135 = vector.load %arg3[%c6_62, %c0_63, %c0_64] : memref<9x1x512xf32, #tpu.memory_space<vmem>>, vector<1x1x512xf32>
    %136 = vector.shape_cast %135 : vector<1x1x512xf32> to vector<1x512xf32>
    %137 = vector.broadcast %136 : vector<1x512xf32> to vector<16x512xf32>
    %138 = arith.mulf %134, %137 : vector<16x512xf32>
    %139 = arith.addf %132, %138 : vector<16x512xf32>
    %140 = vector.extract_strided_slice %92 {offsets = [112, 0], sizes = [16, 512], strides = [1, 1]} : vector<144x512xf32> to vector<16x512xf32>
    %c496_i32 = arith.constant 496 : i32
    %141 = tpu.dynamic_rotate %140 by %c496_i32 dim 1 : vector<16x512xf32>, i32 -> vector<16x512xf32>
    %c7_65 = arith.constant 7 : index
    %c0_66 = arith.constant 0 : index
    %c0_67 = arith.constant 0 : index
    %142 = vector.load %arg3[%c7_65, %c0_66, %c0_67] : memref<9x1x512xf32, #tpu.memory_space<vmem>>, vector<1x1x512xf32>
    %143 = vector.shape_cast %142 : vector<1x1x512xf32> to vector<1x512xf32>
    %144 = vector.broadcast %143 : vector<1x512xf32> to vector<16x512xf32>
    %145 = arith.mulf %141, %144 : vector<16x512xf32>
    %146 = arith.addf %139, %145 : vector<16x512xf32>
    %147 = vector.extract_strided_slice %92 {offsets = [128, 0], sizes = [16, 512], strides = [1, 1]} : vector<144x512xf32> to vector<16x512xf32>
    %c495_i32 = arith.constant 495 : i32
    %148 = tpu.dynamic_rotate %147 by %c495_i32 dim 1 : vector<16x512xf32>, i32 -> vector<16x512xf32>
    %c8_68 = arith.constant 8 : index
    %c0_69 = arith.constant 0 : index
    %c0_70 = arith.constant 0 : index
    %149 = vector.load %arg3[%c8_68, %c0_69, %c0_70] : memref<9x1x512xf32, #tpu.memory_space<vmem>>, vector<1x1x512xf32>
    %150 = vector.shape_cast %149 : vector<1x1x512xf32> to vector<1x512xf32>
    %151 = vector.broadcast %150 : vector<1x512xf32> to vector<16x512xf32>
    %152 = arith.mulf %148, %151 : vector<16x512xf32>
    %153 = arith.addf %146, %152 : vector<16x512xf32>
    %c0_71 = arith.constant 0 : index
    %c0_72 = arith.constant 0 : index
    %154 = vector.load %arg15[%c0_71, %c0_72] : memref<16x1xf32, #tpu.memory_space<vmem>>, vector<16x1xf32>
    %155 = vector.broadcast %154 : vector<16x1xf32> to vector<16x512xf32>
    %156 = arith.addf %153, %155 : vector<16x512xf32>
    %cst_73 = arith.constant 0.000000e+00 : f32
    %157 = vector.broadcast %cst_73 : f32 to vector<16x512xf32>
    %158 = arith.maximumf %156, %157 : vector<16x512xf32>
    %159 = arith.truncf %158 : vector<16x512xf32> to vector<16x512xbf16>
    %160 = vector.extract_strided_slice %159 {offsets = [0, 0], sizes = [16, 256], strides = [1, 1]} : vector<16x512xbf16> to vector<16x256xbf16>
    %c0_74 = arith.constant 0 : index
    %c0_75 = arith.constant 0 : index
    %161 = vector.load %arg7[%c0_74, %c0_75] : memref<256x64xbf16, #tpu.memory_space<vmem>>, vector<256x64xbf16>
    %cst_76 = arith.constant dense<0.000000e+00> : vector<16x64xf32>
    %162 = tpu.matmul %160, %161, %cst_76 {dimension_numbers = #tpu.dot_dimension_numbers<[1], [0], [0], [1], [0, 0, 1, 1], [], []>} : vector<16x256xbf16>, vector<256x64xbf16>, vector<16x64xf32> -> vector<16x64xf32>
    %163 = arith.truncf %162 : vector<16x64xf32> to vector<16x64xbf16>
    %164 = vector.extract_strided_slice %159 {offsets = [0, 256], sizes = [16, 256], strides = [1, 1]} : vector<16x512xbf16> to vector<16x256xbf16>
    %c0_77 = arith.constant 0 : index
    %c0_78 = arith.constant 0 : index
    %165 = vector.load %arg7[%c0_77, %c0_78] : memref<256x64xbf16, #tpu.memory_space<vmem>>, vector<256x64xbf16>
    %cst_79 = arith.constant dense<0.000000e+00> : vector<16x64xf32>
    %166 = tpu.matmul %164, %165, %cst_79 {dimension_numbers = #tpu.dot_dimension_numbers<[1], [0], [0], [1], [0, 0, 1, 1], [], []>} : vector<16x256xbf16>, vector<256x64xbf16>, vector<16x64xf32> -> vector<16x64xf32>
    %167 = arith.truncf %166 : vector<16x64xf32> to vector<16x64xbf16>
    %168 = tpu.concatenate %163, %167 in 1 : vector<16x64xbf16>, vector<16x64xbf16> -> vector<16x128xbf16>
    %c0_80 = arith.constant 0 : index
    %c0_81 = arith.constant 0 : index
    %169 = vector.load %arg16[%c0_80, %c0_81] : memref<144x16xbf16, #tpu.memory_space<vmem>>, vector<144x16xbf16>
    %cst_82 = arith.constant dense<0.000000e+00> : vector<144x128xf32>
    %170 = tpu.matmul %169, %168, %cst_82 {dimension_numbers = #tpu.dot_dimension_numbers<[1], [0], [0], [1], [0, 0, 1, 1], [], []>} : vector<144x16xbf16>, vector<16x128xbf16>, vector<144x128xf32> -> vector<144x128xf32>
    %171 = vector.extract_strided_slice %170 {offsets = [0, 0], sizes = [16, 128], strides = [1, 1]} : vector<144x128xf32> to vector<16x128xf32>
    %c27_i32 = arith.constant 27 : i32
    %172 = tpu.dynamic_rotate %171 by %c27_i32 dim 1 : vector<16x128xf32>, i32 -> vector<16x128xf32>
    %c0_83 = arith.constant 0 : index
    %c0_84 = arith.constant 0 : index
    %c0_85 = arith.constant 0 : index
    %173 = vector.load %arg5[%c0_83, %c0_84, %c0_85] : memref<9x1x128xf32, #tpu.memory_space<vmem>>, vector<1x1x128xf32>
    %174 = vector.shape_cast %173 : vector<1x1x128xf32> to vector<1x128xf32>
    %175 = vector.broadcast %174 : vector<1x128xf32> to vector<16x128xf32>
    %176 = arith.mulf %172, %175 : vector<16x128xf32>
    %177 = vector.extract_strided_slice %170 {offsets = [16, 0], sizes = [16, 128], strides = [1, 1]} : vector<144x128xf32> to vector<16x128xf32>
    %c24_i32 = arith.constant 24 : i32
    %178 = tpu.dynamic_rotate %177 by %c24_i32 dim 1 : vector<16x128xf32>, i32 -> vector<16x128xf32>
    %c1_86 = arith.constant 1 : index
    %c0_87 = arith.constant 0 : index
    %c0_88 = arith.constant 0 : index
    %179 = vector.load %arg5[%c1_86, %c0_87, %c0_88] : memref<9x1x128xf32, #tpu.memory_space<vmem>>, vector<1x1x128xf32>
    %180 = vector.shape_cast %179 : vector<1x1x128xf32> to vector<1x128xf32>
    %181 = vector.broadcast %180 : vector<1x128xf32> to vector<16x128xf32>
    %182 = arith.mulf %178, %181 : vector<16x128xf32>
    %183 = arith.addf %176, %182 : vector<16x128xf32>
    %184 = vector.extract_strided_slice %170 {offsets = [32, 0], sizes = [16, 128], strides = [1, 1]} : vector<144x128xf32> to vector<16x128xf32>
    %c21_i32 = arith.constant 21 : i32
    %185 = tpu.dynamic_rotate %184 by %c21_i32 dim 1 : vector<16x128xf32>, i32 -> vector<16x128xf32>
    %c2_89 = arith.constant 2 : index
    %c0_90 = arith.constant 0 : index
    %c0_91 = arith.constant 0 : index
    %186 = vector.load %arg5[%c2_89, %c0_90, %c0_91] : memref<9x1x128xf32, #tpu.memory_space<vmem>>, vector<1x1x128xf32>
    %187 = vector.shape_cast %186 : vector<1x1x128xf32> to vector<1x128xf32>
    %188 = vector.broadcast %187 : vector<1x128xf32> to vector<16x128xf32>
    %189 = arith.mulf %185, %188 : vector<16x128xf32>
    %190 = arith.addf %183, %189 : vector<16x128xf32>
    %191 = vector.extract_strided_slice %170 {offsets = [48, 0], sizes = [16, 128], strides = [1, 1]} : vector<144x128xf32> to vector<16x128xf32>
    %c3_i32 = arith.constant 3 : i32
    %192 = tpu.dynamic_rotate %191 by %c3_i32 dim 1 : vector<16x128xf32>, i32 -> vector<16x128xf32>
    %c3_92 = arith.constant 3 : index
    %c0_93 = arith.constant 0 : index
    %c0_94 = arith.constant 0 : index
    %193 = vector.load %arg5[%c3_92, %c0_93, %c0_94] : memref<9x1x128xf32, #tpu.memory_space<vmem>>, vector<1x1x128xf32>
    %194 = vector.shape_cast %193 : vector<1x1x128xf32> to vector<1x128xf32>
    %195 = vector.broadcast %194 : vector<1x128xf32> to vector<16x128xf32>
    %196 = arith.mulf %192, %195 : vector<16x128xf32>
    %197 = arith.addf %190, %196 : vector<16x128xf32>
    %198 = vector.extract_strided_slice %170 {offsets = [64, 0], sizes = [16, 128], strides = [1, 1]} : vector<144x128xf32> to vector<16x128xf32>
    %c4_95 = arith.constant 4 : index
    %c0_96 = arith.constant 0 : index
    %c0_97 = arith.constant 0 : index
    %199 = vector.load %arg5[%c4_95, %c0_96, %c0_97] : memref<9x1x128xf32, #tpu.memory_space<vmem>>, vector<1x1x128xf32>
    %200 = vector.shape_cast %199 : vector<1x1x128xf32> to vector<1x128xf32>
    %201 = vector.broadcast %200 : vector<1x128xf32> to vector<16x128xf32>
    %202 = arith.mulf %198, %201 : vector<16x128xf32>
    %203 = arith.addf %197, %202 : vector<16x128xf32>
    %204 = vector.extract_strided_slice %170 {offsets = [80, 0], sizes = [16, 128], strides = [1, 1]} : vector<144x128xf32> to vector<16x128xf32>
    %c125_i32 = arith.constant 125 : i32
    %205 = tpu.dynamic_rotate %204 by %c125_i32 dim 1 : vector<16x128xf32>, i32 -> vector<16x128xf32>
    %c5_98 = arith.constant 5 : index
    %c0_99 = arith.constant 0 : index
    %c0_100 = arith.constant 0 : index
    %206 = vector.load %arg5[%c5_98, %c0_99, %c0_100] : memref<9x1x128xf32, #tpu.memory_space<vmem>>, vector<1x1x128xf32>
    %207 = vector.shape_cast %206 : vector<1x1x128xf32> to vector<1x128xf32>
    %208 = vector.broadcast %207 : vector<1x128xf32> to vector<16x128xf32>
    %209 = arith.mulf %205, %208 : vector<16x128xf32>
    %210 = arith.addf %203, %209 : vector<16x128xf32>
    %211 = vector.extract_strided_slice %170 {offsets = [96, 0], sizes = [16, 128], strides = [1, 1]} : vector<144x128xf32> to vector<16x128xf32>
    %c107_i32 = arith.constant 107 : i32
    %212 = tpu.dynamic_rotate %211 by %c107_i32 dim 1 : vector<16x128xf32>, i32 -> vector<16x128xf32>
    %c6_101 = arith.constant 6 : index
    %c0_102 = arith.constant 0 : index
    %c0_103 = arith.constant 0 : index
    %213 = vector.load %arg5[%c6_101, %c0_102, %c0_103] : memref<9x1x128xf32, #tpu.memory_space<vmem>>, vector<1x1x128xf32>
    %214 = vector.shape_cast %213 : vector<1x1x128xf32> to vector<1x128xf32>
    %215 = vector.broadcast %214 : vector<1x128xf32> to vector<16x128xf32>
    %216 = arith.mulf %212, %215 : vector<16x128xf32>
    %217 = arith.addf %210, %216 : vector<16x128xf32>
    %218 = vector.extract_strided_slice %170 {offsets = [112, 0], sizes = [16, 128], strides = [1, 1]} : vector<144x128xf32> to vector<16x128xf32>
    %c104_i32 = arith.constant 104 : i32
    %219 = tpu.dynamic_rotate %218 by %c104_i32 dim 1 : vector<16x128xf32>, i32 -> vector<16x128xf32>
    %c7_104 = arith.constant 7 : index
    %c0_105 = arith.constant 0 : index
    %c0_106 = arith.constant 0 : index
    %220 = vector.load %arg5[%c7_104, %c0_105, %c0_106] : memref<9x1x128xf32, #tpu.memory_space<vmem>>, vector<1x1x128xf32>
    %221 = vector.shape_cast %220 : vector<1x1x128xf32> to vector<1x128xf32>
    %222 = vector.broadcast %221 : vector<1x128xf32> to vector<16x128xf32>
    %223 = arith.mulf %219, %222 : vector<16x128xf32>
    %224 = arith.addf %217, %223 : vector<16x128xf32>
    %225 = vector.extract_strided_slice %170 {offsets = [128, 0], sizes = [16, 128], strides = [1, 1]} : vector<144x128xf32> to vector<16x128xf32>
    %c101_i32 = arith.constant 101 : i32
    %226 = tpu.dynamic_rotate %225 by %c101_i32 dim 1 : vector<16x128xf32>, i32 -> vector<16x128xf32>
    %c8_107 = arith.constant 8 : index
    %c0_108 = arith.constant 0 : index
    %c0_109 = arith.constant 0 : index
    %227 = vector.load %arg5[%c8_107, %c0_108, %c0_109] : memref<9x1x128xf32, #tpu.memory_space<vmem>>, vector<1x1x128xf32>
    %228 = vector.shape_cast %227 : vector<1x1x128xf32> to vector<1x128xf32>
    %229 = vector.broadcast %228 : vector<1x128xf32> to vector<16x128xf32>
    %230 = arith.mulf %226, %229 : vector<16x128xf32>
    %231 = arith.addf %224, %230 : vector<16x128xf32>
    %c0_110 = arith.constant 0 : index
    %c0_111 = arith.constant 0 : index
    %232 = vector.load %arg17[%c0_110, %c0_111] : memref<16x1xf32, #tpu.memory_space<vmem>>, vector<16x1xf32>
    %233 = vector.broadcast %232 : vector<16x1xf32> to vector<16x128xf32>
    %234 = arith.addf %231, %233 : vector<16x128xf32>
    %c0_112 = arith.constant 0 : index
    %c0_113 = arith.constant 0 : index
    %235 = vector.load %arg18[%c0_112, %c0_113] : memref<144x8xbf16, #tpu.memory_space<vmem>>, vector<144x8xbf16>
    %cst_114 = arith.constant dense<0.000000e+00> : vector<144x512xf32>
    %236 = tpu.matmul %235, %14, %cst_114 {dimension_numbers = #tpu.dot_dimension_numbers<[1], [0], [0], [1], [0, 0, 1, 1], [], []>} : vector<144x8xbf16>, vector<8x512xbf16>, vector<144x512xf32> -> vector<144x512xf32>
    %237 = vector.extract_strided_slice %236 {offsets = [0, 0], sizes = [16, 512], strides = [1, 1]} : vector<144x512xf32> to vector<16x512xf32>
    %c17_i32_115 = arith.constant 17 : i32
    %238 = tpu.dynamic_rotate %237 by %c17_i32_115 dim 1 : vector<16x512xf32>, i32 -> vector<16x512xf32>
    %c0_116 = arith.constant 0 : index
    %c0_117 = arith.constant 0 : index
    %c0_118 = arith.constant 0 : index
    %239 = vector.load %arg3[%c0_116, %c0_117, %c0_118] : memref<9x1x512xf32, #tpu.memory_space<vmem>>, vector<1x1x512xf32>
    %240 = vector.shape_cast %239 : vector<1x1x512xf32> to vector<1x512xf32>
    %241 = vector.broadcast %240 : vector<1x512xf32> to vector<16x512xf32>
    %242 = arith.mulf %238, %241 : vector<16x512xf32>
    %243 = vector.extract_strided_slice %236 {offsets = [16, 0], sizes = [16, 512], strides = [1, 1]} : vector<144x512xf32> to vector<16x512xf32>
    %c16_i32_119 = arith.constant 16 : i32
    %244 = tpu.dynamic_rotate %243 by %c16_i32_119 dim 1 : vector<16x512xf32>, i32 -> vector<16x512xf32>
    %c1_120 = arith.constant 1 : index
    %c0_121 = arith.constant 0 : index
    %c0_122 = arith.constant 0 : index
    %245 = vector.load %arg3[%c1_120, %c0_121, %c0_122] : memref<9x1x512xf32, #tpu.memory_space<vmem>>, vector<1x1x512xf32>
    %246 = vector.shape_cast %245 : vector<1x1x512xf32> to vector<1x512xf32>
    %247 = vector.broadcast %246 : vector<1x512xf32> to vector<16x512xf32>
    %248 = arith.mulf %244, %247 : vector<16x512xf32>
    %249 = arith.addf %242, %248 : vector<16x512xf32>
    %250 = vector.extract_strided_slice %236 {offsets = [32, 0], sizes = [16, 512], strides = [1, 1]} : vector<144x512xf32> to vector<16x512xf32>
    %c15_i32_123 = arith.constant 15 : i32
    %251 = tpu.dynamic_rotate %250 by %c15_i32_123 dim 1 : vector<16x512xf32>, i32 -> vector<16x512xf32>
    %c2_124 = arith.constant 2 : index
    %c0_125 = arith.constant 0 : index
    %c0_126 = arith.constant 0 : index
    %252 = vector.load %arg3[%c2_124, %c0_125, %c0_126] : memref<9x1x512xf32, #tpu.memory_space<vmem>>, vector<1x1x512xf32>
    %253 = vector.shape_cast %252 : vector<1x1x512xf32> to vector<1x512xf32>
    %254 = vector.broadcast %253 : vector<1x512xf32> to vector<16x512xf32>
    %255 = arith.mulf %251, %254 : vector<16x512xf32>
    %256 = arith.addf %249, %255 : vector<16x512xf32>
    %257 = vector.extract_strided_slice %236 {offsets = [48, 0], sizes = [16, 512], strides = [1, 1]} : vector<144x512xf32> to vector<16x512xf32>
    %c1_i32_127 = arith.constant 1 : i32
    %258 = tpu.dynamic_rotate %257 by %c1_i32_127 dim 1 : vector<16x512xf32>, i32 -> vector<16x512xf32>
    %c3_128 = arith.constant 3 : index
    %c0_129 = arith.constant 0 : index
    %c0_130 = arith.constant 0 : index
    %259 = vector.load %arg3[%c3_128, %c0_129, %c0_130] : memref<9x1x512xf32, #tpu.memory_space<vmem>>, vector<1x1x512xf32>
    %260 = vector.shape_cast %259 : vector<1x1x512xf32> to vector<1x512xf32>
    %261 = vector.broadcast %260 : vector<1x512xf32> to vector<16x512xf32>
    %262 = arith.mulf %258, %261 : vector<16x512xf32>
    %263 = arith.addf %256, %262 : vector<16x512xf32>
    %264 = vector.extract_strided_slice %236 {offsets = [64, 0], sizes = [16, 512], strides = [1, 1]} : vector<144x512xf32> to vector<16x512xf32>
    %c4_131 = arith.constant 4 : index
    %c0_132 = arith.constant 0 : index
    %c0_133 = arith.constant 0 : index
    %265 = vector.load %arg3[%c4_131, %c0_132, %c0_133] : memref<9x1x512xf32, #tpu.memory_space<vmem>>, vector<1x1x512xf32>
    %266 = vector.shape_cast %265 : vector<1x1x512xf32> to vector<1x512xf32>
    %267 = vector.broadcast %266 : vector<1x512xf32> to vector<16x512xf32>
    %268 = arith.mulf %264, %267 : vector<16x512xf32>
    %269 = arith.addf %263, %268 : vector<16x512xf32>
    %270 = vector.extract_strided_slice %236 {offsets = [80, 0], sizes = [16, 512], strides = [1, 1]} : vector<144x512xf32> to vector<16x512xf32>
    %c511_i32_134 = arith.constant 511 : i32
    %271 = tpu.dynamic_rotate %270 by %c511_i32_134 dim 1 : vector<16x512xf32>, i32 -> vector<16x512xf32>
    %c5_135 = arith.constant 5 : index
    %c0_136 = arith.constant 0 : index
    %c0_137 = arith.constant 0 : index
    %272 = vector.load %arg3[%c5_135, %c0_136, %c0_137] : memref<9x1x512xf32, #tpu.memory_space<vmem>>, vector<1x1x512xf32>
    %273 = vector.shape_cast %272 : vector<1x1x512xf32> to vector<1x512xf32>
    %274 = vector.broadcast %273 : vector<1x512xf32> to vector<16x512xf32>
    %275 = arith.mulf %271, %274 : vector<16x512xf32>
    %276 = arith.addf %269, %275 : vector<16x512xf32>
    %277 = vector.extract_strided_slice %236 {offsets = [96, 0], sizes = [16, 512], strides = [1, 1]} : vector<144x512xf32> to vector<16x512xf32>
    %c497_i32_138 = arith.constant 497 : i32
    %278 = tpu.dynamic_rotate %277 by %c497_i32_138 dim 1 : vector<16x512xf32>, i32 -> vector<16x512xf32>
    %c6_139 = arith.constant 6 : index
    %c0_140 = arith.constant 0 : index
    %c0_141 = arith.constant 0 : index
    %279 = vector.load %arg3[%c6_139, %c0_140, %c0_141] : memref<9x1x512xf32, #tpu.memory_space<vmem>>, vector<1x1x512xf32>
    %280 = vector.shape_cast %279 : vector<1x1x512xf32> to vector<1x512xf32>
    %281 = vector.broadcast %280 : vector<1x512xf32> to vector<16x512xf32>
    %282 = arith.mulf %278, %281 : vector<16x512xf32>
    %283 = arith.addf %276, %282 : vector<16x512xf32>
    %284 = vector.extract_strided_slice %236 {offsets = [112, 0], sizes = [16, 512], strides = [1, 1]} : vector<144x512xf32> to vector<16x512xf32>
    %c496_i32_142 = arith.constant 496 : i32
    %285 = tpu.dynamic_rotate %284 by %c496_i32_142 dim 1 : vector<16x512xf32>, i32 -> vector<16x512xf32>
    %c7_143 = arith.constant 7 : index
    %c0_144 = arith.constant 0 : index
    %c0_145 = arith.constant 0 : index
    %286 = vector.load %arg3[%c7_143, %c0_144, %c0_145] : memref<9x1x512xf32, #tpu.memory_space<vmem>>, vector<1x1x512xf32>
    %287 = vector.shape_cast %286 : vector<1x1x512xf32> to vector<1x512xf32>
    %288 = vector.broadcast %287 : vector<1x512xf32> to vector<16x512xf32>
    %289 = arith.mulf %285, %288 : vector<16x512xf32>
    %290 = arith.addf %283, %289 : vector<16x512xf32>
    %291 = vector.extract_strided_slice %236 {offsets = [128, 0], sizes = [16, 512], strides = [1, 1]} : vector<144x512xf32> to vector<16x512xf32>
    %c495_i32_146 = arith.constant 495 : i32
    %292 = tpu.dynamic_rotate %291 by %c495_i32_146 dim 1 : vector<16x512xf32>, i32 -> vector<16x512xf32>
    %c8_147 = arith.constant 8 : index
    %c0_148 = arith.constant 0 : index
    %c0_149 = arith.constant 0 : index
    %293 = vector.load %arg3[%c8_147, %c0_148, %c0_149] : memref<9x1x512xf32, #tpu.memory_space<vmem>>, vector<1x1x512xf32>
    %294 = vector.shape_cast %293 : vector<1x1x512xf32> to vector<1x512xf32>
    %295 = vector.broadcast %294 : vector<1x512xf32> to vector<16x512xf32>
    %296 = arith.mulf %292, %295 : vector<16x512xf32>
    %297 = arith.addf %290, %296 : vector<16x512xf32>
    %c0_150 = arith.constant 0 : index
    %c0_151 = arith.constant 0 : index
    %298 = vector.load %arg19[%c0_150, %c0_151] : memref<16x1xf32, #tpu.memory_space<vmem>>, vector<16x1xf32>
    %299 = vector.broadcast %298 : vector<16x1xf32> to vector<16x512xf32>
    %300 = arith.addf %297, %299 : vector<16x512xf32>
    %cst_152 = arith.constant 0.000000e+00 : f32
    %301 = vector.broadcast %cst_152 : f32 to vector<16x512xf32>
    %302 = arith.maximumf %300, %301 : vector<16x512xf32>
    %303 = arith.truncf %302 : vector<16x512xf32> to vector<16x512xbf16>
    %c0_153 = arith.constant 0 : index
    %c0_154 = arith.constant 0 : index
    %304 = vector.load %arg20[%c0_153, %c0_154] : memref<144x16xbf16, #tpu.memory_space<vmem>>, vector<144x16xbf16>
    %cst_155 = arith.constant dense<0.000000e+00> : vector<144x512xf32>
    %305 = tpu.matmul %304, %303, %cst_155 {dimension_numbers = #tpu.dot_dimension_numbers<[1], [0], [0], [1], [0, 0, 1, 1], [], []>} : vector<144x16xbf16>, vector<16x512xbf16>, vector<144x512xf32> -> vector<144x512xf32>
    %306 = vector.extract_strided_slice %305 {offsets = [0, 0], sizes = [16, 512], strides = [1, 1]} : vector<144x512xf32> to vector<16x512xf32>
    %c17_i32_156 = arith.constant 17 : i32
    %307 = tpu.dynamic_rotate %306 by %c17_i32_156 dim 1 : vector<16x512xf32>, i32 -> vector<16x512xf32>
    %c0_157 = arith.constant 0 : index
    %c0_158 = arith.constant 0 : index
    %c0_159 = arith.constant 0 : index
    %308 = vector.load %arg3[%c0_157, %c0_158, %c0_159] : memref<9x1x512xf32, #tpu.memory_space<vmem>>, vector<1x1x512xf32>
    %309 = vector.shape_cast %308 : vector<1x1x512xf32> to vector<1x512xf32>
    %310 = vector.broadcast %309 : vector<1x512xf32> to vector<16x512xf32>
    %311 = arith.mulf %307, %310 : vector<16x512xf32>
    %312 = vector.extract_strided_slice %305 {offsets = [16, 0], sizes = [16, 512], strides = [1, 1]} : vector<144x512xf32> to vector<16x512xf32>
    %c16_i32_160 = arith.constant 16 : i32
    %313 = tpu.dynamic_rotate %312 by %c16_i32_160 dim 1 : vector<16x512xf32>, i32 -> vector<16x512xf32>
    %c1_161 = arith.constant 1 : index
    %c0_162 = arith.constant 0 : index
    %c0_163 = arith.constant 0 : index
    %314 = vector.load %arg3[%c1_161, %c0_162, %c0_163] : memref<9x1x512xf32, #tpu.memory_space<vmem>>, vector<1x1x512xf32>
    %315 = vector.shape_cast %314 : vector<1x1x512xf32> to vector<1x512xf32>
    %316 = vector.broadcast %315 : vector<1x512xf32> to vector<16x512xf32>
    %317 = arith.mulf %313, %316 : vector<16x512xf32>
    %318 = arith.addf %311, %317 : vector<16x512xf32>
    %319 = vector.extract_strided_slice %305 {offsets = [32, 0], sizes = [16, 512], strides = [1, 1]} : vector<144x512xf32> to vector<16x512xf32>
    %c15_i32_164 = arith.constant 15 : i32
    %320 = tpu.dynamic_rotate %319 by %c15_i32_164 dim 1 : vector<16x512xf32>, i32 -> vector<16x512xf32>
    %c2_165 = arith.constant 2 : index
    %c0_166 = arith.constant 0 : index
    %c0_167 = arith.constant 0 : index
    %321 = vector.load %arg3[%c2_165, %c0_166, %c0_167] : memref<9x1x512xf32, #tpu.memory_space<vmem>>, vector<1x1x512xf32>
    %322 = vector.shape_cast %321 : vector<1x1x512xf32> to vector<1x512xf32>
    %323 = vector.broadcast %322 : vector<1x512xf32> to vector<16x512xf32>
    %324 = arith.mulf %320, %323 : vector<16x512xf32>
    %325 = arith.addf %318, %324 : vector<16x512xf32>
    %326 = vector.extract_strided_slice %305 {offsets = [48, 0], sizes = [16, 512], strides = [1, 1]} : vector<144x512xf32> to vector<16x512xf32>
    %c1_i32_168 = arith.constant 1 : i32
    %327 = tpu.dynamic_rotate %326 by %c1_i32_168 dim 1 : vector<16x512xf32>, i32 -> vector<16x512xf32>
    %c3_169 = arith.constant 3 : index
    %c0_170 = arith.constant 0 : index
    %c0_171 = arith.constant 0 : index
    %328 = vector.load %arg3[%c3_169, %c0_170, %c0_171] : memref<9x1x512xf32, #tpu.memory_space<vmem>>, vector<1x1x512xf32>
    %329 = vector.shape_cast %328 : vector<1x1x512xf32> to vector<1x512xf32>
    %330 = vector.broadcast %329 : vector<1x512xf32> to vector<16x512xf32>
    %331 = arith.mulf %327, %330 : vector<16x512xf32>
    %332 = arith.addf %325, %331 : vector<16x512xf32>
    %333 = vector.extract_strided_slice %305 {offsets = [64, 0], sizes = [16, 512], strides = [1, 1]} : vector<144x512xf32> to vector<16x512xf32>
    %c4_172 = arith.constant 4 : index
    %c0_173 = arith.constant 0 : index
    %c0_174 = arith.constant 0 : index
    %334 = vector.load %arg3[%c4_172, %c0_173, %c0_174] : memref<9x1x512xf32, #tpu.memory_space<vmem>>, vector<1x1x512xf32>
    %335 = vector.shape_cast %334 : vector<1x1x512xf32> to vector<1x512xf32>
    %336 = vector.broadcast %335 : vector<1x512xf32> to vector<16x512xf32>
    %337 = arith.mulf %333, %336 : vector<16x512xf32>
    %338 = arith.addf %332, %337 : vector<16x512xf32>
    %339 = vector.extract_strided_slice %305 {offsets = [80, 0], sizes = [16, 512], strides = [1, 1]} : vector<144x512xf32> to vector<16x512xf32>
    %c511_i32_175 = arith.constant 511 : i32
    %340 = tpu.dynamic_rotate %339 by %c511_i32_175 dim 1 : vector<16x512xf32>, i32 -> vector<16x512xf32>
    %c5_176 = arith.constant 5 : index
    %c0_177 = arith.constant 0 : index
    %c0_178 = arith.constant 0 : index
    %341 = vector.load %arg3[%c5_176, %c0_177, %c0_178] : memref<9x1x512xf32, #tpu.memory_space<vmem>>, vector<1x1x512xf32>
    %342 = vector.shape_cast %341 : vector<1x1x512xf32> to vector<1x512xf32>
    %343 = vector.broadcast %342 : vector<1x512xf32> to vector<16x512xf32>
    %344 = arith.mulf %340, %343 : vector<16x512xf32>
    %345 = arith.addf %338, %344 : vector<16x512xf32>
    %346 = vector.extract_strided_slice %305 {offsets = [96, 0], sizes = [16, 512], strides = [1, 1]} : vector<144x512xf32> to vector<16x512xf32>
    %c497_i32_179 = arith.constant 497 : i32
    %347 = tpu.dynamic_rotate %346 by %c497_i32_179 dim 1 : vector<16x512xf32>, i32 -> vector<16x512xf32>
    %c6_180 = arith.constant 6 : index
    %c0_181 = arith.constant 0 : index
    %c0_182 = arith.constant 0 : index
    %348 = vector.load %arg3[%c6_180, %c0_181, %c0_182] : memref<9x1x512xf32, #tpu.memory_space<vmem>>, vector<1x1x512xf32>
    %349 = vector.shape_cast %348 : vector<1x1x512xf32> to vector<1x512xf32>
    %350 = vector.broadcast %349 : vector<1x512xf32> to vector<16x512xf32>
    %351 = arith.mulf %347, %350 : vector<16x512xf32>
    %352 = arith.addf %345, %351 : vector<16x512xf32>
    %353 = vector.extract_strided_slice %305 {offsets = [112, 0], sizes = [16, 512], strides = [1, 1]} : vector<144x512xf32> to vector<16x512xf32>
    %c496_i32_183 = arith.constant 496 : i32
    %354 = tpu.dynamic_rotate %353 by %c496_i32_183 dim 1 : vector<16x512xf32>, i32 -> vector<16x512xf32>
    %c7_184 = arith.constant 7 : index
    %c0_185 = arith.constant 0 : index
    %c0_186 = arith.constant 0 : index
    %355 = vector.load %arg3[%c7_184, %c0_185, %c0_186] : memref<9x1x512xf32, #tpu.memory_space<vmem>>, vector<1x1x512xf32>
    %356 = vector.shape_cast %355 : vector<1x1x512xf32> to vector<1x512xf32>
    %357 = vector.broadcast %356 : vector<1x512xf32> to vector<16x512xf32>
    %358 = arith.mulf %354, %357 : vector<16x512xf32>
    %359 = arith.addf %352, %358 : vector<16x512xf32>
    %360 = vector.extract_strided_slice %305 {offsets = [128, 0], sizes = [16, 512], strides = [1, 1]} : vector<144x512xf32> to vector<16x512xf32>
    %c495_i32_187 = arith.constant 495 : i32
    %361 = tpu.dynamic_rotate %360 by %c495_i32_187 dim 1 : vector<16x512xf32>, i32 -> vector<16x512xf32>
    %c8_188 = arith.constant 8 : index
    %c0_189 = arith.constant 0 : index
    %c0_190 = arith.constant 0 : index
    %362 = vector.load %arg3[%c8_188, %c0_189, %c0_190] : memref<9x1x512xf32, #tpu.memory_space<vmem>>, vector<1x1x512xf32>
    %363 = vector.shape_cast %362 : vector<1x1x512xf32> to vector<1x512xf32>
    %364 = vector.broadcast %363 : vector<1x512xf32> to vector<16x512xf32>
    %365 = arith.mulf %361, %364 : vector<16x512xf32>
    %366 = arith.addf %359, %365 : vector<16x512xf32>
    %c0_191 = arith.constant 0 : index
    %c0_192 = arith.constant 0 : index
    %367 = vector.load %arg21[%c0_191, %c0_192] : memref<16x1xf32, #tpu.memory_space<vmem>>, vector<16x1xf32>
    %368 = vector.broadcast %367 : vector<16x1xf32> to vector<16x512xf32>
    %369 = arith.addf %366, %368 : vector<16x512xf32>
    %cst_193 = arith.constant 0.000000e+00 : f32
    %370 = vector.broadcast %cst_193 : f32 to vector<16x512xf32>
    %371 = arith.maximumf %369, %370 : vector<16x512xf32>
    %372 = arith.truncf %371 : vector<16x512xf32> to vector<16x512xbf16>
    %373 = vector.extract_strided_slice %372 {offsets = [0, 0], sizes = [16, 256], strides = [1, 1]} : vector<16x512xbf16> to vector<16x256xbf16>
    %c0_194 = arith.constant 0 : index
    %c0_195 = arith.constant 0 : index
    %374 = vector.load %arg7[%c0_194, %c0_195] : memref<256x64xbf16, #tpu.memory_space<vmem>>, vector<256x64xbf16>
    %cst_196 = arith.constant dense<0.000000e+00> : vector<16x64xf32>
    %375 = tpu.matmul %373, %374, %cst_196 {dimension_numbers = #tpu.dot_dimension_numbers<[1], [0], [0], [1], [0, 0, 1, 1], [], []>} : vector<16x256xbf16>, vector<256x64xbf16>, vector<16x64xf32> -> vector<16x64xf32>
    %376 = arith.truncf %375 : vector<16x64xf32> to vector<16x64xbf16>
    %377 = vector.extract_strided_slice %372 {offsets = [0, 256], sizes = [16, 256], strides = [1, 1]} : vector<16x512xbf16> to vector<16x256xbf16>
    %c0_197 = arith.constant 0 : index
    %c0_198 = arith.constant 0 : index
    %378 = vector.load %arg7[%c0_197, %c0_198] : memref<256x64xbf16, #tpu.memory_space<vmem>>, vector<256x64xbf16>
    %cst_199 = arith.constant dense<0.000000e+00> : vector<16x64xf32>
    %379 = tpu.matmul %377, %378, %cst_199 {dimension_numbers = #tpu.dot_dimension_numbers<[1], [0], [0], [1], [0, 0, 1, 1], [], []>} : vector<16x256xbf16>, vector<256x64xbf16>, vector<16x64xf32> -> vector<16x64xf32>
    %380 = arith.truncf %379 : vector<16x64xf32> to vector<16x64xbf16>
    %381 = tpu.concatenate %376, %380 in 1 : vector<16x64xbf16>, vector<16x64xbf16> -> vector<16x128xbf16>
    %c0_200 = arith.constant 0 : index
    %c0_201 = arith.constant 0 : index
    %382 = vector.load %arg22[%c0_200, %c0_201] : memref<144x16xbf16, #tpu.memory_space<vmem>>, vector<144x16xbf16>
    %cst_202 = arith.constant dense<0.000000e+00> : vector<144x128xf32>
    %383 = tpu.matmul %382, %381, %cst_202 {dimension_numbers = #tpu.dot_dimension_numbers<[1], [0], [0], [1], [0, 0, 1, 1], [], []>} : vector<144x16xbf16>, vector<16x128xbf16>, vector<144x128xf32> -> vector<144x128xf32>
    %384 = vector.extract_strided_slice %383 {offsets = [0, 0], sizes = [16, 128], strides = [1, 1]} : vector<144x128xf32> to vector<16x128xf32>
    %c45_i32 = arith.constant 45 : i32
    %385 = tpu.dynamic_rotate %384 by %c45_i32 dim 1 : vector<16x128xf32>, i32 -> vector<16x128xf32>
    %c0_203 = arith.constant 0 : index
    %c0_204 = arith.constant 0 : index
    %c0_205 = arith.constant 0 : index
    %386 = vector.load %arg6[%c0_203, %c0_204, %c0_205] : memref<9x1x128xf32, #tpu.memory_space<vmem>>, vector<1x1x128xf32>
    %387 = vector.shape_cast %386 : vector<1x1x128xf32> to vector<1x128xf32>
    %388 = vector.broadcast %387 : vector<1x128xf32> to vector<16x128xf32>
    %389 = arith.mulf %385, %388 : vector<16x128xf32>
    %390 = vector.extract_strided_slice %383 {offsets = [16, 0], sizes = [16, 128], strides = [1, 1]} : vector<144x128xf32> to vector<16x128xf32>
    %c40_i32 = arith.constant 40 : i32
    %391 = tpu.dynamic_rotate %390 by %c40_i32 dim 1 : vector<16x128xf32>, i32 -> vector<16x128xf32>
    %c1_206 = arith.constant 1 : index
    %c0_207 = arith.constant 0 : index
    %c0_208 = arith.constant 0 : index
    %392 = vector.load %arg6[%c1_206, %c0_207, %c0_208] : memref<9x1x128xf32, #tpu.memory_space<vmem>>, vector<1x1x128xf32>
    %393 = vector.shape_cast %392 : vector<1x1x128xf32> to vector<1x128xf32>
    %394 = vector.broadcast %393 : vector<1x128xf32> to vector<16x128xf32>
    %395 = arith.mulf %391, %394 : vector<16x128xf32>
    %396 = arith.addf %389, %395 : vector<16x128xf32>
    %397 = vector.extract_strided_slice %383 {offsets = [32, 0], sizes = [16, 128], strides = [1, 1]} : vector<144x128xf32> to vector<16x128xf32>
    %c35_i32 = arith.constant 35 : i32
    %398 = tpu.dynamic_rotate %397 by %c35_i32 dim 1 : vector<16x128xf32>, i32 -> vector<16x128xf32>
    %c2_209 = arith.constant 2 : index
    %c0_210 = arith.constant 0 : index
    %c0_211 = arith.constant 0 : index
    %399 = vector.load %arg6[%c2_209, %c0_210, %c0_211] : memref<9x1x128xf32, #tpu.memory_space<vmem>>, vector<1x1x128xf32>
    %400 = vector.shape_cast %399 : vector<1x1x128xf32> to vector<1x128xf32>
    %401 = vector.broadcast %400 : vector<1x128xf32> to vector<16x128xf32>
    %402 = arith.mulf %398, %401 : vector<16x128xf32>
    %403 = arith.addf %396, %402 : vector<16x128xf32>
    %404 = vector.extract_strided_slice %383 {offsets = [48, 0], sizes = [16, 128], strides = [1, 1]} : vector<144x128xf32> to vector<16x128xf32>
    %c5_i32 = arith.constant 5 : i32
    %405 = tpu.dynamic_rotate %404 by %c5_i32 dim 1 : vector<16x128xf32>, i32 -> vector<16x128xf32>
    %c3_212 = arith.constant 3 : index
    %c0_213 = arith.constant 0 : index
    %c0_214 = arith.constant 0 : index
    %406 = vector.load %arg6[%c3_212, %c0_213, %c0_214] : memref<9x1x128xf32, #tpu.memory_space<vmem>>, vector<1x1x128xf32>
    %407 = vector.shape_cast %406 : vector<1x1x128xf32> to vector<1x128xf32>
    %408 = vector.broadcast %407 : vector<1x128xf32> to vector<16x128xf32>
    %409 = arith.mulf %405, %408 : vector<16x128xf32>
    %410 = arith.addf %403, %409 : vector<16x128xf32>
    %411 = vector.extract_strided_slice %383 {offsets = [64, 0], sizes = [16, 128], strides = [1, 1]} : vector<144x128xf32> to vector<16x128xf32>
    %c4_215 = arith.constant 4 : index
    %c0_216 = arith.constant 0 : index
    %c0_217 = arith.constant 0 : index
    %412 = vector.load %arg6[%c4_215, %c0_216, %c0_217] : memref<9x1x128xf32, #tpu.memory_space<vmem>>, vector<1x1x128xf32>
    %413 = vector.shape_cast %412 : vector<1x1x128xf32> to vector<1x128xf32>
    %414 = vector.broadcast %413 : vector<1x128xf32> to vector<16x128xf32>
    %415 = arith.mulf %411, %414 : vector<16x128xf32>
    %416 = arith.addf %410, %415 : vector<16x128xf32>
    %417 = vector.extract_strided_slice %383 {offsets = [80, 0], sizes = [16, 128], strides = [1, 1]} : vector<144x128xf32> to vector<16x128xf32>
    %c123_i32 = arith.constant 123 : i32
    %418 = tpu.dynamic_rotate %417 by %c123_i32 dim 1 : vector<16x128xf32>, i32 -> vector<16x128xf32>
    %c5_218 = arith.constant 5 : index
    %c0_219 = arith.constant 0 : index
    %c0_220 = arith.constant 0 : index
    %419 = vector.load %arg6[%c5_218, %c0_219, %c0_220] : memref<9x1x128xf32, #tpu.memory_space<vmem>>, vector<1x1x128xf32>
    %420 = vector.shape_cast %419 : vector<1x1x128xf32> to vector<1x128xf32>
    %421 = vector.broadcast %420 : vector<1x128xf32> to vector<16x128xf32>
    %422 = arith.mulf %418, %421 : vector<16x128xf32>
    %423 = arith.addf %416, %422 : vector<16x128xf32>
    %424 = vector.extract_strided_slice %383 {offsets = [96, 0], sizes = [16, 128], strides = [1, 1]} : vector<144x128xf32> to vector<16x128xf32>
    %c93_i32 = arith.constant 93 : i32
    %425 = tpu.dynamic_rotate %424 by %c93_i32 dim 1 : vector<16x128xf32>, i32 -> vector<16x128xf32>
    %c6_221 = arith.constant 6 : index
    %c0_222 = arith.constant 0 : index
    %c0_223 = arith.constant 0 : index
    %426 = vector.load %arg6[%c6_221, %c0_222, %c0_223] : memref<9x1x128xf32, #tpu.memory_space<vmem>>, vector<1x1x128xf32>
    %427 = vector.shape_cast %426 : vector<1x1x128xf32> to vector<1x128xf32>
    %428 = vector.broadcast %427 : vector<1x128xf32> to vector<16x128xf32>
    %429 = arith.mulf %425, %428 : vector<16x128xf32>
    %430 = arith.addf %423, %429 : vector<16x128xf32>
    %431 = vector.extract_strided_slice %383 {offsets = [112, 0], sizes = [16, 128], strides = [1, 1]} : vector<144x128xf32> to vector<16x128xf32>
    %c88_i32 = arith.constant 88 : i32
    %432 = tpu.dynamic_rotate %431 by %c88_i32 dim 1 : vector<16x128xf32>, i32 -> vector<16x128xf32>
    %c7_224 = arith.constant 7 : index
    %c0_225 = arith.constant 0 : index
    %c0_226 = arith.constant 0 : index
    %433 = vector.load %arg6[%c7_224, %c0_225, %c0_226] : memref<9x1x128xf32, #tpu.memory_space<vmem>>, vector<1x1x128xf32>
    %434 = vector.shape_cast %433 : vector<1x1x128xf32> to vector<1x128xf32>
    %435 = vector.broadcast %434 : vector<1x128xf32> to vector<16x128xf32>
    %436 = arith.mulf %432, %435 : vector<16x128xf32>
    %437 = arith.addf %430, %436 : vector<16x128xf32>
    %438 = vector.extract_strided_slice %383 {offsets = [128, 0], sizes = [16, 128], strides = [1, 1]} : vector<144x128xf32> to vector<16x128xf32>
    %c83_i32 = arith.constant 83 : i32
    %439 = tpu.dynamic_rotate %438 by %c83_i32 dim 1 : vector<16x128xf32>, i32 -> vector<16x128xf32>
    %c8_227 = arith.constant 8 : index
    %c0_228 = arith.constant 0 : index
    %c0_229 = arith.constant 0 : index
    %440 = vector.load %arg6[%c8_227, %c0_228, %c0_229] : memref<9x1x128xf32, #tpu.memory_space<vmem>>, vector<1x1x128xf32>
    %441 = vector.shape_cast %440 : vector<1x1x128xf32> to vector<1x128xf32>
    %442 = vector.broadcast %441 : vector<1x128xf32> to vector<16x128xf32>
    %443 = arith.mulf %439, %442 : vector<16x128xf32>
    %444 = arith.addf %437, %443 : vector<16x128xf32>
    %c0_230 = arith.constant 0 : index
    %c0_231 = arith.constant 0 : index
    %445 = vector.load %arg23[%c0_230, %c0_231] : memref<16x1xf32, #tpu.memory_space<vmem>>, vector<16x1xf32>
    %446 = vector.broadcast %445 : vector<16x1xf32> to vector<16x128xf32>
    %447 = arith.addf %444, %446 : vector<16x128xf32>
    %448 = arith.truncf %90 : vector<16x128xf32> to vector<16x128xbf16>
    %449 = arith.truncf %234 : vector<16x128xf32> to vector<16x128xbf16>
    %450 = arith.truncf %447 : vector<16x128xf32> to vector<16x128xbf16>
    %451 = tpu.concatenate %448, %449, %450 in 0 : vector<16x128xbf16>, vector<16x128xbf16>, vector<16x128xbf16> -> vector<48x128xbf16>
    %c0_232 = arith.constant 0 : index
    %c0_233 = arith.constant 0 : index
    %452 = vector.load %arg24[%c0_232, %c0_233] : memref<64x48xbf16, #tpu.memory_space<vmem>>, vector<64x48xbf16>
    %cst_234 = arith.constant dense<0.000000e+00> : vector<64x128xf32>
    %453 = tpu.matmul %452, %451, %cst_234 {dimension_numbers = #tpu.dot_dimension_numbers<[1], [0], [0], [1], [0, 0, 1, 1], [], []>} : vector<64x48xbf16>, vector<48x128xbf16>, vector<64x128xf32> -> vector<64x128xf32>
    %c0_235 = arith.constant 0 : index
    %c0_236 = arith.constant 0 : index
    %454 = vector.load %arg25[%c0_235, %c0_236] : memref<64x1xf32, #tpu.memory_space<vmem>>, vector<64x1xf32>
    %455 = vector.broadcast %454 : vector<64x1xf32> to vector<64x128xf32>
    %456 = arith.addf %453, %455 : vector<64x128xf32>
    %cst_237 = arith.constant 1.000000e+00 : f32
    %457 = vector.broadcast %cst_237 : f32 to vector<64x128xf32>
    %458 = arith.mulf %456, %457 : vector<64x128xf32>
    %459 = arith.addf %458, %24 : vector<64x128xf32>
    %cst_238 = arith.constant 0.000000e+00 : f32
    %460 = vector.broadcast %cst_238 : f32 to vector<64x128xf32>
    %461 = arith.maximumf %459, %460 : vector<64x128xf32>
    %c0_239 = arith.constant 0 : index
    %c0_240 = arith.constant 0 : index
    %c0_241 = arith.constant 0 : index
    %462 = vector.load %arg26[%c0_239, %c0_240, %c0_241] : memref<1x64x128xf32, #tpu.memory_space<vmem>>, vector<1x64x128xf32>
    %463 = vector.shape_cast %462 : vector<1x64x128xf32> to vector<64x128xf32>
    %464 = vector.shape_cast %461 : vector<64x128xf32> to vector<1x64x128xf32>
    tpu.vector_store %arg26[%c0_239, %c0_240, %c0_241], %464 {strides = array<i32>} : memref<1x64x128xf32, #tpu.memory_space<vmem>>, vector<1x64x128xf32>,
    return
  }
  func.func @transform_0(%arg0: i32) -> (i32, i32, i32) {
    %c0_i32 = arith.constant 0 : i32
    %c0_i32_0 = arith.constant 0 : i32
    %c0_i32_1 = arith.constant 0 : i32
    return %arg0, %c0_i32, %c0_i32_0 : i32, i32, i32
  }
  func.func @transform_1(%arg0: i32) -> (i32, i32, i32) {
    %c0_i32 = arith.constant 0 : i32
    %c0_i32_0 = arith.constant 0 : i32
    %c0_i32_1 = arith.constant 0 : i32
    return %arg0, %c0_i32, %c0_i32_0 : i32, i32, i32
  }
  func.func @transform_2(%arg0: i32) -> (i32, i32, i32) {
    %c0_i32 = arith.constant 0 : i32
    %c0_i32_0 = arith.constant 0 : i32
    %c0_i32_1 = arith.constant 0 : i32
    %c0_i32_2 = arith.constant 0 : i32
    return %c0_i32, %c0_i32_0, %c0_i32_1 : i32, i32, i32
  }
  func.func @transform_3(%arg0: i32) -> (i32, i32, i32) {
    %c0_i32 = arith.constant 0 : i32
    %c0_i32_0 = arith.constant 0 : i32
    %c0_i32_1 = arith.constant 0 : i32
    %c0_i32_2 = arith.constant 0 : i32
    return %c0_i32, %c0_i32_0, %c0_i32_1 : i32, i32, i32
  }
  func.func @transform_4(%arg0: i32) -> (i32, i32, i32) {
    %c0_i32 = arith.constant 0 : i32
    %c0_i32_0 = arith.constant 0 : i32
    %c0_i32_1 = arith.constant 0 : i32
    %c0_i32_2 = arith.constant 0 : i32
    return %c0_i32, %c0_i32_0, %c0_i32_1 : i32, i32, i32
  }
  func.func @transform_5(%arg0: i32) -> (i32, i32, i32) {
    %c0_i32 = arith.constant 0 : i32
    %c0_i32_0 = arith.constant 0 : i32
    %c0_i32_1 = arith.constant 0 : i32
    %c0_i32_2 = arith.constant 0 : i32
    return %c0_i32, %c0_i32_0, %c0_i32_1 : i32, i32, i32
  }
  func.func @transform_6(%arg0: i32) -> (i32, i32) {
    %c0_i32 = arith.constant 0 : i32
    %c0_i32_0 = arith.constant 0 : i32
    %c0_i32_1 = arith.constant 0 : i32
    return %c0_i32, %c0_i32_0 : i32, i32
  }
  func.func @transform_7(%arg0: i32) -> (i32, i32) {
    %c0_i32 = arith.constant 0 : i32
    %c0_i32_0 = arith.constant 0 : i32
    %c0_i32_1 = arith.constant 0 : i32
    return %c0_i32, %c0_i32_0 : i32, i32
  }
  func.func @transform_8(%arg0: i32) -> (i32, i32) {
    %c0_i32 = arith.constant 0 : i32
    %c0_i32_0 = arith.constant 0 : i32
    %c0_i32_1 = arith.constant 0 : i32
    return %c0_i32, %c0_i32_0 : i32, i32
  }
  func.func @transform_9(%arg0: i32) -> (i32, i32) {
    %c0_i32 = arith.constant 0 : i32
    %c0_i32_0 = arith.constant 0 : i32
    %c0_i32_1 = arith.constant 0 : i32
    return %c0_i32, %c0_i32_0 : i32, i32
  }
  func.func @transform_10(%arg0: i32) -> (i32, i32) {
    %c0_i32 = arith.constant 0 : i32
    %c0_i32_0 = arith.constant 0 : i32
    %c0_i32_1 = arith.constant 0 : i32
    return %c0_i32, %c0_i32_0 : i32, i32
  }
  func.func @transform_11(%arg0: i32) -> (i32, i32) {
    %c0_i32 = arith.constant 0 : i32
    %c0_i32_0 = arith.constant 0 : i32
    %c0_i32_1 = arith.constant 0 : i32
    return %c0_i32, %c0_i32_0 : i32, i32
  }
  func.func @transform_12(%arg0: i32) -> (i32, i32) {
    %c0_i32 = arith.constant 0 : i32
    %c0_i32_0 = arith.constant 0 : i32
    %c0_i32_1 = arith.constant 0 : i32
    return %c0_i32, %c0_i32_0 : i32, i32
  }
  func.func @transform_13(%arg0: i32) -> (i32, i32) {
    %c0_i32 = arith.constant 0 : i32
    %c0_i32_0 = arith.constant 0 : i32
    %c0_i32_1 = arith.constant 0 : i32
    return %c0_i32, %c0_i32_0 : i32, i32
  }
  func.func @transform_14(%arg0: i32) -> (i32, i32) {
    %c0_i32 = arith.constant 0 : i32
    %c0_i32_0 = arith.constant 0 : i32
    %c0_i32_1 = arith.constant 0 : i32
    return %c0_i32, %c0_i32_0 : i32, i32
  }
  func.func @transform_15(%arg0: i32) -> (i32, i32) {
    %c0_i32 = arith.constant 0 : i32
    %c0_i32_0 = arith.constant 0 : i32
    %c0_i32_1 = arith.constant 0 : i32
    return %c0_i32, %c0_i32_0 : i32, i32
  }
  func.func @transform_16(%arg0: i32) -> (i32, i32) {
    %c0_i32 = arith.constant 0 : i32
    %c0_i32_0 = arith.constant 0 : i32
    %c0_i32_1 = arith.constant 0 : i32
    return %c0_i32, %c0_i32_0 : i32, i32
  }
  func.func @transform_17(%arg0: i32) -> (i32, i32) {
    %c0_i32 = arith.constant 0 : i32
    %c0_i32_0 = arith.constant 0 : i32
    %c0_i32_1 = arith.constant 0 : i32
    return %c0_i32, %c0_i32_0 : i32, i32
  }
  func.func @transform_18(%arg0: i32) -> (i32, i32) {
    %c0_i32 = arith.constant 0 : i32
    %c0_i32_0 = arith.constant 0 : i32
    %c0_i32_1 = arith.constant 0 : i32
    return %c0_i32, %c0_i32_0 : i32, i32
  }
  func.func @transform_19(%arg0: i32) -> (i32, i32) {
    %c0_i32 = arith.constant 0 : i32
    %c0_i32_0 = arith.constant 0 : i32
    %c0_i32_1 = arith.constant 0 : i32
    return %c0_i32, %c0_i32_0 : i32, i32
  }
  func.func @transform_20(%arg0: i32) -> (i32, i32) {
    %c0_i32 = arith.constant 0 : i32
    %c0_i32_0 = arith.constant 0 : i32
    %c0_i32_1 = arith.constant 0 : i32
    return %c0_i32, %c0_i32_0 : i32, i32
  }
  func.func @transform_21(%arg0: i32) -> (i32, i32) {
    %c0_i32 = arith.constant 0 : i32
    %c0_i32_0 = arith.constant 0 : i32
    %c0_i32_1 = arith.constant 0 : i32
    return %c0_i32, %c0_i32_0 : i32, i32
  }
  func.func @transform_22(%arg0: i32) -> (i32, i32) {
    %c0_i32 = arith.constant 0 : i32
    %c0_i32_0 = arith.constant 0 : i32
    %c0_i32_1 = arith.constant 0 : i32
    return %c0_i32, %c0_i32_0 : i32, i32
  }
  func.func @transform_23(%arg0: i32) -> (i32, i32) {
    %c0_i32 = arith.constant 0 : i32
    %c0_i32_0 = arith.constant 0 : i32
    %c0_i32_1 = arith.constant 0 : i32
    return %c0_i32, %c0_i32_0 : i32, i32
  }
  func.func @transform_24(%arg0: i32) -> (i32, i32) {
    %c0_i32 = arith.constant 0 : i32
    %c0_i32_0 = arith.constant 0 : i32
    %c0_i32_1 = arith.constant 0 : i32
    return %c0_i32, %c0_i32_0 : i32, i32
  }
  func.func @transform_25(%arg0: i32) -> (i32, i32, i32) {
    %c0_i32 = arith.constant 0 : i32
    %c0_i32_0 = arith.constant 0 : i32
    %c0_i32_1 = arith.constant 0 : i32
    return %arg0, %c0_i32, %c0_i32_0 : i32, i32, i32
  }
}

</mosaic_0001>

<llo_original>
// kernel: tpu_custom_call.1
$region0: #{tpu_custom_call.1}
  #allocation0 [shape = 'u32[]', space=smem, size = 0x4, offset = 0x4, fixed_abs, tag = 'smem constant byte address 0x4 - core index']
  #allocation1 [shape = 'u32[144,128]{1,0:T(1,128)}', space=vmem, size = 0x12000, scoped, tag = 'internal scratch']
  %s0 = inlined_call_operand.vmem [shape: bf16[1,64,512], index: 0, kind: input, shape index: {}]
  %s1 = inlined_call_operand.vmem [shape: bf16[1,64,128], index: 1, kind: input, shape index: {}]
  %s2 = inlined_call_operand.vmem [shape: f32[9,1,512], index: 2, kind: input, shape index: {}]
  %s3 = inlined_call_operand.vmem [shape: f32[9,1,128], index: 3, kind: input, shape index: {}]
  %s4 = inlined_call_operand.vmem [shape: f32[9,1,128], index: 4, kind: input, shape index: {}]
  %s5 = inlined_call_operand.vmem [shape: f32[9,1,128], index: 5, kind: input, shape index: {}]
  %s6 = inlined_call_operand.vmem [shape: bf16[256,64], index: 6, kind: input, shape index: {}]
  %s7 = inlined_call_operand.vmem [shape: bf16[16,64], index: 7, kind: input, shape index: {}]
  %s8 = inlined_call_operand.vmem [shape: f32[16,1], index: 8, kind: input, shape index: {}]
  %s9 = inlined_call_operand.vmem [shape: bf16[80,64], index: 9, kind: input, shape index: {}]
  %s10 = inlined_call_operand.vmem [shape: f32[80,1], index: 10, kind: input, shape index: {}]
  %s11 = inlined_call_operand.vmem [shape: bf16[144,16], index: 11, kind: input, shape index: {}]
  %s12 = inlined_call_operand.vmem [shape: f32[16,1], index: 12, kind: input, shape index: {}]
  %s13 = inlined_call_operand.vmem [shape: bf16[144,8], index: 13, kind: input, shape index: {}]
  %s14 = inlined_call_operand.vmem [shape: f32[16,1], index: 14, kind: input, shape index: {}]
  %s15 = inlined_call_operand.vmem [shape: bf16[144,16], index: 15, kind: input, shape index: {}]
  %s16 = inlined_call_operand.vmem [shape: f32[16,1], index: 16, kind: input, shape index: {}]
  %s17 = inlined_call_operand.vmem [shape: bf16[144,8], index: 17, kind: input, shape index: {}]
  %s18 = inlined_call_operand.vmem [shape: f32[16,1], index: 18, kind: input, shape index: {}]
  %s19 = inlined_call_operand.vmem [shape: bf16[144,16], index: 19, kind: input, shape index: {}]
  %s20 = inlined_call_operand.vmem [shape: f32[16,1], index: 20, kind: input, shape index: {}]
  %s21 = inlined_call_operand.vmem [shape: bf16[144,16], index: 21, kind: input, shape index: {}]
  %s22 = inlined_call_operand.vmem [shape: f32[16,1], index: 22, kind: input, shape index: {}]
  %s23 = inlined_call_operand.vmem [shape: bf16[64,48], index: 23, kind: input, shape index: {}]
  %s24 = inlined_call_operand.vmem [shape: f32[64,1], index: 24, kind: input, shape index: {}]
  %s25 = inlined_call_operand.hbm [shape: f32[1,64,128], index: 25, kind: output, shape index: {}]
  %s26 = sld [smem:[#allocation0]]
  $region110: #{tpu_custom_call.1} parent=0
    _
  %s28 = ssub.s32 1, %s26
  %s29 = scalar_select 0, %s28, %s26
  $region1: #{tpu_custom_call.1} parent=0
    #allocation2 [shape = 'u8[32768]{0}', space=vmem, size = 0x8000, scoped, tag = 'output window, operand 0, single buffered']
    #allocation3 [shape = 's32[1]{0}', space=sflag, size = 0x4, scoped, tag = 'scoped memory for tpu_custom_call.1']
    %30 = vsyncpa [#allocation3], 0
    // Predicated region
    $region2: #{tpu_custom_call.1} parent=1 // pred_check
      _
    $region3: #{tpu_custom_call.1} parent=1 // pred_check_branch
      %32 = sbr.rel (0) target = $region5
    $region4: #{tpu_custom_call.1} parent=1 // pred_region
      _
    $region5: #{tpu_custom_call.1} parent=1 // pred_fallthru
      _
    // Predicated region
    $region6: #{tpu_custom_call.1} parent=1 // pred_check
      _
    $region7: #{tpu_custom_call.1} parent=1 // pred_check_branch
      %34 = sbr.rel (0) target = $region9
    $region8: #{tpu_custom_call.1} parent=1 // pred_region
      _
    $region9: #{tpu_custom_call.1} parent=1 // pred_fallthru
      _
    // Predicated region
    $region10: #{tpu_custom_call.1} parent=1 // pred_check
      _
    $region11: #{tpu_custom_call.1} parent=1 // pred_check_branch
      %36 = sbr.rel (0) target = $region13
    $region12: #{tpu_custom_call.1} parent=1 // pred_region
      _
    $region13: #{tpu_custom_call.1} parent=1 // pred_fallthru
      _
    // Predicated region
    $region14: #{tpu_custom_call.1} parent=1 // pred_check
      _
    $region15: #{tpu_custom_call.1} parent=1 // pred_check_branch
      %38 = sbr.rel (0) target = $region17
    $region16: #{tpu_custom_call.1} parent=1 // pred_region
      _
    $region17: #{tpu_custom_call.1} parent=1 // pred_fallthru
      _
    // Predicated region
    $region18: #{tpu_custom_call.1} parent=1 // pred_check
      _
    $region19: #{tpu_custom_call.1} parent=1 // pred_check_branch
      %40 = sbr.rel (0) target = $region21
    $region20: #{tpu_custom_call.1} parent=1 // pred_region
      _
    $region21: #{tpu_custom_call.1} parent=1 // pred_fallthru
      _
    // Predicated region
    $region22: #{tpu_custom_call.1} parent=1 // pred_check
      _
    $region23: #{tpu_custom_call.1} parent=1 // pred_check_branch
      %42 = sbr.rel (0) target = $region25
    $region24: #{tpu_custom_call.1} parent=1 // pred_region
      _
    $region25: #{tpu_custom_call.1} parent=1 // pred_fallthru
      _
    // Predicated region
    $region26: #{tpu_custom_call.1} parent=1 // pred_check
      _
    $region27: #{tpu_custom_call.1} parent=1 // pred_check_branch
      %44 = sbr.rel (0) target = $region29
    $region28: #{tpu_custom_call.1} parent=1 // pred_region
      _
    $region29: #{tpu_custom_call.1} parent=1 // pred_fallthru
      _
    // Predicated region
    $region30: #{tpu_custom_call.1} parent=1 // pred_check
      _
    $region31: #{tpu_custom_call.1} parent=1 // pred_check_branch
      %46 = sbr.rel (0) target = $region33
    $region32: #{tpu_custom_call.1} parent=1 // pred_region
      _
    $region33: #{tpu_custom_call.1} parent=1 // pred_fallthru
      _
    // Predicated region
    $region34: #{tpu_custom_call.1} parent=1 // pred_check
      _
    $region35: #{tpu_custom_call.1} parent=1 // pred_check_branch
      %48 = sbr.rel (0) target = $region37
    $region36: #{tpu_custom_call.1} parent=1 // pred_region
      _
    $region37: #{tpu_custom_call.1} parent=1 // pred_fallthru
      _
    // Predicated region
    $region38: #{tpu_custom_call.1} parent=1 // pred_check
      _
    $region39: #{tpu_custom_call.1} parent=1 // pred_check_branch
      %50 = sbr.rel (0) target = $region41
    $region40: #{tpu_custom_call.1} parent=1 // pred_region
      _
    $region41: #{tpu_custom_call.1} parent=1 // pred_fallthru
      _
    // Predicated region
    $region42: #{tpu_custom_call.1} parent=1 // pred_check
      _
    $region43: #{tpu_custom_call.1} parent=1 // pred_check_branch
      %52 = sbr.rel (0) target = $region45
    $region44: #{tpu_custom_call.1} parent=1 // pred_region
      _
    $region45: #{tpu_custom_call.1} parent=1 // pred_fallthru
      _
    // Predicated region
    $region46: #{tpu_custom_call.1} parent=1 // pred_check
      _
    $region47: #{tpu_custom_call.1} parent=1 // pred_check_branch
      %54 = sbr.rel (0) target = $region49
    $region48: #{tpu_custom_call.1} parent=1 // pred_region
      _
    $region49: #{tpu_custom_call.1} parent=1 // pred_fallthru
      _
    // Predicated region
    $region50: #{tpu_custom_call.1} parent=1 // pred_check
      _
    $region51: #{tpu_custom_call.1} parent=1 // pred_check_branch
      %56 = sbr.rel (0) target = $region53
    $region52: #{tpu_custom_call.1} parent=1 // pred_region
      _
    $region53: #{tpu_custom_call.1} parent=1 // pred_fallthru
      _
    // Predicated region
    $region54: #{tpu_custom_call.1} parent=1 // pred_check
      _
    $region55: #{tpu_custom_call.1} parent=1 // pred_check_branch
      %58 = sbr.rel (0) target = $region57
    $region56: #{tpu_custom_call.1} parent=1 // pred_region
      _
    $region57: #{tpu_custom_call.1} parent=1 // pred_fallthru
      _
    // Predicated region
    $region58: #{tpu_custom_call.1} parent=1 // pred_check
      _
    $region59: #{tpu_custom_call.1} parent=1 // pred_check_branch
      %60 = sbr.rel (0) target = $region61
    $region60: #{tpu_custom_call.1} parent=1 // pred_region
      _
    $region61: #{tpu_custom_call.1} parent=1 // pred_fallthru
      _
    // Predicated region
    $region62: #{tpu_custom_call.1} parent=1 // pred_check
      _
    $region63: #{tpu_custom_call.1} parent=1 // pred_check_branch
      %62 = sbr.rel (0) target = $region65
    $region64: #{tpu_custom_call.1} parent=1 // pred_region
      _
    $region65: #{tpu_custom_call.1} parent=1 // pred_fallthru
      _
    // Predicated region
    $region66: #{tpu_custom_call.1} parent=1 // pred_check
      _
    $region67: #{tpu_custom_call.1} parent=1 // pred_check_branch
      %64 = sbr.rel (0) target = $region69
    $region68: #{tpu_custom_call.1} parent=1 // pred_region
      _
    $region69: #{tpu_custom_call.1} parent=1 // pred_fallthru
      _
    // Predicated region
    $region70: #{tpu_custom_call.1} parent=1 // pred_check
      _
    $region71: #{tpu_custom_call.1} parent=1 // pred_check_branch
      %66 = sbr.rel (0) target = $region73
    $region72: #{tpu_custom_call.1} parent=1 // pred_region
      _
    $region73: #{tpu_custom_call.1} parent=1 // pred_fallthru
      _
    // Predicated region
    $region74: #{tpu_custom_call.1} parent=1 // pred_check
      _
    $region75: #{tpu_custom_call.1} parent=1 // pred_check_branch
      %68 = sbr.rel (0) target = $region77
    $region76: #{tpu_custom_call.1} parent=1 // pred_region
      _
    $region77: #{tpu_custom_call.1} parent=1 // pred_fallthru
      _
    // Predicated region
    $region78: #{tpu_custom_call.1} parent=1 // pred_check
      _
    $region79: #{tpu_custom_call.1} parent=1 // pred_check_branch
      %70 = sbr.rel (0) target = $region81
    $region80: #{tpu_custom_call.1} parent=1 // pred_region
      _
    $region81: #{tpu_custom_call.1} parent=1 // pred_fallthru
      _
    // Predicated region
    $region82: #{tpu_custom_call.1} parent=1 // pred_check
      _
    $region83: #{tpu_custom_call.1} parent=1 // pred_check_branch
      %72 = sbr.rel (0) target = $region85
    $region84: #{tpu_custom_call.1} parent=1 // pred_region
      _
    $region85: #{tpu_custom_call.1} parent=1 // pred_fallthru
      _
    // Predicated region
    $region86: #{tpu_custom_call.1} parent=1 // pred_check
      _
    $region87: #{tpu_custom_call.1} parent=1 // pred_check_branch
      %74 = sbr.rel (0) target = $region89
    $region88: #{tpu_custom_call.1} parent=1 // pred_region
      _
    $region89: #{tpu_custom_call.1} parent=1 // pred_fallthru
      _
    // Predicated region
    $region90: #{tpu_custom_call.1} parent=1 // pred_check
      _
    $region91: #{tpu_custom_call.1} parent=1 // pred_check_branch
      %76 = sbr.rel (0) target = $region93
    $region92: #{tpu_custom_call.1} parent=1 // pred_region
      _
    $region93: #{tpu_custom_call.1} parent=1 // pred_fallthru
      _
    // Predicated region
    $region94: #{tpu_custom_call.1} parent=1 // pred_check
      _
    $region95: #{tpu_custom_call.1} parent=1 // pred_check_branch
      %78 = sbr.rel (0) target = $region97
    $region96: #{tpu_custom_call.1} parent=1 // pred_region
      _
    $region97: #{tpu_custom_call.1} parent=1 // pred_fallthru
      _
    // Predicated region
    $region98: #{tpu_custom_call.1} parent=1 // pred_check
      _
    $region99: #{tpu_custom_call.1} parent=1 // pred_check_branch
      %80 = sbr.rel (0) target = $region101
    $region100: #{tpu_custom_call.1} parent=1 // pred_region
      _
    $region101: #{tpu_custom_call.1} parent=1 // pred_fallthru
      _
    %v82 = vld [vmem:[%s0] sm:$0xff]
    %v83 = vld [vmem:[%s0 + $0x8] sm:$0xff]
    %v84 = vld [vmem:[%s0 + $0x10] sm:$0xff]
    %v85 = vld [vmem:[%s0 + $0x18] sm:$0xff]
    %v86 = vld [vmem:[%s0 + $0x20] sm:$0xff]
    %v87 = vld [vmem:[%s0 + $0x28] sm:$0xff]
    %v88 = vld [vmem:[%s0 + $0x30] sm:$0xff]
    %v89 = vld [vmem:[%s0 + $0x38] sm:$0xff]
    %v90 = vld [vmem:[%s0 + $0x40] sm:$0xff]
    %v91 = vld [vmem:[%s0 + $0x48] sm:$0xff]
    %v92 = vld [vmem:[%s0 + $0x50] sm:$0xff]
    %v93 = vld [vmem:[%s0 + $0x58] sm:$0xff]
    %v94 = vld [vmem:[%s0 + $0x60] sm:$0xff]
    %v95 = vld [vmem:[%s0 + $0x68] sm:$0xff]
    %v96 = vld [vmem:[%s0 + $0x70] sm:$0xff]
    %v97 = vld [vmem:[%s0 + $0x78] sm:$0xff]
    %v98 = vld [vmem:[%s1] sm:$0xf]
    %v99 = vld [vmem:[%s1 + $0x4] sm:$0xf]
    %v100 = vld [vmem:[%s1 + $0x8] sm:$0xf]
    %v101 = vld [vmem:[%s1 + $0xc] sm:$0xf]
    %v102 = vld [vmem:[%s1 + $0x10] sm:$0xf]
    %v103 = vld [vmem:[%s1 + $0x14] sm:$0xf]
    %v104 = vld [vmem:[%s1 + $0x18] sm:$0xf]
    %v105 = vld [vmem:[%s1 + $0x1c] sm:$0xf]
    %v106 = vld [vmem:[%s7] sm:$0xf]
    %v107 = vld [vmem:[%s7 + $0x4] sm:$0xf]
    %v108 = vld [vmem:[%s8] sm:$0xff]
    %v109 = vld [vmem:[%s8 + $0x8] sm:$0xff]
    %111 = vset.pattern.permute.xlu0 0
    %112 = vperm.xlu0 %111, %v108
    %v113 = vpop.permute.xlu0 %112
    %116 = vset.pattern.permute.xlu0 0
    %117 = vperm.xlu0 %116, %v109
    %v118 = vpop.permute.xlu0 %117
    %v122 = vunpack.c.l.b16 %v106
    %v123 = vunpack.c.l.b16 %v107
    %v124 = vpack.c.b16 %v123, %v122
    %v141 = vunpack.c.l.b16 %v82
    %v142 = vunpack.c.h.b16 %v82
    %v143 = vunpack.c.l.b16 %v83
    %v144 = vunpack.c.h.b16 %v83
    %v145 = vunpack.c.l.b16 %v84
    %v146 = vunpack.c.h.b16 %v84
    %v147 = vunpack.c.l.b16 %v85
    %v148 = vunpack.c.h.b16 %v85
    %v149 = vunpack.c.l.b16 %v86
    %v150 = vunpack.c.h.b16 %v86
    %v151 = vunpack.c.l.b16 %v87
    %v152 = vunpack.c.h.b16 %v87
    %v153 = vunpack.c.l.b16 %v88
    %v154 = vunpack.c.h.b16 %v88
    %v155 = vunpack.c.l.b16 %v89
    %v156 = vunpack.c.h.b16 %v89
    %v157 = vunpack.c.l.b16 %v90
    %v158 = vunpack.c.h.b16 %v90
    %v159 = vunpack.c.l.b16 %v91
    %v160 = vunpack.c.h.b16 %v91
    %v161 = vunpack.c.l.b16 %v92
    %v162 = vunpack.c.h.b16 %v92
    %v163 = vunpack.c.l.b16 %v93
    %v164 = vunpack.c.h.b16 %v93
    %v165 = vunpack.c.l.b16 %v94
    %v166 = vunpack.c.h.b16 %v94
    %v167 = vunpack.c.l.b16 %v95
    %v168 = vunpack.c.h.b16 %v95
    %v169 = vunpack.c.l.b16 %v96
    %v170 = vunpack.c.h.b16 %v96
    %v171 = vunpack.c.l.b16 %v97
    %v172 = vunpack.c.h.b16 %v97
    %v173 = vpack.c.b16 %v145, %v141
    %v174 = vpack.c.b16 %v146, %v142
    %v175 = vpack.c.b16 %v147, %v143
    %v176 = vpack.c.b16 %v148, %v144
    %v177 = vpack.c.b16 %v153, %v149
    %v178 = vpack.c.b16 %v154, %v150
    %v179 = vpack.c.b16 %v155, %v151
    %v180 = vpack.c.b16 %v156, %v152
    %v181 = vpack.c.b16 %v161, %v157
    %v182 = vpack.c.b16 %v162, %v158
    %v183 = vpack.c.b16 %v163, %v159
    %v184 = vpack.c.b16 %v164, %v160
    %v185 = vpack.c.b16 %v169, %v165
    %v186 = vpack.c.b16 %v170, %v166
    %v187 = vpack.c.b16 %v171, %v167
    %v188 = vpack.c.b16 %v172, %v168
    %vm205 = vcmask 523264
    %v207 = vsel %vm205, %v124, 0
    %209 = vmatprep.subr.bf16.mxu0 %v174
    %210 = vmatpush1.bf16.msra.mxu0 %v173
    %211 = vmatprep.subr.bf16.mxu0 %v178
    %212 = vmatpush1.bf16.msra.mxu0 %v177
    %213 = vmatprep.subr.bf16.mxu0 %v182
    %214 = vmatpush1.bf16.msra.mxu0 %v181
    %215 = vmatprep.subr.bf16.mxu0 %v186
    %216 = vmatpush1.bf16.msra.mxu0 %v185
    %217 = vmatprep.subr.bf16.mxu0 0
    %218 = vmatpush1.bf16.msra.mxu0 0
    %219 = vmatprep.subr.bf16.mxu0 0
    %220 = vmatpush1.bf16.msra.mxu0 0
    %221 = vmatprep.subr.bf16.mxu0 0
    %222 = vmatpush1.bf16.msra.mxu0 0
    %223 = vmatprep.subr.bf16.mxu0 0
    %224 = vmatpush1.bf16.msra.mxu0 0
    %225 = vmatprep.subr.bf16.mxu0 0
    %226 = vmatpush1.bf16.msra.mxu0 0
    %227 = vmatprep.subr.bf16.mxu0 0
    %228 = vmatpush1.bf16.msra.mxu0 0
    %229 = vmatprep.subr.bf16.mxu0 0
    %230 = vmatpush1.bf16.msra.mxu0 0
    %231 = vmatprep.subr.bf16.mxu0 0
    %232 = vmatpush1.bf16.msra.mxu0 0
    %233 = vmatprep.subr.bf16.mxu0 0
    %234 = vmatpush1.bf16.msra.mxu0 0
    %235 = vmatprep.subr.bf16.mxu0 0
    %236 = vmatpush1.bf16.msra.mxu0 0
    %237 = vmatprep.subr.bf16.mxu0 0
    %238 = vmatpush1.bf16.msra.mxu0 0
    %239 = vmatprep.subr.bf16.mxu0 0
    %240 = vmatpush1.bf16.msra.mxu0 0
    %241 = vmatprep.mubr.bf16.mxu0 0
    %242 = vmatmul.mubr.bf16.gmra.mrb[0].mxu0 %v207
    %v243 = vpop.f32.mrb[0].mxu0
    %v244 = vadd.f32 %v113, %v243
    %v245 = vpop.f32.mrb[0].mxu0
    %v246 = vadd.f32 %v113, %v245
    %v247 = vpop.f32.mrb[0].mxu0
    %v248 = vadd.f32 %v118, %v247
    %v249 = vpop.f32.mrb[0].mxu0
    %v250 = vadd.f32 %v118, %v249
    %251 = vdwg.mxu0
    %252 = vmatprep.subr.bf16.mxu0 %v176
    %253 = vmatpush1.bf16.msra.mxu0 %v175
    %254 = vmatprep.subr.bf16.mxu0 %v180
    %255 = vmatpush1.bf16.msra.mxu0 %v179
    %256 = vmatprep.subr.bf16.mxu0 %v184
    %257 = vmatpush1.bf16.msra.mxu0 %v183
    %258 = vmatprep.subr.bf16.mxu0 %v188
    %259 = vmatpush1.bf16.msra.mxu0 %v187
    %260 = vmatprep.subr.bf16.mxu0 0
    %261 = vmatpush1.bf16.msra.mxu0 0
    %262 = vmatprep.subr.bf16.mxu0 0
    %263 = vmatpush1.bf16.msra.mxu0 0
    %264 = vmatprep.subr.bf16.mxu0 0
    %265 = vmatpush1.bf16.msra.mxu0 0
    %266 = vmatprep.subr.bf16.mxu0 0
    %267 = vmatpush1.bf16.msra.mxu0 0
    %268 = vmatprep.subr.bf16.mxu0 0
    %269 = vmatpush1.bf16.msra.mxu0 0
    %270 = vmatprep.subr.bf16.mxu0 0
    %271 = vmatpush1.bf16.msra.mxu0 0
    %272 = vmatprep.subr.bf16.mxu0 0
    %273 = vmatpush1.bf16.msra.mxu0 0
    %274 = vmatprep.subr.bf16.mxu0 0
    %275 = vmatpush1.bf16.msra.mxu0 0
    %276 = vmatprep.subr.bf16.mxu0 0
    %277 = vmatpush1.bf16.msra.mxu0 0
    %278 = vmatprep.subr.bf16.mxu0 0
    %279 = vmatpush1.bf16.msra.mxu0 0
    %280 = vmatprep.subr.bf16.mxu0 0
    %281 = vmatpush1.bf16.msra.mxu0 0
    %282 = vmatprep.subr.bf16.mxu0 0
    %283 = vmatpush1.bf16.msra.mxu0 0
    %284 = vmatprep.mubr.bf16.mxu0 0
    %285 = vmatmul.mubr.bf16.gmra.mrb[0].mxu0 %v207
    %v286 = vpop.f32.mrb[0].mxu0
    %v287 = vadd.f32 %v113, %v286
    %v288 = vpop.f32.mrb[0].mxu0
    %v289 = vadd.f32 %v113, %v288
    %v290 = vpop.f32.mrb[0].mxu0
    %v291 = vadd.f32 %v118, %v290
    %v292 = vpop.f32.mrb[0].mxu0
    %v293 = vadd.f32 %v118, %v292
    %294 = vdwg.mxu0
    %v295 = vmax.f32 %v244, 0.0
    %v296 = vmax.f32 %v246, 0.0
    %v297 = vmax.f32 %v287, 0.0
    %v298 = vmax.f32 %v289, 0.0
    %v299 = vmax.f32 %v248, 0.0
    %v300 = vmax.f32 %v250, 0.0
    %v301 = vmax.f32 %v291, 0.0
    %v302 = vmax.f32 %v293, 0.0
    %v303 = vpack.c.bf16 %v295, %v295
    %v304 = vpack.c.bf16 %v296, %v296
    %v305 = vpack.c.bf16 %v297, %v297
    %v306 = vpack.c.bf16 %v298, %v298
    %v307 = vpack.c.bf16 %v299, %v299
    %v308 = vpack.c.bf16 %v300, %v300
    %v309 = vpack.c.bf16 %v301, %v301
    %v310 = vpack.c.bf16 %v302, %v302
    %v311 = vld [vmem:[%s9] sm:$0xf]
    %v312 = vld [vmem:[%s9 + $0x4] sm:$0xf]
    %v313 = vld [vmem:[%s9 + $0x8] sm:$0xf]
    %v314 = vld [vmem:[%s9 + $0xc] sm:$0xf]
    %v315 = vld [vmem:[%s9 + $0x10] sm:$0xf]
    %v316 = vld [vmem:[%s9 + $0x14] sm:$0xf]
    %v317 = vld [vmem:[%s9 + $0x18] sm:$0xf]
    %v318 = vld [vmem:[%s9 + $0x1c] sm:$0xf]
    %v319 = vld [vmem:[%s9 + $0x20] sm:$0xf]
    %v320 = vld [vmem:[%s9 + $0x24] sm:$0xf]
    %v321 = vld [vmem:[%s10] sm:$0xff]
    %v322 = vld [vmem:[%s10 + $0x8] sm:$0xff]
    %v323 = vld [vmem:[%s10 + $0x10] sm:$0xff]
    %v324 = vld [vmem:[%s10 + $0x18] sm:$0xff]
    %v325 = vld [vmem:[%s10 + $0x20] sm:$0xff]
    %v326 = vld [vmem:[%s10 + $0x28] sm:$0xff]
    %v327 = vld [vmem:[%s10 + $0x30] sm:$0xff]
    %v328 = vld [vmem:[%s10 + $0x38] sm:$0xff]
    %v329 = vld [vmem:[%s10 + $0x40] sm:$0xff]
    %v330 = vld [vmem:[%s10 + $0x48] sm:$0xff]
    %332 = vset.pattern.permute.xlu0 0
    %333 = vperm.xlu0 %332, %v321
    %v334 = vpop.permute.xlu0 %333
    %337 = vset.pattern.permute.xlu0 0
    %338 = vperm.xlu0 %337, %v322
    %v339 = vpop.permute.xlu0 %338
    %342 = vset.pattern.permute.xlu0 0
    %343 = vperm.xlu0 %342, %v323
    %v344 = vpop.permute.xlu0 %343
    %347 = vset.pattern.permute.xlu0 0
    %348 = vperm.xlu0 %347, %v324
    %v349 = vpop.permute.xlu0 %348
    %352 = vset.pattern.permute.xlu0 0
    %353 = vperm.xlu0 %352, %v325
    %v354 = vpop.permute.xlu0 %353
    %357 = vset.pattern.permute.xlu0 0
    %358 = vperm.xlu0 %357, %v326
    %v359 = vpop.permute.xlu0 %358
    %362 = vset.pattern.permute.xlu0 0
    %363 = vperm.xlu0 %362, %v327
    %v364 = vpop.permute.xlu0 %363
    %367 = vset.pattern.permute.xlu0 0
    %368 = vperm.xlu0 %367, %v328
    %v369 = vpop.permute.xlu0 %368
    %372 = vset.pattern.permute.xlu0 0
    %373 = vperm.xlu0 %372, %v329
    %v374 = vpop.permute.xlu0 %373
    %377 = vset.pattern.permute.xlu0 0
    %378 = vperm.xlu0 %377, %v330
    %v379 = vpop.permute.xlu0 %378
    %v391 = vunpack.c.l.b16 %v311
    %v392 = vunpack.c.l.b16 %v312
    %v393 = vunpack.c.l.b16 %v313
    %v394 = vunpack.c.l.b16 %v314
    %v395 = vunpack.c.l.b16 %v315
    %v396 = vunpack.c.l.b16 %v316
    %v397 = vunpack.c.l.b16 %v317
    %v398 = vunpack.c.l.b16 %v318
    %v399 = vunpack.c.l.b16 %v319
    %v400 = vunpack.c.l.b16 %v320
    %v401 = vpack.c.b16 %v392, %v391
    %v402 = vpack.c.b16 %v394, %v393
    %v403 = vpack.c.b16 %v396, %v395
    %v404 = vpack.c.b16 %v398, %v397
    %v405 = vpack.c.b16 %v400, %v399
    %v414 = vunpack.c.l.b16 %v98
    %v415 = vunpack.c.l.b16 %v99
    %v416 = vunpack.c.l.b16 %v100
    %v417 = vunpack.c.l.b16 %v101
    %v418 = vunpack.c.l.b16 %v102
    %v419 = vunpack.c.l.b16 %v103
    %v420 = vunpack.c.l.b16 %v104
    %v421 = vunpack.c.l.b16 %v105
    %v422 = vpack.c.b16 %v415, %v414
    %v423 = vpack.c.b16 %v417, %v416
    %v424 = vpack.c.b16 %v419, %v418
    %v425 = vpack.c.b16 %v421, %v420
    %v431 = vsel %vm205, %v401, 0
    %v434 = vsel %vm205, %v402, 0
    %v437 = vsel %vm205, %v403, 0
    %v440 = vsel %vm205, %v404, 0
    %v443 = vsel %vm205, %v405, 0
    %445 = vmatprep.subr.bf16.mxu0 0
    %446 = vmatpush1.bf16.msra.mxu0 %v422
    %447 = vmatprep.subr.bf16.mxu0 0
    %448 = vmatpush1.bf16.msra.mxu0 %v423
    %449 = vmatprep.subr.bf16.mxu0 0
    %450 = vmatpush1.bf16.msra.mxu0 %v424
    %451 = vmatprep.subr.bf16.mxu0 0
    %452 = vmatpush1.bf16.msra.mxu0 %v425
    %453 = vmatprep.subr.bf16.mxu0 0
    %454 = vmatpush1.bf16.msra.mxu0 0
    %455 = vmatprep.subr.bf16.mxu0 0
    %456 = vmatpush1.bf16.msra.mxu0 0
    %457 = vmatprep.subr.bf16.mxu0 0
    %458 = vmatpush1.bf16.msra.mxu0 0
    %459 = vmatprep.subr.bf16.mxu0 0
    %460 = vmatpush1.bf16.msra.mxu0 0
    %461 = vmatprep.subr.bf16.mxu0 0
    %462 = vmatpush1.bf16.msra.mxu0 0
    %463 = vmatprep.subr.bf16.mxu0 0
    %464 = vmatpush1.bf16.msra.mxu0 0
    %465 = vmatprep.subr.bf16.mxu0 0
    %466 = vmatpush1.bf16.msra.mxu0 0
    %467 = vmatprep.subr.bf16.mxu0 0
    %468 = vmatpush1.bf16.msra.mxu0 0
    %469 = vmatprep.subr.bf16.mxu0 0
    %470 = vmatpush1.bf16.msra.mxu0 0
    %471 = vmatprep.subr.bf16.mxu0 0
    %472 = vmatpush1.bf16.msra.mxu0 0
    %473 = vmatprep.subr.bf16.mxu0 0
    %474 = vmatpush1.bf16.msra.mxu0 0
    %475 = vmatprep.subr.bf16.mxu0 0
    %476 = vmatpush1.bf16.msra.mxu0 0
    %477 = vmatprep.mubr.bf16.mxu0 0
    %478 = vmatmul.mubr.bf16.gmra.mrb[0].mxu0 %v431
    %v479 = vpop.f32.mrb[0].mxu0
    %v480 = vadd.f32 %v334, %v479
    %v481 = vpop.f32.mrb[0].mxu0
    %v482 = vpop.f32.mrb[0].mxu0
    %v483 = vadd.f32 %v339, %v482
    %v484 = vpop.f32.mrb[0].mxu0
    %485 = vmatprep.mubr.bf16.mxu0 0
    %486 = vmatmul.mubr.bf16.gmra.mrb[0].mxu0 %v434
    %v487 = vpop.f32.mrb[0].mxu0
    %v488 = vadd.f32 %v344, %v487
    %v489 = vpop.f32.mrb[0].mxu0
    %v490 = vpop.f32.mrb[0].mxu0
    %v491 = vadd.f32 %v349, %v490
    %v492 = vpop.f32.mrb[0].mxu0
    %493 = vmatprep.mubr.bf16.mxu0 0
    %494 = vmatmul.mubr.bf16.gmra.mrb[0].mxu0 %v437
    %v495 = vpop.f32.mrb[0].mxu0
    %v496 = vadd.f32 %v354, %v495
    %v497 = vpop.f32.mrb[0].mxu0
    %v498 = vpop.f32.mrb[0].mxu0
    %v499 = vadd.f32 %v359, %v498
    %v500 = vpop.f32.mrb[0].mxu0
    %501 = vmatprep.mubr.bf16.mxu0 0
    %502 = vmatmul.mubr.bf16.gmra.mrb[0].mxu0 %v440
    %v503 = vpop.f32.mrb[0].mxu0
    %v504 = vadd.f32 %v364, %v503
    %v505 = vpop.f32.mrb[0].mxu0
    %v506 = vpop.f32.mrb[0].mxu0
    %v507 = vadd.f32 %v369, %v506
    %v508 = vpop.f32.mrb[0].mxu0
    %509 = vmatprep.mubr.bf16.mxu0 0
    %510 = vmatmul.mubr.bf16.gmra.mrb[0].mxu0 %v443
    %v511 = vpop.f32.mrb[0].mxu0
    %v512 = vadd.f32 %v374, %v511
    %v513 = vpop.f32.mrb[0].mxu0
    %v514 = vpop.f32.mrb[0].mxu0
    %v515 = vadd.f32 %v379, %v514
    %v516 = vpop.f32.mrb[0].mxu0
    %517 = vdwg.mxu0
    %v518 = vmax.f32 %v480, 0.0
    %v519 = vmax.f32 %v483, 0.0
    %v520 = vpack.c.bf16 %v519, %v518
    %v521 = vld [vmem:[%s11] sm:$0xf]
    %v522 = vld [vmem:[%s11 + $0x4] sm:$0xf]
    %v523 = vld [vmem:[%s11 + $0x8] sm:$0xf]
    %v524 = vld [vmem:[%s11 + $0xc] sm:$0xf]
    %v525 = vld [vmem:[%s11 + $0x10] sm:$0xf]
    %v526 = vld [vmem:[%s11 + $0x14] sm:$0xf]
    %v527 = vld [vmem:[%s11 + $0x18] sm:$0xf]
    %v528 = vld [vmem:[%s11 + $0x1c] sm:$0xf]
    %v529 = vld [vmem:[%s11 + $0x20] sm:$0xf]
    %v530 = vld [vmem:[%s11 + $0x24] sm:$0xf]
    %v531 = vld [vmem:[%s11 + $0x28] sm:$0xf]
    %v532 = vld [vmem:[%s11 + $0x2c] sm:$0xf]
    %v533 = vld [vmem:[%s11 + $0x30] sm:$0xf]
    %v534 = vld [vmem:[%s11 + $0x34] sm:$0xf]
    %v535 = vld [vmem:[%s11 + $0x38] sm:$0xf]
    %v536 = vld [vmem:[%s11 + $0x3c] sm:$0xf]
    %v537 = vld [vmem:[%s11 + $0x40] sm:$0xf]
    %v538 = vld [vmem:[%s11 + $0x44] sm:$0xf]
    %v557 = vunpack.c.l.b16 %v521
    %v558 = vunpack.c.l.b16 %v522
    %v559 = vunpack.c.l.b16 %v523
    %v560 = vunpack.c.l.b16 %v524
    %v561 = vunpack.c.l.b16 %v525
    %v562 = vunpack.c.l.b16 %v526
    %v563 = vunpack.c.l.b16 %v527
    %v564 = vunpack.c.l.b16 %v528
    %v565 = vunpack.c.l.b16 %v529
    %v566 = vunpack.c.l.b16 %v530
    %v567 = vunpack.c.l.b16 %v531
    %v568 = vunpack.c.l.b16 %v532
    %v569 = vunpack.c.l.b16 %v533
    %v570 = vunpack.c.l.b16 %v534
    %v571 = vunpack.c.l.b16 %v535
    %v572 = vunpack.c.l.b16 %v536
    %v573 = vunpack.c.l.b16 %v537
    %v574 = vunpack.c.l.b16 %v538
    %v575 = vpack.c.b16 %v558, %v557
    %v576 = vpack.c.b16 %v560, %v559
    %v577 = vpack.c.b16 %v562, %v561
    %v578 = vpack.c.b16 %v564, %v563
    %v579 = vpack.c.b16 %v566, %v565
    %v580 = vpack.c.b16 %v568, %v567
    %v581 = vpack.c.b16 %v570, %v569
    %v582 = vpack.c.b16 %v572, %v571
    %v583 = vpack.c.b16 %v574, %v573
    %vm584 = vcmask 130048
    %v586 = vsel %vm584, %v575, 0
    %v589 = vsel %vm584, %v576, 0
    %v592 = vsel %vm584, %v577, 0
    %v595 = vsel %vm584, %v578, 0
    %v598 = vsel %vm584, %v579, 0
    %v601 = vsel %vm584, %v580, 0
    %v604 = vsel %vm584, %v581, 0
    %v607 = vsel %vm584, %v582, 0
    %v610 = vsel %vm584, %v583, 0
    %612 = vmatprep.subr.bf16.mxu0 0
    %613 = vmatpush1.bf16.msra.mxu0 %v520
    %614 = vmatprep.subr.bf16.mxu0 0
    %615 = vmatpush1.bf16.msra.mxu0 0
    %616 = vmatprep.subr.bf16.mxu0 0
    %617 = vmatpush1.bf16.msra.mxu0 0
    %618 = vmatprep.subr.bf16.mxu0 0
    %619 = vmatpush1.bf16.msra.mxu0 0
    %620 = vmatprep.subr.bf16.mxu0 0
    %621 = vmatpush1.bf16.msra.mxu0 0
    %622 = vmatprep.subr.bf16.mxu0 0
    %623 = vmatpush1.bf16.msra.mxu0 0
    %624 = vmatprep.subr.bf16.mxu0 0
    %625 = vmatpush1.bf16.msra.mxu0 0
    %626 = vmatprep.subr.bf16.mxu0 0
    %627 = vmatpush1.bf16.msra.mxu0 0
    %628 = vmatprep.subr.bf16.mxu0 0
    %629 = vmatpush1.bf16.msra.mxu0 0
    %630 = vmatprep.subr.bf16.mxu0 0
    %631 = vmatpush1.bf16.msra.mxu0 0
    %632 = vmatprep.subr.bf16.mxu0 0
    %633 = vmatpush1.bf16.msra.mxu0 0
    %634 = vmatprep.subr.bf16.mxu0 0
    %635 = vmatpush1.bf16.msra.mxu0 0
    %636 = vmatprep.subr.bf16.mxu0 0
    %637 = vmatpush1.bf16.msra.mxu0 0
    %638 = vmatprep.subr.bf16.mxu0 0
    %639 = vmatpush1.bf16.msra.mxu0 0
    %640 = vmatprep.subr.bf16.mxu0 0
    %641 = vmatpush1.bf16.msra.mxu0 0
    %642 = vmatprep.subr.bf16.mxu0 0
    %643 = vmatpush1.bf16.msra.mxu0 0
    %644 = vmatprep.mubr.bf16.mxu0 0
    %645 = vmatmul.mubr.bf16.gmra.mrb[0].mxu0 %v586
    %v646 = vpop.f32.mrb[0].mxu0
    %v647 = vadd.f32 0.0, %v646
    %v648 = vpop.f32.mrb[0].mxu0
    %v649 = vpop.f32.mrb[0].mxu0
    %v650 = vadd.f32 0.0, %v649
    %v651 = vpop.f32.mrb[0].mxu0
    %652 = vmatprep.mubr.bf16.mxu0 0
    %653 = vmatmul.mubr.bf16.gmra.mrb[0].mxu0 %v589
    %v654 = vpop.f32.mrb[0].mxu0
    %v655 = vadd.f32 0.0, %v654
    %v656 = vpop.f32.mrb[0].mxu0
    %v657 = vpop.f32.mrb[0].mxu0
    %v658 = vadd.f32 0.0, %v657
    %v659 = vpop.f32.mrb[0].mxu0
    %660 = vmatprep.mubr.bf16.mxu0 0
    %661 = vmatmul.mubr.bf16.gmra.mrb[0].mxu0 %v592
    %v662 = vpop.f32.mrb[0].mxu0
    %v663 = vadd.f32 0.0, %v662
    %v664 = vpop.f32.mrb[0].mxu0
    %v665 = vpop.f32.mrb[0].mxu0
    %v666 = vadd.f32 0.0, %v665
    %v667 = vpop.f32.mrb[0].mxu0
    %668 = vmatprep.mubr.bf16.mxu0 0
    %669 = vmatmul.mubr.bf16.gmra.mrb[0].mxu0 %v595
    %v670 = vpop.f32.mrb[0].mxu0
    %v671 = vadd.f32 0.0, %v670
    %v672 = vpop.f32.mrb[0].mxu0
    %v673 = vpop.f32.mrb[0].mxu0
    %v674 = vadd.f32 0.0, %v673
    %v675 = vpop.f32.mrb[0].mxu0
    %676 = vmatprep.mubr.bf16.mxu0 0
    %677 = vmatmul.mubr.bf16.gmra.mrb[0].mxu0 %v598
    %v678 = vpop.f32.mrb[0].mxu0
    %v679 = vadd.f32 0.0, %v678
    %v680 = vpop.f32.mrb[0].mxu0
    %v681 = vpop.f32.mrb[0].mxu0
    %v682 = vadd.f32 0.0, %v681
    %v683 = vpop.f32.mrb[0].mxu0
    %684 = vmatprep.mubr.bf16.mxu0 0
    %685 = vmatmul.mubr.bf16.gmra.mrb[0].mxu0 %v601
    %v686 = vpop.f32.mrb[0].mxu0
    %v687 = vadd.f32 0.0, %v686
    %v688 = vpop.f32.mrb[0].mxu0
    %v689 = vpop.f32.mrb[0].mxu0
    %v690 = vadd.f32 0.0, %v689
    %v691 = vpop.f32.mrb[0].mxu0
    %692 = vmatprep.mubr.bf16.mxu0 0
    %693 = vmatmul.mubr.bf16.gmra.mrb[0].mxu0 %v604
    %v694 = vpop.f32.mrb[0].mxu0
    %v695 = vadd.f32 0.0, %v694
    %v696 = vpop.f32.mrb[0].mxu0
    %v697 = vpop.f32.mrb[0].mxu0
    %v698 = vadd.f32 0.0, %v697
    %v699 = vpop.f32.mrb[0].mxu0
    %700 = vmatprep.mubr.bf16.mxu0 0
    %701 = vmatmul.mubr.bf16.gmra.mrb[0].mxu0 %v607
    %v702 = vpop.f32.mrb[0].mxu0
    %v703 = vadd.f32 0.0, %v702
    %v704 = vpop.f32.mrb[0].mxu0
    %v705 = vpop.f32.mrb[0].mxu0
    %v706 = vadd.f32 0.0, %v705
    %v707 = vpop.f32.mrb[0].mxu0
    %708 = vmatprep.mubr.bf16.mxu0 0
    %709 = vmatmul.mubr.bf16.gmra.mrb[0].mxu0 %v610
    %v710 = vpop.f32.mrb[0].mxu0
    %v711 = vadd.f32 0.0, %v710
    %v712 = vpop.f32.mrb[0].mxu0
    %v713 = vpop.f32.mrb[0].mxu0
    %v714 = vadd.f32 0.0, %v713
    %v715 = vpop.f32.mrb[0].mxu0
    %716 = vdwg.mxu0
    %717 = vrot.lane.b32.xlu0 %v647, 18
    %v718 = vpop.permute.xlu0 %717
    %719 = vrot.lane.b32.xlu0 %v650, 18
    %v720 = vpop.permute.xlu0 %719
    %v721 = vld [vmem:[%s3] sm:$0x1]
    %v723 = vlaneseq
    %v724 = vshrl.u32 %v723, 7
    %v725 = vsub.s32 0, %v724
    %v726 = vrot.slane %v721, %v725
    %v728 = vmul.f32 %v718, %v726
    %v729 = vmul.f32 %v720, %v726
    %730 = vrot.lane.b32.xlu0 %v655, 16
    %v731 = vpop.permute.xlu0 %730
    %732 = vrot.lane.b32.xlu0 %v658, 16
    %v733 = vpop.permute.xlu0 %732
    %s734 = scalar_lea.vmem %s3, 1
    %v735 = vld [vmem:[%s734] sm:$0x1]
    %v737 = vlaneseq
    %v738 = vshrl.u32 %v737, 7
    %v739 = vsub.s32 0, %v738
    %v740 = vrot.slane %v735, %v739
    %v742 = vmul.f32 %v731, %v740
    %v743 = vmul.f32 %v733, %v740
    %v744 = vadd.f32 %v728, %v742
    %v745 = vadd.f32 %v729, %v743
    %746 = vrot.lane.b32.xlu0 %v663, 14
    %v747 = vpop.permute.xlu0 %746
    %748 = vrot.lane.b32.xlu0 %v666, 14
    %v749 = vpop.permute.xlu0 %748
    %s750 = scalar_lea.vmem %s3, 2
    %v751 = vld [vmem:[%s750] sm:$0x1]
    %v753 = vlaneseq
    %v754 = vshrl.u32 %v753, 7
    %v755 = vsub.s32 0, %v754
    %v756 = vrot.slane %v751, %v755
    %v758 = vmul.f32 %v747, %v756
    %v759 = vmul.f32 %v749, %v756
    %v760 = vadd.f32 %v744, %v758
    %v761 = vadd.f32 %v745, %v759
    %762 = vrot.lane.b32.xlu0 %v671, 2
    %v763 = vpop.permute.xlu0 %762
    %764 = vrot.lane.b32.xlu0 %v674, 2
    %v765 = vpop.permute.xlu0 %764
    %s766 = scalar_lea.vmem %s3, 3
    %v767 = vld [vmem:[%s766] sm:$0x1]
    %v769 = vlaneseq
    %v770 = vshrl.u32 %v769, 7
    %v771 = vsub.s32 0, %v770
    %v772 = vrot.slane %v767, %v771
    %v774 = vmul.f32 %v763, %v772
    %v775 = vmul.f32 %v765, %v772
    %v776 = vadd.f32 %v760, %v774
    %v777 = vadd.f32 %v761, %v775
    %s778 = scalar_lea.vmem %s3, 4
    %v779 = vld [vmem:[%s778] sm:$0x1]
    %v781 = vlaneseq
    %v782 = vshrl.u32 %v781, 7
    %v783 = vsub.s32 0, %v782
    %v784 = vrot.slane %v779, %v783
    %v786 = vmul.f32 %v679, %v784
    %v787 = vmul.f32 %v682, %v784
    %v788 = vadd.f32 %v776, %v786
    %v789 = vadd.f32 %v777, %v787
    %790 = vrot.lane.b32.xlu0 %v687, 126
    %v791 = vpop.permute.xlu0 %790
    %792 = vrot.lane.b32.xlu0 %v690, 126
    %v793 = vpop.permute.xlu0 %792
    %s794 = scalar_lea.vmem %s3, 5
    %v795 = vld [vmem:[%s794] sm:$0x1]
    %v797 = vlaneseq
    %v798 = vshrl.u32 %v797, 7
    %v799 = vsub.s32 0, %v798
    %v800 = vrot.slane %v795, %v799
    %v802 = vmul.f32 %v791, %v800
    %v803 = vmul.f32 %v793, %v800
    %v804 = vadd.f32 %v788, %v802
    %v805 = vadd.f32 %v789, %v803
    %806 = vrot.lane.b32.xlu0 %v695, 114
    %v807 = vpop.permute.xlu0 %806
    %808 = vrot.lane.b32.xlu0 %v698, 114
    %v809 = vpop.permute.xlu0 %808
    %s810 = scalar_lea.vmem %s3, 6
    %v811 = vld [vmem:[%s810] sm:$0x1]
    %v813 = vlaneseq
    %v814 = vshrl.u32 %v813, 7
    %v815 = vsub.s32 0, %v814
    %v816 = vrot.slane %v811, %v815
    %v818 = vmul.f32 %v807, %v816
    %v819 = vmul.f32 %v809, %v816
    %v820 = vadd.f32 %v804, %v818
    %v821 = vadd.f32 %v805, %v819
    %822 = vrot.lane.b32.xlu0 %v703, 112
    %v823 = vpop.permute.xlu0 %822
    %824 = vrot.lane.b32.xlu0 %v706, 112
    %v825 = vpop.permute.xlu0 %824
    %s826 = scalar_lea.vmem %s3, 7
    %v827 = vld [vmem:[%s826] sm:$0x1]
    %v829 = vlaneseq
    %v830 = vshrl.u32 %v829, 7
    %v831 = vsub.s32 0, %v830
    %v832 = vrot.slane %v827, %v831
    %v834 = vmul.f32 %v823, %v832
    %v835 = vmul.f32 %v825, %v832
    %v836 = vadd.f32 %v820, %v834
    %v837 = vadd.f32 %v821, %v835
    %838 = vrot.lane.b32.xlu0 %v711, 110
    %v839 = vpop.permute.xlu0 %838
    %840 = vrot.lane.b32.xlu0 %v714, 110
    %v841 = vpop.permute.xlu0 %840
    %s842 = scalar_lea.vmem %s3, 8
    %v843 = vld [vmem:[%s842] sm:$0x1]
    %v845 = vlaneseq
    %v846 = vshrl.u32 %v845, 7
    %v847 = vsub.s32 0, %v846
    %v848 = vrot.slane %v843, %v847
    %v850 = vmul.f32 %v839, %v848
    %v851 = vmul.f32 %v841, %v848
    %v852 = vadd.f32 %v836, %v850
    %v853 = vadd.f32 %v837, %v851
    %v854 = vld [vmem:[%s12] sm:$0xff]
    %v855 = vld [vmem:[%s12 + $0x8] sm:$0xff]
    %857 = vset.pattern.permute.xlu0 0
    %858 = vperm.xlu0 %857, %v854
    %v859 = vpop.permute.xlu0 %858
    %862 = vset.pattern.permute.xlu0 0
    %863 = vperm.xlu0 %862, %v855
    %v864 = vpop.permute.xlu0 %863
    %v866 = vadd.f32 %v852, %v859
    %v867 = vadd.f32 %v853, %v864
    %v868 = vld [vmem:[%s13] sm:$0xf]
    %v869 = vld [vmem:[%s13 + $0x4] sm:$0xf]
    %v870 = vld [vmem:[%s13 + $0x8] sm:$0xf]
    %v871 = vld [vmem:[%s13 + $0xc] sm:$0xf]
    %v872 = vld [vmem:[%s13 + $0x10] sm:$0xf]
    %v873 = vld [vmem:[%s13 + $0x14] sm:$0xf]
    %v874 = vld [vmem:[%s13 + $0x18] sm:$0xf]
    %v875 = vld [vmem:[%s13 + $0x1c] sm:$0xf]
    %v876 = vld [vmem:[%s13 + $0x20] sm:$0xf]
    %v877 = vld [vmem:[%s13 + $0x24] sm:$0xf]
    %v878 = vld [vmem:[%s13 + $0x28] sm:$0xf]
    %v879 = vld [vmem:[%s13 + $0x2c] sm:$0xf]
    %v880 = vld [vmem:[%s13 + $0x30] sm:$0xf]
    %v881 = vld [vmem:[%s13 + $0x34] sm:$0xf]
    %v882 = vld [vmem:[%s13 + $0x38] sm:$0xf]
    %v883 = vld [vmem:[%s13 + $0x3c] sm:$0xf]
    %v884 = vld [vmem:[%s13 + $0x40] sm:$0xf]
    %v885 = vld [vmem:[%s13 + $0x44] sm:$0xf]
    %v904 = vunpack.c.l.b16 %v868
    %v905 = vunpack.c.l.b16 %v869
    %v906 = vunpack.c.l.b16 %v870
    %v907 = vunpack.c.l.b16 %v871
    %v908 = vunpack.c.l.b16 %v872
    %v909 = vunpack.c.l.b16 %v873
    %v910 = vunpack.c.l.b16 %v874
    %v911 = vunpack.c.l.b16 %v875
    %v912 = vunpack.c.l.b16 %v876
    %v913 = vunpack.c.l.b16 %v877
    %v914 = vunpack.c.l.b16 %v878
    %v915 = vunpack.c.l.b16 %v879
    %v916 = vunpack.c.l.b16 %v880
    %v917 = vunpack.c.l.b16 %v881
    %v918 = vunpack.c.l.b16 %v882
    %v919 = vunpack.c.l.b16 %v883
    %v920 = vunpack.c.l.b16 %v884
    %v921 = vunpack.c.l.b16 %v885
    %v922 = vpack.c.b16 %v905, %v904
    %v923 = vpack.c.b16 %v907, %v906
    %v924 = vpack.c.b16 %v909, %v908
    %v925 = vpack.c.b16 %v911, %v910
    %v926 = vpack.c.b16 %v913, %v912
    %v927 = vpack.c.b16 %v915, %v914
    %v928 = vpack.c.b16 %v917, %v916
    %v929 = vpack.c.b16 %v919, %v918
    %v930 = vpack.c.b16 %v921, %v920
    %vm931 = vcmask 64512
    %v933 = vsel %vm931, %v922, 0
    %v936 = vsel %vm931, %v923, 0
    %v939 = vsel %vm931, %v924, 0
    %v942 = vsel %vm931, %v925, 0
    %v945 = vsel %vm931, %v926, 0
    %v948 = vsel %vm931, %v927, 0
    %v951 = vsel %vm931, %v928, 0
    %v954 = vsel %vm931, %v929, 0
    %v957 = vsel %vm931, %v930, 0
    %vm959 = vcmask 1043456
    %v961 = vsel %vm959, %v303, 0
    %v964 = vsel %vm959, %v304, 0
    %v967 = vsel %vm959, %v305, 0
    %v970 = vsel %vm959, %v306, 0
    %972 = vmatprep.subr.bf16.mxu0 %v964
    %973 = vmatpush1.bf16.msra.mxu0 %v961
    %974 = vmatprep.subr.bf16.mxu0 0
    %975 = vmatpush1.bf16.msra.mxu0 0
    %976 = vmatprep.subr.bf16.mxu0 0
    %977 = vmatpush1.bf16.msra.mxu0 0
    %978 = vmatprep.subr.bf16.mxu0 0
    %979 = vmatpush1.bf16.msra.mxu0 0
    %980 = vmatprep.subr.bf16.mxu0 0
    %981 = vmatpush1.bf16.msra.mxu0 0
    %982 = vmatprep.subr.bf16.mxu0 0
    %983 = vmatpush1.bf16.msra.mxu0 0
    %984 = vmatprep.subr.bf16.mxu0 0
    %985 = vmatpush1.bf16.msra.mxu0 0
    %986 = vmatprep.subr.bf16.mxu0 0
    %987 = vmatpush1.bf16.msra.mxu0 0
    %988 = vmatprep.subr.bf16.mxu0 0
    %989 = vmatpush1.bf16.msra.mxu0 0
    %990 = vmatprep.subr.bf16.mxu0 0
    %991 = vmatpush1.bf16.msra.mxu0 0
    %992 = vmatprep.subr.bf16.mxu0 0
    %993 = vmatpush1.bf16.msra.mxu0 0
    %994 = vmatprep.subr.bf16.mxu0 0
    %995 = vmatpush1.bf16.msra.mxu0 0
    %996 = vmatprep.subr.bf16.mxu0 0
    %997 = vmatpush1.bf16.msra.mxu0 0
    %998 = vmatprep.subr.bf16.mxu0 0
    %999 = vmatpush1.bf16.msra.mxu0 0
    %1000 = vmatprep.subr.bf16.mxu0 0
    %1001 = vmatpush1.bf16.msra.mxu0 0
    %1002 = vmatprep.subr.bf16.mxu0 0
    %1003 = vmatpush1.bf16.msra.mxu0 0
    %1004 = vmatprep.mubr.bf16.mxu0 0
    %1005 = vmatmul.mubr.bf16.gmra.mrb[0].mxu0 %v933
    %v1006 = vpop.f32.mrb[0].mxu0
    %v1007 = vadd.f32 0.0, %v1006
    %v1008 = vpop.f32.mrb[0].mxu0
    %v1009 = vadd.f32 0.0, %v1008
    %v1010 = vpop.f32.mrb[0].mxu0
    %v1011 = vadd.f32 0.0, %v1010
    %v1012 = vpop.f32.mrb[0].mxu0
    %v1013 = vadd.f32 0.0, %v1012
    %1014 = vmatprep.mubr.bf16.mxu0 0
    %1015 = vmatmul.mubr.bf16.gmra.mrb[0].mxu0 %v936
    %v1016 = vpop.f32.mrb[0].mxu0
    %v1017 = vadd.f32 0.0, %v1016
    %v1018 = vpop.f32.mrb[0].mxu0
    %v1019 = vadd.f32 0.0, %v1018
    %v1020 = vpop.f32.mrb[0].mxu0
    %v1021 = vadd.f32 0.0, %v1020
    %v1022 = vpop.f32.mrb[0].mxu0
    %v1023 = vadd.f32 0.0, %v1022
    %1024 = vmatprep.mubr.bf16.mxu0 0
    %1025 = vmatmul.mubr.bf16.gmra.mrb[0].mxu0 %v939
    %v1026 = vpop.f32.mrb[0].mxu0
    %v1027 = vadd.f32 0.0, %v1026
    %v1028 = vpop.f32.mrb[0].mxu0
    %v1029 = vadd.f32 0.0, %v1028
    %v1030 = vpop.f32.mrb[0].mxu0
    %v1031 = vadd.f32 0.0, %v1030
    %v1032 = vpop.f32.mrb[0].mxu0
    %v1033 = vadd.f32 0.0, %v1032
    %1034 = vmatprep.mubr.bf16.mxu0 0
    %1035 = vmatmul.mubr.bf16.gmra.mrb[0].mxu0 %v942
    %v1036 = vpop.f32.mrb[0].mxu0
    %v1037 = vadd.f32 0.0, %v1036
    %v1038 = vpop.f32.mrb[0].mxu0
    %v1039 = vadd.f32 0.0, %v1038
    %v1040 = vpop.f32.mrb[0].mxu0
    %v1041 = vadd.f32 0.0, %v1040
    %v1042 = vpop.f32.mrb[0].mxu0
    %v1043 = vadd.f32 0.0, %v1042
    %1044 = vmatprep.mubr.bf16.mxu0 0
    %1045 = vmatmul.mubr.bf16.gmra.mrb[0].mxu0 %v945
    %v1046 = vpop.f32.mrb[0].mxu0
    %v1047 = vadd.f32 0.0, %v1046
    %v1048 = vpop.f32.mrb[0].mxu0
    %v1049 = vadd.f32 0.0, %v1048
    %v1050 = vpop.f32.mrb[0].mxu0
    %v1051 = vadd.f32 0.0, %v1050
    %v1052 = vpop.f32.mrb[0].mxu0
    %v1053 = vadd.f32 0.0, %v1052
    %1054 = vmatprep.mubr.bf16.mxu0 0
    %1055 = vmatmul.mubr.bf16.gmra.mrb[0].mxu0 %v948
    %v1056 = vpop.f32.mrb[0].mxu0
    %v1057 = vadd.f32 0.0, %v1056
    %v1058 = vpop.f32.mrb[0].mxu0
    %v1059 = vadd.f32 0.0, %v1058
    %v1060 = vpop.f32.mrb[0].mxu0
    %v1061 = vadd.f32 0.0, %v1060
    %v1062 = vpop.f32.mrb[0].mxu0
    %v1063 = vadd.f32 0.0, %v1062
    %1064 = vmatprep.mubr.bf16.mxu0 0
    %1065 = vmatmul.mubr.bf16.gmra.mrb[0].mxu0 %v951
    %v1066 = vpop.f32.mrb[0].mxu0
    %v1067 = vadd.f32 0.0, %v1066
    %v1068 = vpop.f32.mrb[0].mxu0
    %v1069 = vadd.f32 0.0, %v1068
    %v1070 = vpop.f32.mrb[0].mxu0
    %v1071 = vadd.f32 0.0, %v1070
    %v1072 = vpop.f32.mrb[0].mxu0
    %v1073 = vadd.f32 0.0, %v1072
    %1074 = vmatprep.mubr.bf16.mxu0 0
    %1075 = vmatmul.mubr.bf16.gmra.mrb[0].mxu0 %v954
    %v1076 = vpop.f32.mrb[0].mxu0
    %v1077 = vadd.f32 0.0, %v1076
    %v1078 = vpop.f32.mrb[0].mxu0
    %v1079 = vadd.f32 0.0, %v1078
    %v1080 = vpop.f32.mrb[0].mxu0
    %v1081 = vadd.f32 0.0, %v1080
    %v1082 = vpop.f32.mrb[0].mxu0
    %v1083 = vadd.f32 0.0, %v1082
    %1084 = vmatprep.mubr.bf16.mxu0 0
    %1085 = vmatmul.mubr.bf16.gmra.mrb[0].mxu0 %v957
    %v1086 = vpop.f32.mrb[0].mxu0
    %v1087 = vadd.f32 0.0, %v1086
    %v1088 = vpop.f32.mrb[0].mxu0
    %v1089 = vadd.f32 0.0, %v1088
    %v1090 = vpop.f32.mrb[0].mxu0
    %v1091 = vadd.f32 0.0, %v1090
    %v1092 = vpop.f32.mrb[0].mxu0
    %v1093 = vadd.f32 0.0, %v1092
    %1094 = vdwg.mxu0
    %1095 = vmatprep.subr.bf16.mxu0 %v970
    %1096 = vmatpush1.bf16.msra.mxu0 %v967
    %1097 = vmatprep.subr.bf16.mxu0 0
    %1098 = vmatpush1.bf16.msra.mxu0 0
    %1099 = vmatprep.subr.bf16.mxu0 0
    %1100 = vmatpush1.bf16.msra.mxu0 0
    %1101 = vmatprep.subr.bf16.mxu0 0
    %1102 = vmatpush1.bf16.msra.mxu0 0
    %1103 = vmatprep.subr.bf16.mxu0 0
    %1104 = vmatpush1.bf16.msra.mxu0 0
    %1105 = vmatprep.subr.bf16.mxu0 0
    %1106 = vmatpush1.bf16.msra.mxu0 0
    %1107 = vmatprep.subr.bf16.mxu0 0
    %1108 = vmatpush1.bf16.msra.mxu0 0
    %1109 = vmatprep.subr.bf16.mxu0 0
    %1110 = vmatpush1.bf16.msra.mxu0 0
    %1111 = vmatprep.subr.bf16.mxu0 0
    %1112 = vmatpush1.bf16.msra.mxu0 0
    %1113 = vmatprep.subr.bf16.mxu0 0
    %1114 = vmatpush1.bf16.msra.mxu0 0
    %1115 = vmatprep.subr.bf16.mxu0 0
    %1116 = vmatpush1.bf16.msra.mxu0 0
    %1117 = vmatprep.subr.bf16.mxu0 0
    %1118 = vmatpush1.bf16.msra.mxu0 0
    %1119 = vmatprep.subr.bf16.mxu0 0
    %1120 = vmatpush1.bf16.msra.mxu0 0
    %1121 = vmatprep.subr.bf16.mxu0 0
    %1122 = vmatpush1.bf16.msra.mxu0 0
    %1123 = vmatprep.subr.bf16.mxu0 0
    %1124 = vmatpush1.bf16.msra.mxu0 0
    %1125 = vmatprep.subr.bf16.mxu0 0
    %1126 = vmatpush1.bf16.msra.mxu0 0
    %1127 = vmatprep.mubr.bf16.mxu0 0
    %1128 = vmatmul.mubr.bf16.gmra.mrb[0].mxu0 %v933
    %v1129 = vpop.f32.mrb[0].mxu0
    %v1130 = vadd.f32 0.0, %v1129
    %v1131 = vpop.f32.mrb[0].mxu0
    %v1132 = vadd.f32 0.0, %v1131
    %v1133 = vpop.f32.mrb[0].mxu0
    %v1134 = vadd.f32 0.0, %v1133
    %v1135 = vpop.f32.mrb[0].mxu0
    %v1136 = vadd.f32 0.0, %v1135
    %1137 = vmatprep.mubr.bf16.mxu0 0
    %1138 = vmatmul.mubr.bf16.gmra.mrb[0].mxu0 %v936
    %v1139 = vpop.f32.mrb[0].mxu0
    %v1140 = vadd.f32 0.0, %v1139
    %v1141 = vpop.f32.mrb[0].mxu0
    %v1142 = vadd.f32 0.0, %v1141
    %v1143 = vpop.f32.mrb[0].mxu0
    %v1144 = vadd.f32 0.0, %v1143
    %v1145 = vpop.f32.mrb[0].mxu0
    %v1146 = vadd.f32 0.0, %v1145
    %1147 = vmatprep.mubr.bf16.mxu0 0
    %1148 = vmatmul.mubr.bf16.gmra.mrb[0].mxu0 %v939
    %v1149 = vpop.f32.mrb[0].mxu0
    %v1150 = vadd.f32 0.0, %v1149
    %v1151 = vpop.f32.mrb[0].mxu0
    %v1152 = vadd.f32 0.0, %v1151
    %v1153 = vpop.f32.mrb[0].mxu0
    %v1154 = vadd.f32 0.0, %v1153
    %v1155 = vpop.f32.mrb[0].mxu0
    %v1156 = vadd.f32 0.0, %v1155
    %1157 = vmatprep.mubr.bf16.mxu0 0
    %1158 = vmatmul.mubr.bf16.gmra.mrb[0].mxu0 %v942
    %v1159 = vpop.f32.mrb[0].mxu0
    %v1160 = vadd.f32 0.0, %v1159
    %v1161 = vpop.f32.mrb[0].mxu0
    %v1162 = vadd.f32 0.0, %v1161
    %v1163 = vpop.f32.mrb[0].mxu0
    %v1164 = vadd.f32 0.0, %v1163
    %v1165 = vpop.f32.mrb[0].mxu0
    %v1166 = vadd.f32 0.0, %v1165
    %1167 = vmatprep.mubr.bf16.mxu0 0
    %1168 = vmatmul.mubr.bf16.gmra.mrb[0].mxu0 %v945
    %v1169 = vpop.f32.mrb[0].mxu0
    %v1170 = vadd.f32 0.0, %v1169
    %v1171 = vpop.f32.mrb[0].mxu0
    %v1172 = vadd.f32 0.0, %v1171
    %v1173 = vpop.f32.mrb[0].mxu0
    %v1174 = vadd.f32 0.0, %v1173
    %v1175 = vpop.f32.mrb[0].mxu0
    %v1176 = vadd.f32 0.0, %v1175
    %1177 = vmatprep.mubr.bf16.mxu0 0
    %1178 = vmatmul.mubr.bf16.gmra.mrb[0].mxu0 %v948
    %v1179 = vpop.f32.mrb[0].mxu0
    %v1180 = vadd.f32 0.0, %v1179
    %v1181 = vpop.f32.mrb[0].mxu0
    %v1182 = vadd.f32 0.0, %v1181
    %v1183 = vpop.f32.mrb[0].mxu0
    %v1184 = vadd.f32 0.0, %v1183
    %v1185 = vpop.f32.mrb[0].mxu0
    %v1186 = vadd.f32 0.0, %v1185
    %1187 = vmatprep.mubr.bf16.mxu0 0
    %1188 = vmatmul.mubr.bf16.gmra.mrb[0].mxu0 %v951
    %v1189 = vpop.f32.mrb[0].mxu0
    %v1190 = vadd.f32 0.0, %v1189
    %v1191 = vpop.f32.mrb[0].mxu0
    %v1192 = vadd.f32 0.0, %v1191
    %v1193 = vpop.f32.mrb[0].mxu0
    %v1194 = vadd.f32 0.0, %v1193
    %v1195 = vpop.f32.mrb[0].mxu0
    %v1196 = vadd.f32 0.0, %v1195
    %1197 = vmatprep.mubr.bf16.mxu0 0
    %1198 = vmatmul.mubr.bf16.gmra.mrb[0].mxu0 %v954
    %v1199 = vpop.f32.mrb[0].mxu0
    %v1200 = vadd.f32 0.0, %v1199
    %v1201 = vpop.f32.mrb[0].mxu0
    %v1202 = vadd.f32 0.0, %v1201
    %v1203 = vpop.f32.mrb[0].mxu0
    %v1204 = vadd.f32 0.0, %v1203
    %v1205 = vpop.f32.mrb[0].mxu0
    %v1206 = vadd.f32 0.0, %v1205
    %1207 = vmatprep.mubr.bf16.mxu0 0
    %1208 = vmatmul.mubr.bf16.gmra.mrb[0].mxu0 %v957
    %v1209 = vpop.f32.mrb[0].mxu0
    %v1210 = vadd.f32 0.0, %v1209
    %v1211 = vpop.f32.mrb[0].mxu0
    %v1212 = vadd.f32 0.0, %v1211
    %v1213 = vpop.f32.mrb[0].mxu0
    %v1214 = vadd.f32 0.0, %v1213
    %v1215 = vpop.f32.mrb[0].mxu0
    %v1216 = vadd.f32 0.0, %v1215
    %1217 = vdwg.mxu0
    %1218 = vrot.lane.b32.xlu0 %v1007, 17
    %v1219 = vpop.permute.xlu0 %1218
    %1220 = vrot.lane.b32.xlu0 %v1011, 17
    %v1221 = vpop.permute.xlu0 %1220
    %1222 = vrot.lane.b32.xlu0 %v1009, 17
    %v1223 = vpop.permute.xlu0 %1222
    %1224 = vrot.lane.b32.xlu0 %v1013, 17
    %v1225 = vpop.permute.xlu0 %1224
    %1226 = vrot.lane.b32.xlu0 %v1130, 17
    %v1227 = vpop.permute.xlu0 %1226
    %1228 = vrot.lane.b32.xlu0 %v1134, 17
    %v1229 = vpop.permute.xlu0 %1228
    %1230 = vrot.lane.b32.xlu0 %v1132, 17
    %v1231 = vpop.permute.xlu0 %1230
    %1232 = vrot.lane.b32.xlu0 %v1136, 17
    %v1233 = vpop.permute.xlu0 %1232
    %v1234 = vlaneseq
    %v1235 = vand.u32 %v1234, 127
    %vm1236 = vcmp.lt.s32.totalorder %v1235, 17
    %v1237 = vsel %vm1236, %v1227, %v1231
    %v1238 = vsel %vm1236, %v1229, %v1233
    %v1239 = vsel %vm1236, %v1223, %v1227
    %v1240 = vsel %vm1236, %v1225, %v1229
    %v1241 = vsel %vm1236, %v1219, %v1223
    %v1242 = vsel %vm1236, %v1221, %v1225
    %v1243 = vsel %vm1236, %v1231, %v1219
    %v1244 = vsel %vm1236, %v1233, %v1221
    %v1245 = vld [vmem:[%s2] sm:$0xf]
    %v1247 = vlaneseq
    %v1248 = vshrl.u32 %v1247, 7
    %v1249 = vsub.s32 0, %v1248
    %v1250 = vrot.slane %v1245, %v1249
    %v1251 = vlaneseq
    %v1252 = vshrl.u32 %v1251, 7
    %v1253 = vsub.s32 1, %v1252
    %v1254 = vrot.slane %v1245, %v1253
    %v1255 = vlaneseq
    %v1256 = vshrl.u32 %v1255, 7
    %v1257 = vsub.s32 2, %v1256
    %v1258 = vrot.slane %v1245, %v1257
    %v1259 = vlaneseq
    %v1260 = vshrl.u32 %v1259, 7
    %v1261 = vsub.s32 3, %v1260
    %v1262 = vrot.slane %v1245, %v1261
    %v1267 = vmul.f32 %v1243, %v1250
    %v1268 = vmul.f32 %v1241, %v1254
    %v1269 = vmul.f32 %v1239, %v1258
    %v1270 = vmul.f32 %v1237, %v1262
    %v1271 = vmul.f32 %v1244, %v1250
    %v1272 = vmul.f32 %v1242, %v1254
    %v1273 = vmul.f32 %v1240, %v1258
    %v1274 = vmul.f32 %v1238, %v1262
    %1275 = vrot.lane.b32.xlu0 %v1017, 16
    %v1276 = vpop.permute.xlu0 %1275
    %1277 = vrot.lane.b32.xlu0 %v1021, 16
    %v1278 = vpop.permute.xlu0 %1277
    %1279 = vrot.lane.b32.xlu0 %v1019, 16
    %v1280 = vpop.permute.xlu0 %1279
    %1281 = vrot.lane.b32.xlu0 %v1023, 16
    %v1282 = vpop.permute.xlu0 %1281
    %1283 = vrot.lane.b32.xlu0 %v1140, 16
    %v1284 = vpop.permute.xlu0 %1283
    %1285 = vrot.lane.b32.xlu0 %v1144, 16
    %v1286 = vpop.permute.xlu0 %1285
    %1287 = vrot.lane.b32.xlu0 %v1142, 16
    %v1288 = vpop.permute.xlu0 %1287
    %1289 = vrot.lane.b32.xlu0 %v1146, 16
    %v1290 = vpop.permute.xlu0 %1289
    %vm1291 = vcmp.lt.s32.totalorder %v1235, 16
    %v1292 = vsel %vm1291, %v1284, %v1288
    %v1293 = vsel %vm1291, %v1286, %v1290
    %v1294 = vsel %vm1291, %v1280, %v1284
    %v1295 = vsel %vm1291, %v1282, %v1286
    %v1296 = vsel %vm1291, %v1276, %v1280
    %v1297 = vsel %vm1291, %v1278, %v1282
    %v1298 = vsel %vm1291, %v1288, %v1276
    %v1299 = vsel %vm1291, %v1290, %v1278
    %s1300 = scalar_lea.vmem %s2, 4
    %v1301 = vld [vmem:[%s1300] sm:$0xf]
    %v1303 = vlaneseq
    %v1304 = vshrl.u32 %v1303, 7
    %v1305 = vsub.s32 0, %v1304
    %v1306 = vrot.slane %v1301, %v1305
    %v1307 = vlaneseq
    %v1308 = vshrl.u32 %v1307, 7
    %v1309 = vsub.s32 1, %v1308
    %v1310 = vrot.slane %v1301, %v1309
    %v1311 = vlaneseq
    %v1312 = vshrl.u32 %v1311, 7
    %v1313 = vsub.s32 2, %v1312
    %v1314 = vrot.slane %v1301, %v1313
    %v1315 = vlaneseq
    %v1316 = vshrl.u32 %v1315, 7
    %v1317 = vsub.s32 3, %v1316
    %v1318 = vrot.slane %v1301, %v1317
    %v1323 = vmul.f32 %v1298, %v1306
    %v1324 = vmul.f32 %v1296, %v1310
    %v1325 = vmul.f32 %v1294, %v1314
    %v1326 = vmul.f32 %v1292, %v1318
    %v1327 = vmul.f32 %v1299, %v1306
    %v1328 = vmul.f32 %v1297, %v1310
    %v1329 = vmul.f32 %v1295, %v1314
    %v1330 = vmul.f32 %v1293, %v1318
    %v1331 = vadd.f32 %v1267, %v1323
    %v1332 = vadd.f32 %v1268, %v1324
    %v1333 = vadd.f32 %v1269, %v1325
    %v1334 = vadd.f32 %v1270, %v1326
    %v1335 = vadd.f32 %v1271, %v1327
    %v1336 = vadd.f32 %v1272, %v1328
    %v1337 = vadd.f32 %v1273, %v1329
    %v1338 = vadd.f32 %v1274, %v1330
    %1339 = vrot.lane.b32.xlu0 %v1027, 15
    %v1340 = vpop.permute.xlu0 %1339
    %1341 = vrot.lane.b32.xlu0 %v1031, 15
    %v1342 = vpop.permute.xlu0 %1341
    %1343 = vrot.lane.b32.xlu0 %v1029, 15
    %v1344 = vpop.permute.xlu0 %1343
    %1345 = vrot.lane.b32.xlu0 %v1033, 15
    %v1346 = vpop.permute.xlu0 %1345
    %1347 = vrot.lane.b32.xlu0 %v1150, 15
    %v1348 = vpop.permute.xlu0 %1347
    %1349 = vrot.lane.b32.xlu0 %v1154, 15
    %v1350 = vpop.permute.xlu0 %1349
    %1351 = vrot.lane.b32.xlu0 %v1152, 15
    %v1352 = vpop.permute.xlu0 %1351
    %1353 = vrot.lane.b32.xlu0 %v1156, 15
    %v1354 = vpop.permute.xlu0 %1353
    %vm1355 = vcmp.lt.s32.totalorder %v1235, 15
    %v1356 = vsel %vm1355, %v1348, %v1352
    %v1357 = vsel %vm1355, %v1350, %v1354
    %v1358 = vsel %vm1355, %v1344, %v1348
    %v1359 = vsel %vm1355, %v1346, %v1350
    %v1360 = vsel %vm1355, %v1340, %v1344
    %v1361 = vsel %vm1355, %v1342, %v1346
    %v1362 = vsel %vm1355, %v1352, %v1340
    %v1363 = vsel %vm1355, %v1354, %v1342
    %s1364 = scalar_lea.vmem %s2, 8
    %v1365 = vld [vmem:[%s1364] sm:$0xf]
    %v1367 = vlaneseq
    %v1368 = vshrl.u32 %v1367, 7
    %v1369 = vsub.s32 0, %v1368
    %v1370 = vrot.slane %v1365, %v1369
    %v1371 = vlaneseq
    %v1372 = vshrl.u32 %v1371, 7
    %v1373 = vsub.s32 1, %v1372
    %v1374 = vrot.slane %v1365, %v1373
    %v1375 = vlaneseq
    %v1376 = vshrl.u32 %v1375, 7
    %v1377 = vsub.s32 2, %v1376
    %v1378 = vrot.slane %v1365, %v1377
    %v1379 = vlaneseq
    %v1380 = vshrl.u32 %v1379, 7
    %v1381 = vsub.s32 3, %v1380
    %v1382 = vrot.slane %v1365, %v1381
    %v1387 = vmul.f32 %v1362, %v1370
    %v1388 = vmul.f32 %v1360, %v1374
    %v1389 = vmul.f32 %v1358, %v1378
    %v1390 = vmul.f32 %v1356, %v1382
    %v1391 = vmul.f32 %v1363, %v1370
    %v1392 = vmul.f32 %v1361, %v1374
    %v1393 = vmul.f32 %v1359, %v1378
    %v1394 = vmul.f32 %v1357, %v1382
    %v1395 = vadd.f32 %v1331, %v1387
    %v1396 = vadd.f32 %v1332, %v1388
    %v1397 = vadd.f32 %v1333, %v1389
    %v1398 = vadd.f32 %v1334, %v1390
    %v1399 = vadd.f32 %v1335, %v1391
    %v1400 = vadd.f32 %v1336, %v1392
    %v1401 = vadd.f32 %v1337, %v1393
    %v1402 = vadd.f32 %v1338, %v1394
    %1403 = vrot.lane.b32.xlu0 %v1037, 1
    %v1404 = vpop.permute.xlu0 %1403
    %1405 = vrot.lane.b32.xlu0 %v1041, 1
    %v1406 = vpop.permute.xlu0 %1405
    %1407 = vrot.lane.b32.xlu0 %v1039, 1
    %v1408 = vpop.permute.xlu0 %1407
    %1409 = vrot.lane.b32.xlu0 %v1043, 1
    %v1410 = vpop.permute.xlu0 %1409
    %1411 = vrot.lane.b32.xlu0 %v1160, 1
    %v1412 = vpop.permute.xlu0 %1411
    %1413 = vrot.lane.b32.xlu0 %v1164, 1
    %v1414 = vpop.permute.xlu0 %1413
    %1415 = vrot.lane.b32.xlu0 %v1162, 1
    %v1416 = vpop.permute.xlu0 %1415
    %1417 = vrot.lane.b32.xlu0 %v1166, 1
    %v1418 = vpop.permute.xlu0 %1417
    %vm1419 = vcmp.lt.s32.totalorder %v1235, 1
    %v1420 = vsel %vm1419, %v1412, %v1416
    %v1421 = vsel %vm1419, %v1414, %v1418
    %v1422 = vsel %vm1419, %v1408, %v1412
    %v1423 = vsel %vm1419, %v1410, %v1414
    %v1424 = vsel %vm1419, %v1404, %v1408
    %v1425 = vsel %vm1419, %v1406, %v1410
    %v1426 = vsel %vm1419, %v1416, %v1404
    %v1427 = vsel %vm1419, %v1418, %v1406
    %s1428 = scalar_lea.vmem %s2, 12
    %v1429 = vld [vmem:[%s1428] sm:$0xf]
    %v1431 = vlaneseq
    %v1432 = vshrl.u32 %v1431, 7
    %v1433 = vsub.s32 0, %v1432
    %v1434 = vrot.slane %v1429, %v1433
    %v1435 = vlaneseq
    %v1436 = vshrl.u32 %v1435, 7
    %v1437 = vsub.s32 1, %v1436
    %v1438 = vrot.slane %v1429, %v1437
    %v1439 = vlaneseq
    %v1440 = vshrl.u32 %v1439, 7
    %v1441 = vsub.s32 2, %v1440
    %v1442 = vrot.slane %v1429, %v1441
    %v1443 = vlaneseq
    %v1444 = vshrl.u32 %v1443, 7
    %v1445 = vsub.s32 3, %v1444
    %v1446 = vrot.slane %v1429, %v1445
    %v1451 = vmul.f32 %v1426, %v1434
    %v1452 = vmul.f32 %v1424, %v1438
    %v1453 = vmul.f32 %v1422, %v1442
    %v1454 = vmul.f32 %v1420, %v1446
    %v1455 = vmul.f32 %v1427, %v1434
    %v1456 = vmul.f32 %v1425, %v1438
    %v1457 = vmul.f32 %v1423, %v1442
    %v1458 = vmul.f32 %v1421, %v1446
    %v1459 = vadd.f32 %v1395, %v1451
    %v1460 = vadd.f32 %v1396, %v1452
    %v1461 = vadd.f32 %v1397, %v1453
    %v1462 = vadd.f32 %v1398, %v1454
    %v1463 = vadd.f32 %v1399, %v1455
    %v1464 = vadd.f32 %v1400, %v1456
    %v1465 = vadd.f32 %v1401, %v1457
    %v1466 = vadd.f32 %v1402, %v1458
    %s1467 = scalar_lea.vmem %s2, 16
    %v1468 = vld [vmem:[%s1467] sm:$0xf]
    %v1470 = vlaneseq
    %v1471 = vshrl.u32 %v1470, 7
    %v1472 = vsub.s32 0, %v1471
    %v1473 = vrot.slane %v1468, %v1472
    %v1474 = vlaneseq
    %v1475 = vshrl.u32 %v1474, 7
    %v1476 = vsub.s32 1, %v1475
    %v1477 = vrot.slane %v1468, %v1476
    %v1478 = vlaneseq
    %v1479 = vshrl.u32 %v1478, 7
    %v1480 = vsub.s32 2, %v1479
    %v1481 = vrot.slane %v1468, %v1480
    %v1482 = vlaneseq
    %v1483 = vshrl.u32 %v1482, 7
    %v1484 = vsub.s32 3, %v1483
    %v1485 = vrot.slane %v1468, %v1484
    %v1490 = vmul.f32 %v1047, %v1473
    %v1491 = vmul.f32 %v1049, %v1477
    %v1492 = vmul.f32 %v1170, %v1481
    %v1493 = vmul.f32 %v1172, %v1485
    %v1494 = vmul.f32 %v1051, %v1473
    %v1495 = vmul.f32 %v1053, %v1477
    %v1496 = vmul.f32 %v1174, %v1481
    %v1497 = vmul.f32 %v1176, %v1485
    %v1498 = vadd.f32 %v1459, %v1490
    %v1499 = vadd.f32 %v1460, %v1491
    %v1500 = vadd.f32 %v1461, %v1492
    %v1501 = vadd.f32 %v1462, %v1493
    %v1502 = vadd.f32 %v1463, %v1494
    %v1503 = vadd.f32 %v1464, %v1495
    %v1504 = vadd.f32 %v1465, %v1496
    %v1505 = vadd.f32 %v1466, %v1497
    %1506 = vrot.lane.b32.xlu0 %v1057, 127
    %v1507 = vpop.permute.xlu0 %1506
    %1508 = vrot.lane.b32.xlu0 %v1061, 127
    %v1509 = vpop.permute.xlu0 %1508
    %1510 = vrot.lane.b32.xlu0 %v1059, 127
    %v1511 = vpop.permute.xlu0 %1510
    %1512 = vrot.lane.b32.xlu0 %v1063, 127
    %v1513 = vpop.permute.xlu0 %1512
    %1514 = vrot.lane.b32.xlu0 %v1180, 127
    %v1515 = vpop.permute.xlu0 %1514
    %1516 = vrot.lane.b32.xlu0 %v1184, 127
    %v1517 = vpop.permute.xlu0 %1516
    %1518 = vrot.lane.b32.xlu0 %v1182, 127
    %v1519 = vpop.permute.xlu0 %1518
    %1520 = vrot.lane.b32.xlu0 %v1186, 127
    %v1521 = vpop.permute.xlu0 %1520
    %vm1522 = vcmp.lt.s32.totalorder %v1235, 127
    %v1523 = vsel %vm1522, %v1515, %v1519
    %v1524 = vsel %vm1522, %v1517, %v1521
    %v1525 = vsel %vm1522, %v1511, %v1515
    %v1526 = vsel %vm1522, %v1513, %v1517
    %v1527 = vsel %vm1522, %v1507, %v1511
    %v1528 = vsel %vm1522, %v1509, %v1513
    %v1529 = vsel %vm1522, %v1519, %v1507
    %v1530 = vsel %vm1522, %v1521, %v1509
    %s1531 = scalar_lea.vmem %s2, 20
    %v1532 = vld [vmem:[%s1531] sm:$0xf]
    %v1534 = vlaneseq
    %v1535 = vshrl.u32 %v1534, 7
    %v1536 = vsub.s32 0, %v1535
    %v1537 = vrot.slane %v1532, %v1536
    %v1538 = vlaneseq
    %v1539 = vshrl.u32 %v1538, 7
    %v1540 = vsub.s32 1, %v1539
    %v1541 = vrot.slane %v1532, %v1540
    %v1542 = vlaneseq
    %v1543 = vshrl.u32 %v1542, 7
    %v1544 = vsub.s32 2, %v1543
    %v1545 = vrot.slane %v1532, %v1544
    %v1546 = vlaneseq
    %v1547 = vshrl.u32 %v1546, 7
    %v1548 = vsub.s32 3, %v1547
    %v1549 = vrot.slane %v1532, %v1548
    %v1554 = vmul.f32 %v1527, %v1537
    %v1555 = vmul.f32 %v1525, %v1541
    %v1556 = vmul.f32 %v1523, %v1545
    %v1557 = vmul.f32 %v1529, %v1549
    %v1558 = vmul.f32 %v1528, %v1537
    %v1559 = vmul.f32 %v1526, %v1541
    %v1560 = vmul.f32 %v1524, %v1545
    %v1561 = vmul.f32 %v1530, %v1549
    %v1562 = vadd.f32 %v1498, %v1554
    %v1563 = vadd.f32 %v1499, %v1555
    %v1564 = vadd.f32 %v1500, %v1556
    %v1565 = vadd.f32 %v1501, %v1557
    %v1566 = vadd.f32 %v1502, %v1558
    %v1567 = vadd.f32 %v1503, %v1559
    %v1568 = vadd.f32 %v1504, %v1560
    %v1569 = vadd.f32 %v1505, %v1561
    %1570 = vrot.lane.b32.xlu0 %v1067, 113
    %v1571 = vpop.permute.xlu0 %1570
    %1572 = vrot.lane.b32.xlu0 %v1071, 113
    %v1573 = vpop.permute.xlu0 %1572
    %1574 = vrot.lane.b32.xlu0 %v1069, 113
    %v1575 = vpop.permute.xlu0 %1574
    %1576 = vrot.lane.b32.xlu0 %v1073, 113
    %v1577 = vpop.permute.xlu0 %1576
    %1578 = vrot.lane.b32.xlu0 %v1190, 113
    %v1579 = vpop.permute.xlu0 %1578
    %1580 = vrot.lane.b32.xlu0 %v1194, 113
    %v1581 = vpop.permute.xlu0 %1580
    %1582 = vrot.lane.b32.xlu0 %v1192, 113
    %v1583 = vpop.permute.xlu0 %1582
    %1584 = vrot.lane.b32.xlu0 %v1196, 113
    %v1585 = vpop.permute.xlu0 %1584
    %vm1586 = vcmp.lt.s32.totalorder %v1235, 113
    %v1587 = vsel %vm1586, %v1579, %v1583
    %v1588 = vsel %vm1586, %v1581, %v1585
    %v1589 = vsel %vm1586, %v1575, %v1579
    %v1590 = vsel %vm1586, %v1577, %v1581
    %v1591 = vsel %vm1586, %v1571, %v1575
    %v1592 = vsel %vm1586, %v1573, %v1577
    %v1593 = vsel %vm1586, %v1583, %v1571
    %v1594 = vsel %vm1586, %v1585, %v1573
    %s1595 = scalar_lea.vmem %s2, 24
    %v1596 = vld [vmem:[%s1595] sm:$0xf]
    %v1598 = vlaneseq
    %v1599 = vshrl.u32 %v1598, 7
    %v1600 = vsub.s32 0, %v1599
    %v1601 = vrot.slane %v1596, %v1600
    %v1602 = vlaneseq
    %v1603 = vshrl.u32 %v1602, 7
    %v1604 = vsub.s32 1, %v1603
    %v1605 = vrot.slane %v1596, %v1604
    %v1606 = vlaneseq
    %v1607 = vshrl.u32 %v1606, 7
    %v1608 = vsub.s32 2, %v1607
    %v1609 = vrot.slane %v1596, %v1608
    %v1610 = vlaneseq
    %v1611 = vshrl.u32 %v1610, 7
    %v1612 = vsub.s32 3, %v1611
    %v1613 = vrot.slane %v1596, %v1612
    %v1618 = vmul.f32 %v1591, %v1601
    %v1619 = vmul.f32 %v1589, %v1605
    %v1620 = vmul.f32 %v1587, %v1609
    %v1621 = vmul.f32 %v1593, %v1613
    %v1622 = vmul.f32 %v1592, %v1601
    %v1623 = vmul.f32 %v1590, %v1605
    %v1624 = vmul.f32 %v1588, %v1609
    %v1625 = vmul.f32 %v1594, %v1613
    %v1626 = vadd.f32 %v1562, %v1618
    %v1627 = vadd.f32 %v1563, %v1619
    %v1628 = vadd.f32 %v1564, %v1620
    %v1629 = vadd.f32 %v1565, %v1621
    %v1630 = vadd.f32 %v1566, %v1622
    %v1631 = vadd.f32 %v1567, %v1623
    %v1632 = vadd.f32 %v1568, %v1624
    %v1633 = vadd.f32 %v1569, %v1625
    %1634 = vrot.lane.b32.xlu0 %v1077, 112
    %v1635 = vpop.permute.xlu0 %1634
    %1636 = vrot.lane.b32.xlu0 %v1081, 112
    %v1637 = vpop.permute.xlu0 %1636
    %1638 = vrot.lane.b32.xlu0 %v1079, 112
    %v1639 = vpop.permute.xlu0 %1638
    %1640 = vrot.lane.b32.xlu0 %v1083, 112
    %v1641 = vpop.permute.xlu0 %1640
    %1642 = vrot.lane.b32.xlu0 %v1200, 112
    %v1643 = vpop.permute.xlu0 %1642
    %1644 = vrot.lane.b32.xlu0 %v1204, 112
    %v1645 = vpop.permute.xlu0 %1644
    %1646 = vrot.lane.b32.xlu0 %v1202, 112
    %v1647 = vpop.permute.xlu0 %1646
    %1648 = vrot.lane.b32.xlu0 %v1206, 112
    %v1649 = vpop.permute.xlu0 %1648
    %vm1650 = vcmp.lt.s32.totalorder %v1235, 112
    %v1651 = vsel %vm1650, %v1643, %v1647
    %v1652 = vsel %vm1650, %v1645, %v1649
    %v1653 = vsel %vm1650, %v1639, %v1643
    %v1654 = vsel %vm1650, %v1641, %v1645
    %v1655 = vsel %vm1650, %v1635, %v1639
    %v1656 = vsel %vm1650, %v1637, %v1641
    %v1657 = vsel %vm1650, %v1647, %v1635
    %v1658 = vsel %vm1650, %v1649, %v1637
    %s1659 = scalar_lea.vmem %s2, 28
    %v1660 = vld [vmem:[%s1659] sm:$0xf]
    %v1662 = vlaneseq
    %v1663 = vshrl.u32 %v1662, 7
    %v1664 = vsub.s32 0, %v1663
    %v1665 = vrot.slane %v1660, %v1664
    %v1666 = vlaneseq
    %v1667 = vshrl.u32 %v1666, 7
    %v1668 = vsub.s32 1, %v1667
    %v1669 = vrot.slane %v1660, %v1668
    %v1670 = vlaneseq
    %v1671 = vshrl.u32 %v1670, 7
    %v1672 = vsub.s32 2, %v1671
    %v1673 = vrot.slane %v1660, %v1672
    %v1674 = vlaneseq
    %v1675 = vshrl.u32 %v1674, 7
    %v1676 = vsub.s32 3, %v1675
    %v1677 = vrot.slane %v1660, %v1676
    %v1682 = vmul.f32 %v1655, %v1665
    %v1683 = vmul.f32 %v1653, %v1669
    %v1684 = vmul.f32 %v1651, %v1673
    %v1685 = vmul.f32 %v1657, %v1677
    %v1686 = vmul.f32 %v1656, %v1665
    %v1687 = vmul.f32 %v1654, %v1669
    %v1688 = vmul.f32 %v1652, %v1673
    %v1689 = vmul.f32 %v1658, %v1677
    %v1690 = vadd.f32 %v1626, %v1682
    %v1691 = vadd.f32 %v1627, %v1683
    %v1692 = vadd.f32 %v1628, %v1684
    %v1693 = vadd.f32 %v1629, %v1685
    %v1694 = vadd.f32 %v1630, %v1686
    %v1695 = vadd.f32 %v1631, %v1687
    %v1696 = vadd.f32 %v1632, %v1688
    %v1697 = vadd.f32 %v1633, %v1689
    %1698 = vrot.lane.b32.xlu0 %v1087, 111
    %v1699 = vpop.permute.xlu0 %1698
    %1700 = vrot.lane.b32.xlu0 %v1091, 111
    %v1701 = vpop.permute.xlu0 %1700
    %1702 = vrot.lane.b32.xlu0 %v1089, 111
    %v1703 = vpop.permute.xlu0 %1702
    %1704 = vrot.lane.b32.xlu0 %v1093, 111
    %v1705 = vpop.permute.xlu0 %1704
    %1706 = vrot.lane.b32.xlu0 %v1210, 111
    %v1707 = vpop.permute.xlu0 %1706
    %1708 = vrot.lane.b32.xlu0 %v1214, 111
    %v1709 = vpop.permute.xlu0 %1708
    %1710 = vrot.lane.b32.xlu0 %v1212, 111
    %v1711 = vpop.permute.xlu0 %1710
    %1712 = vrot.lane.b32.xlu0 %v1216, 111
    %v1713 = vpop.permute.xlu0 %1712
    %vm1714 = vcmp.lt.s32.totalorder %v1235, 111
    %v1715 = vsel %vm1714, %v1707, %v1711
    %v1716 = vsel %vm1714, %v1709, %v1713
    %v1717 = vsel %vm1714, %v1703, %v1707
    %v1718 = vsel %vm1714, %v1705, %v1709
    %v1719 = vsel %vm1714, %v1699, %v1703
    %v1720 = vsel %vm1714, %v1701, %v1705
    %v1721 = vsel %vm1714, %v1711, %v1699
    %v1722 = vsel %vm1714, %v1713, %v1701
    %s1723 = scalar_lea.vmem %s2, 32
    %v1724 = vld [vmem:[%s1723] sm:$0xf]
    %v1726 = vlaneseq
    %v1727 = vshrl.u32 %v1726, 7
    %v1728 = vsub.s32 0, %v1727
    %v1729 = vrot.slane %v1724, %v1728
    %v1730 = vlaneseq
    %v1731 = vshrl.u32 %v1730, 7
    %v1732 = vsub.s32 1, %v1731
    %v1733 = vrot.slane %v1724, %v1732
    %v1734 = vlaneseq
    %v1735 = vshrl.u32 %v1734, 7
    %v1736 = vsub.s32 2, %v1735
    %v1737 = vrot.slane %v1724, %v1736
    %v1738 = vlaneseq
    %v1739 = vshrl.u32 %v1738, 7
    %v1740 = vsub.s32 3, %v1739
    %v1741 = vrot.slane %v1724, %v1740
    %v1746 = vmul.f32 %v1719, %v1729
    %v1747 = vmul.f32 %v1717, %v1733
    %v1748 = vmul.f32 %v1715, %v1737
    %v1749 = vmul.f32 %v1721, %v1741
    %v1750 = vmul.f32 %v1720, %v1729
    %v1751 = vmul.f32 %v1718, %v1733
    %v1752 = vmul.f32 %v1716, %v1737
    %v1753 = vmul.f32 %v1722, %v1741
    %v1754 = vadd.f32 %v1690, %v1746
    %v1755 = vadd.f32 %v1691, %v1747
    %v1756 = vadd.f32 %v1692, %v1748
    %v1757 = vadd.f32 %v1693, %v1749
    %v1758 = vadd.f32 %v1694, %v1750
    %v1759 = vadd.f32 %v1695, %v1751
    %v1760 = vadd.f32 %v1696, %v1752
    %v1761 = vadd.f32 %v1697, %v1753
    %v1762 = vld [vmem:[%s14] sm:$0xff]
    %v1763 = vld [vmem:[%s14 + $0x8] sm:$0xff]
    %1765 = vset.pattern.permute.xlu0 0
    %1766 = vperm.xlu0 %1765, %v1762
    %v1767 = vpop.permute.xlu0 %1766
    %1770 = vset.pattern.permute.xlu0 0
    %1771 = vperm.xlu0 %1770, %v1763
    %v1772 = vpop.permute.xlu0 %1771
    %v1774 = vadd.f32 %v1754, %v1767
    %v1775 = vadd.f32 %v1755, %v1767
    %v1776 = vadd.f32 %v1756, %v1767
    %v1777 = vadd.f32 %v1757, %v1767
    %v1778 = vadd.f32 %v1758, %v1772
    %v1779 = vadd.f32 %v1759, %v1772
    %v1780 = vadd.f32 %v1760, %v1772
    %v1781 = vadd.f32 %v1761, %v1772
    %v1782 = vmax.f32 %v1774, 0.0
    %v1783 = vmax.f32 %v1775, 0.0
    %v1784 = vmax.f32 %v1776, 0.0
    %v1785 = vmax.f32 %v1777, 0.0
    %v1786 = vmax.f32 %v1778, 0.0
    %v1787 = vmax.f32 %v1779, 0.0
    %v1788 = vmax.f32 %v1780, 0.0
    %v1789 = vmax.f32 %v1781, 0.0
    %v1790 = vpack.c.bf16 %v1786, %v1782
    %v1791 = vpack.c.bf16 %v1787, %v1783
    %v1792 = vpack.c.bf16 %v1788, %v1784
    %v1793 = vpack.c.bf16 %v1789, %v1785
    %v1794 = vld [vmem:[%s6] sm:$0xf]
    %v1795 = vld [vmem:[%s6 + $0x4] sm:$0xf]
    %v1796 = vld [vmem:[%s6 + $0x8] sm:$0xf]
    %v1797 = vld [vmem:[%s6 + $0xc] sm:$0xf]
    %v1798 = vld [vmem:[%s6 + $0x10] sm:$0xf]
    %v1799 = vld [vmem:[%s6 + $0x14] sm:$0xf]
    %v1800 = vld [vmem:[%s6 + $0x18] sm:$0xf]
    %v1801 = vld [vmem:[%s6 + $0x1c] sm:$0xf]
    %v1802 = vld [vmem:[%s6 + $0x20] sm:$0xf]
    %v1803 = vld [vmem:[%s6 + $0x24] sm:$0xf]
    %v1804 = vld [vmem:[%s6 + $0x28] sm:$0xf]
    %v1805 = vld [vmem:[%s6 + $0x2c] sm:$0xf]
    %v1806 = vld [vmem:[%s6 + $0x30] sm:$0xf]
    %v1807 = vld [vmem:[%s6 + $0x34] sm:$0xf]
    %v1808 = vld [vmem:[%s6 + $0x38] sm:$0xf]
    %v1809 = vld [vmem:[%s6 + $0x3c] sm:$0xf]
    %v1810 = vld [vmem:[%s6 + $0x40] sm:$0xf]
    %v1811 = vld [vmem:[%s6 + $0x44] sm:$0xf]
    %v1812 = vld [vmem:[%s6 + $0x48] sm:$0xf]
    %v1813 = vld [vmem:[%s6 + $0x4c] sm:$0xf]
    %v1814 = vld [vmem:[%s6 + $0x50] sm:$0xf]
    %v1815 = vld [vmem:[%s6 + $0x54] sm:$0xf]
    %v1816 = vld [vmem:[%s6 + $0x58] sm:$0xf]
    %v1817 = vld [vmem:[%s6 + $0x5c] sm:$0xf]
    %v1818 = vld [vmem:[%s6 + $0x60] sm:$0xf]
    %v1819 = vld [vmem:[%s6 + $0x64] sm:$0xf]
    %v1820 = vld [vmem:[%s6 + $0x68] sm:$0xf]
    %v1821 = vld [vmem:[%s6 + $0x6c] sm:$0xf]
    %v1822 = vld [vmem:[%s6 + $0x70] sm:$0xf]
    %v1823 = vld [vmem:[%s6 + $0x74] sm:$0xf]
    %v1824 = vld [vmem:[%s6 + $0x78] sm:$0xf]
    %v1825 = vld [vmem:[%s6 + $0x7c] sm:$0xf]
    %v1858 = vunpack.c.l.b16 %v1794
    %v1859 = vunpack.c.l.b16 %v1795
    %v1860 = vunpack.c.l.b16 %v1796
    %v1861 = vunpack.c.l.b16 %v1797
    %v1862 = vunpack.c.l.b16 %v1798
    %v1863 = vunpack.c.l.b16 %v1799
    %v1864 = vunpack.c.l.b16 %v1800
    %v1865 = vunpack.c.l.b16 %v1801
    %v1866 = vunpack.c.l.b16 %v1802
    %v1867 = vunpack.c.l.b16 %v1803
    %v1868 = vunpack.c.l.b16 %v1804
    %v1869 = vunpack.c.l.b16 %v1805
    %v1870 = vunpack.c.l.b16 %v1806
    %v1871 = vunpack.c.l.b16 %v1807
    %v1872 = vunpack.c.l.b16 %v1808
    %v1873 = vunpack.c.l.b16 %v1809
    %v1874 = vunpack.c.l.b16 %v1810
    %v1875 = vunpack.c.l.b16 %v1811
    %v1876 = vunpack.c.l.b16 %v1812
    %v1877 = vunpack.c.l.b16 %v1813
    %v1878 = vunpack.c.l.b16 %v1814
    %v1879 = vunpack.c.l.b16 %v1815
    %v1880 = vunpack.c.l.b16 %v1816
    %v1881 = vunpack.c.l.b16 %v1817
    %v1882 = vunpack.c.l.b16 %v1818
    %v1883 = vunpack.c.l.b16 %v1819
    %v1884 = vunpack.c.l.b16 %v1820
    %v1885 = vunpack.c.l.b16 %v1821
    %v1886 = vunpack.c.l.b16 %v1822
    %v1887 = vunpack.c.l.b16 %v1823
    %v1888 = vunpack.c.l.b16 %v1824
    %v1889 = vunpack.c.l.b16 %v1825
    %v1890 = vpack.c.b16 %v1859, %v1858
    %v1891 = vpack.c.b16 %v1861, %v1860
    %v1892 = vpack.c.b16 %v1863, %v1862
    %v1893 = vpack.c.b16 %v1865, %v1864
    %v1894 = vpack.c.b16 %v1867, %v1866
    %v1895 = vpack.c.b16 %v1869, %v1868
    %v1896 = vpack.c.b16 %v1871, %v1870
    %v1897 = vpack.c.b16 %v1873, %v1872
    %v1898 = vpack.c.b16 %v1875, %v1874
    %v1899 = vpack.c.b16 %v1877, %v1876
    %v1900 = vpack.c.b16 %v1879, %v1878
    %v1901 = vpack.c.b16 %v1881, %v1880
    %v1902 = vpack.c.b16 %v1883, %v1882
    %v1903 = vpack.c.b16 %v1885, %v1884
    %v1904 = vpack.c.b16 %v1887, %v1886
    %v1905 = vpack.c.b16 %v1889, %v1888
    %1922 = vmatprep.subr.bf16.mxu0 0
    %1923 = vmatpush1.bf16.msra.mxu0 %v1890
    %1924 = vmatprep.subr.bf16.mxu0 0
    %1925 = vmatpush1.bf16.msra.mxu0 %v1891
    %1926 = vmatprep.subr.bf16.mxu0 0
    %1927 = vmatpush1.bf16.msra.mxu0 %v1892
    %1928 = vmatprep.subr.bf16.mxu0 0
    %1929 = vmatpush1.bf16.msra.mxu0 %v1893
    %1930 = vmatprep.subr.bf16.mxu0 0
    %1931 = vmatpush1.bf16.msra.mxu0 %v1894
    %1932 = vmatprep.subr.bf16.mxu0 0
    %1933 = vmatpush1.bf16.msra.mxu0 %v1895
    %1934 = vmatprep.subr.bf16.mxu0 0
    %1935 = vmatpush1.bf16.msra.mxu0 %v1896
    %1936 = vmatprep.subr.bf16.mxu0 0
    %1937 = vmatpush1.bf16.msra.mxu0 %v1897
    %1938 = vmatprep.subr.bf16.mxu0 0
    %1939 = vmatpush1.bf16.msra.mxu0 %v1898
    %1940 = vmatprep.subr.bf16.mxu0 0
    %1941 = vmatpush1.bf16.msra.mxu0 %v1899
    %1942 = vmatprep.subr.bf16.mxu0 0
    %1943 = vmatpush1.bf16.msra.mxu0 %v1900
    %1944 = vmatprep.subr.bf16.mxu0 0
    %1945 = vmatpush1.bf16.msra.mxu0 %v1901
    %1946 = vmatprep.subr.bf16.mxu0 0
    %1947 = vmatpush1.bf16.msra.mxu0 %v1902
    %1948 = vmatprep.subr.bf16.mxu0 0
    %1949 = vmatpush1.bf16.msra.mxu0 %v1903
    %1950 = vmatprep.subr.bf16.mxu0 0
    %1951 = vmatpush1.bf16.msra.mxu0 %v1904
    %1952 = vmatprep.subr.bf16.mxu0 0
    %1953 = vmatpush1.bf16.msra.mxu0 %v1905
    %1954 = vmatprep.mubr.bf16.mxu0 %v1791
    %1955 = vmatmul.mubr.bf16.gmra.mrb[0].mxu0 %v1790
    %v1956 = vpop.f32.mrb[0].mxu0
    %v1957 = vadd.f32 0.0, %v1956
    %v1958 = vpop.f32.mrb[0].mxu0
    %v1959 = vpop.f32.mrb[0].mxu0
    %v1960 = vadd.f32 0.0, %v1959
    %v1961 = vpop.f32.mrb[0].mxu0
    %1962 = vdwg.mxu0
    %v1963 = vpack.c.bf16 %v1960, %v1957
    %1964 = vmatprep.subr.bf16.mxu0 0
    %1965 = vmatpush1.bf16.msra.mxu0 %v1890
    %1966 = vmatprep.subr.bf16.mxu0 0
    %1967 = vmatpush1.bf16.msra.mxu0 %v1891
    %1968 = vmatprep.subr.bf16.mxu0 0
    %1969 = vmatpush1.bf16.msra.mxu0 %v1892
    %1970 = vmatprep.subr.bf16.mxu0 0
    %1971 = vmatpush1.bf16.msra.mxu0 %v1893
    %1972 = vmatprep.subr.bf16.mxu0 0
    %1973 = vmatpush1.bf16.msra.mxu0 %v1894
    %1974 = vmatprep.subr.bf16.mxu0 0
    %1975 = vmatpush1.bf16.msra.mxu0 %v1895
    %1976 = vmatprep.subr.bf16.mxu0 0
    %1977 = vmatpush1.bf16.msra.mxu0 %v1896
    %1978 = vmatprep.subr.bf16.mxu0 0
    %1979 = vmatpush1.bf16.msra.mxu0 %v1897
    %1980 = vmatprep.subr.bf16.mxu0 0
    %1981 = vmatpush1.bf16.msra.mxu0 %v1898
    %1982 = vmatprep.subr.bf16.mxu0 0
    %1983 = vmatpush1.bf16.msra.mxu0 %v1899
    %1984 = vmatprep.subr.bf16.mxu0 0
    %1985 = vmatpush1.bf16.msra.mxu0 %v1900
    %1986 = vmatprep.subr.bf16.mxu0 0
    %1987 = vmatpush1.bf16.msra.mxu0 %v1901
    %1988 = vmatprep.subr.bf16.mxu0 0
    %1989 = vmatpush1.bf16.msra.mxu0 %v1902
    %1990 = vmatprep.subr.bf16.mxu0 0
    %1991 = vmatpush1.bf16.msra.mxu0 %v1903
    %1992 = vmatprep.subr.bf16.mxu0 0
    %1993 = vmatpush1.bf16.msra.mxu0 %v1904
    %1994 = vmatprep.subr.bf16.mxu0 0
    %1995 = vmatpush1.bf16.msra.mxu0 %v1905
    %1996 = vmatprep.mubr.bf16.mxu0 %v1793
    %1997 = vmatmul.mubr.bf16.gmra.mrb[0].mxu0 %v1792
    %v1998 = vpop.f32.mrb[0].mxu0
    %v1999 = vadd.f32 0.0, %v1998
    %v2000 = vpop.f32.mrb[0].mxu0
    %v2001 = vpop.f32.mrb[0].mxu0
    %v2002 = vadd.f32 0.0, %v2001
    %v2003 = vpop.f32.mrb[0].mxu0
    %2004 = vdwg.mxu0
    %v2005 = vpack.c.bf16 %v2002, %v1999
    %2007 = vrot.lane.b32.xlu0 %v2005, 64
    %v2008 = vpop.permute.xlu0 %2007
    %v2011 = vsel %vm205, %v1963, %v2008
    %v2013 = vld [vmem:[%s15] sm:$0xf]
    %v2014 = vld [vmem:[%s15 + $0x4] sm:$0xf]
    %v2015 = vld [vmem:[%s15 + $0x8] sm:$0xf]
    %v2016 = vld [vmem:[%s15 + $0xc] sm:$0xf]
    %v2017 = vld [vmem:[%s15 + $0x10] sm:$0xf]
    %v2018 = vld [vmem:[%s15 + $0x14] sm:$0xf]
    %v2019 = vld [vmem:[%s15 + $0x18] sm:$0xf]
    %v2020 = vld [vmem:[%s15 + $0x1c] sm:$0xf]
    %v2021 = vld [vmem:[%s15 + $0x20] sm:$0xf]
    %v2022 = vld [vmem:[%s15 + $0x24] sm:$0xf]
    %v2023 = vld [vmem:[%s15 + $0x28] sm:$0xf]
    %v2024 = vld [vmem:[%s15 + $0x2c] sm:$0xf]
    %v2025 = vld [vmem:[%s15 + $0x30] sm:$0xf]
    %v2026 = vld [vmem:[%s15 + $0x34] sm:$0xf]
    %v2027 = vld [vmem:[%s15 + $0x38] sm:$0xf]
    %v2028 = vld [vmem:[%s15 + $0x3c] sm:$0xf]
    %v2029 = vld [vmem:[%s15 + $0x40] sm:$0xf]
    %v2030 = vld [vmem:[%s15 + $0x44] sm:$0xf]
    %v2049 = vunpack.c.l.b16 %v2013
    %v2050 = vunpack.c.l.b16 %v2014
    %v2051 = vunpack.c.l.b16 %v2015
    %v2052 = vunpack.c.l.b16 %v2016
    %v2053 = vunpack.c.l.b16 %v2017
    %v2054 = vunpack.c.l.b16 %v2018
    %v2055 = vunpack.c.l.b16 %v2019
    %v2056 = vunpack.c.l.b16 %v2020
    %v2057 = vunpack.c.l.b16 %v2021
    %v2058 = vunpack.c.l.b16 %v2022
    %v2059 = vunpack.c.l.b16 %v2023
    %v2060 = vunpack.c.l.b16 %v2024
    %v2061 = vunpack.c.l.b16 %v2025
    %v2062 = vunpack.c.l.b16 %v2026
    %v2063 = vunpack.c.l.b16 %v2027
    %v2064 = vunpack.c.l.b16 %v2028
    %v2065 = vunpack.c.l.b16 %v2029
    %v2066 = vunpack.c.l.b16 %v2030
    %v2067 = vpack.c.b16 %v2050, %v2049
    %v2068 = vpack.c.b16 %v2052, %v2051
    %v2069 = vpack.c.b16 %v2054, %v2053
    %v2070 = vpack.c.b16 %v2056, %v2055
    %v2071 = vpack.c.b16 %v2058, %v2057
    %v2072 = vpack.c.b16 %v2060, %v2059
    %v2073 = vpack.c.b16 %v2062, %v2061
    %v2074 = vpack.c.b16 %v2064, %v2063
    %v2075 = vpack.c.b16 %v2066, %v2065
    %v2077 = vsel %vm584, %v2067, 0
    %v2080 = vsel %vm584, %v2068, 0
    %v2083 = vsel %vm584, %v2069, 0
    %v2086 = vsel %vm584, %v2070, 0
    %v2089 = vsel %vm584, %v2071, 0
    %v2092 = vsel %vm584, %v2072, 0
    %v2095 = vsel %vm584, %v2073, 0
    %v2098 = vsel %vm584, %v2074, 0
    %v2101 = vsel %vm584, %v2075, 0
    %2103 = vmatprep.subr.bf16.mxu0 0
    %2104 = vmatpush1.bf16.msra.mxu0 %v2011
    %2105 = vmatprep.subr.bf16.mxu0 0
    %2106 = vmatpush1.bf16.msra.mxu0 0
    %2107 = vmatprep.subr.bf16.mxu0 0
    %2108 = vmatpush1.bf16.msra.mxu0 0
    %2109 = vmatprep.subr.bf16.mxu0 0
    %2110 = vmatpush1.bf16.msra.mxu0 0
    %2111 = vmatprep.subr.bf16.mxu0 0
    %2112 = vmatpush1.bf16.msra.mxu0 0
    %2113 = vmatprep.subr.bf16.mxu0 0
    %2114 = vmatpush1.bf16.msra.mxu0 0
    %2115 = vmatprep.subr.bf16.mxu0 0
    %2116 = vmatpush1.bf16.msra.mxu0 0
    %2117 = vmatprep.subr.bf16.mxu0 0
    %2118 = vmatpush1.bf16.msra.mxu0 0
    %2119 = vmatprep.subr.bf16.mxu0 0
    %2120 = vmatpush1.bf16.msra.mxu0 0
    %2121 = vmatprep.subr.bf16.mxu0 0
    %2122 = vmatpush1.bf16.msra.mxu0 0
    %2123 = vmatprep.subr.bf16.mxu0 0
    %2124 = vmatpush1.bf16.msra.mxu0 0
    %2125 = vmatprep.subr.bf16.mxu0 0
    %2126 = vmatpush1.bf16.msra.mxu0 0
    %2127 = vmatprep.subr.bf16.mxu0 0
    %2128 = vmatpush1.bf16.msra.mxu0 0
    %2129 = vmatprep.subr.bf16.mxu0 0
    %2130 = vmatpush1.bf16.msra.mxu0 0
    %2131 = vmatprep.subr.bf16.mxu0 0
    %2132 = vmatpush1.bf16.msra.mxu0 0
    %2133 = vmatprep.subr.bf16.mxu0 0
    %2134 = vmatpush1.bf16.msra.mxu0 0
    %2135 = vmatprep.mubr.bf16.mxu0 0
    %2136 = vmatmul.mubr.bf16.gmra.mrb[0].mxu0 %v2077
    %v2137 = vpop.f32.mrb[0].mxu0
    %v2138 = vadd.f32 0.0, %v2137
    %v2139 = vpop.f32.mrb[0].mxu0
    %v2140 = vpop.f32.mrb[0].mxu0
    %v2141 = vadd.f32 0.0, %v2140
    %v2142 = vpop.f32.mrb[0].mxu0
    %2143 = vmatprep.mubr.bf16.mxu0 0
    %2144 = vmatmul.mubr.bf16.gmra.mrb[0].mxu0 %v2080
    %v2145 = vpop.f32.mrb[0].mxu0
    %v2146 = vadd.f32 0.0, %v2145
    %v2147 = vpop.f32.mrb[0].mxu0
    %v2148 = vpop.f32.mrb[0].mxu0
    %v2149 = vadd.f32 0.0, %v2148
    %v2150 = vpop.f32.mrb[0].mxu0
    %2151 = vmatprep.mubr.bf16.mxu0 0
    %2152 = vmatmul.mubr.bf16.gmra.mrb[0].mxu0 %v2083
    %v2153 = vpop.f32.mrb[0].mxu0
    %v2154 = vadd.f32 0.0, %v2153
    %v2155 = vpop.f32.mrb[0].mxu0
    %v2156 = vpop.f32.mrb[0].mxu0
    %v2157 = vadd.f32 0.0, %v2156
    %v2158 = vpop.f32.mrb[0].mxu0
    %2159 = vmatprep.mubr.bf16.mxu0 0
    %2160 = vmatmul.mubr.bf16.gmra.mrb[0].mxu0 %v2086
    %v2161 = vpop.f32.mrb[0].mxu0
    %v2162 = vadd.f32 0.0, %v2161
    %v2163 = vpop.f32.mrb[0].mxu0
    %v2164 = vpop.f32.mrb[0].mxu0
    %v2165 = vadd.f32 0.0, %v2164
    %v2166 = vpop.f32.mrb[0].mxu0
    %2167 = vmatprep.mubr.bf16.mxu0 0
    %2168 = vmatmul.mubr.bf16.gmra.mrb[0].mxu0 %v2089
    %v2169 = vpop.f32.mrb[0].mxu0
    %v2170 = vadd.f32 0.0, %v2169
    %v2171 = vpop.f32.mrb[0].mxu0
    %v2172 = vpop.f32.mrb[0].mxu0
    %v2173 = vadd.f32 0.0, %v2172
    %v2174 = vpop.f32.mrb[0].mxu0
    %2175 = vmatprep.mubr.bf16.mxu0 0
    %2176 = vmatmul.mubr.bf16.gmra.mrb[0].mxu0 %v2092
    %v2177 = vpop.f32.mrb[0].mxu0
    %v2178 = vadd.f32 0.0, %v2177
    %v2179 = vpop.f32.mrb[0].mxu0
    %v2180 = vpop.f32.mrb[0].mxu0
    %v2181 = vadd.f32 0.0, %v2180
    %v2182 = vpop.f32.mrb[0].mxu0
    %2183 = vmatprep.mubr.bf16.mxu0 0
    %2184 = vmatmul.mubr.bf16.gmra.mrb[0].mxu0 %v2095
    %v2185 = vpop.f32.mrb[0].mxu0
    %v2186 = vadd.f32 0.0, %v2185
    %v2187 = vpop.f32.mrb[0].mxu0
    %v2188 = vpop.f32.mrb[0].mxu0
    %v2189 = vadd.f32 0.0, %v2188
    %v2190 = vpop.f32.mrb[0].mxu0
    %2191 = vmatprep.mubr.bf16.mxu0 0
    %2192 = vmatmul.mubr.bf16.gmra.mrb[0].mxu0 %v2098
    %v2193 = vpop.f32.mrb[0].mxu0
    %v2194 = vadd.f32 0.0, %v2193
    %v2195 = vpop.f32.mrb[0].mxu0
    %v2196 = vpop.f32.mrb[0].mxu0
    %v2197 = vadd.f32 0.0, %v2196
    %v2198 = vpop.f32.mrb[0].mxu0
    %2199 = vmatprep.mubr.bf16.mxu0 0
    %2200 = vmatmul.mubr.bf16.gmra.mrb[0].mxu0 %v2101
    %v2201 = vpop.f32.mrb[0].mxu0
    %v2202 = vadd.f32 0.0, %v2201
    %v2203 = vpop.f32.mrb[0].mxu0
    %v2204 = vpop.f32.mrb[0].mxu0
    %v2205 = vadd.f32 0.0, %v2204
    %v2206 = vpop.f32.mrb[0].mxu0
    %2207 = vdwg.mxu0
    %2208 = vrot.lane.b32.xlu0 %v2138, 27
    %v2209 = vpop.permute.xlu0 %2208
    %2210 = vrot.lane.b32.xlu0 %v2141, 27
    %v2211 = vpop.permute.xlu0 %2210
    %v2212 = vld [vmem:[%s4] sm:$0x1]
    %v2214 = vlaneseq
    %v2215 = vshrl.u32 %v2214, 7
    %v2216 = vsub.s32 0, %v2215
    %v2217 = vrot.slane %v2212, %v2216
    %v2219 = vmul.f32 %v2209, %v2217
    %v2220 = vmul.f32 %v2211, %v2217
    %2221 = vrot.lane.b32.xlu0 %v2146, 24
    %v2222 = vpop.permute.xlu0 %2221
    %2223 = vrot.lane.b32.xlu0 %v2149, 24
    %v2224 = vpop.permute.xlu0 %2223
    %s2225 = scalar_lea.vmem %s4, 1
    %v2226 = vld [vmem:[%s2225] sm:$0x1]
    %v2228 = vlaneseq
    %v2229 = vshrl.u32 %v2228, 7
    %v2230 = vsub.s32 0, %v2229
    %v2231 = vrot.slane %v2226, %v2230
    %v2233 = vmul.f32 %v2222, %v2231
    %v2234 = vmul.f32 %v2224, %v2231
    %v2235 = vadd.f32 %v2219, %v2233
    %v2236 = vadd.f32 %v2220, %v2234
    %2237 = vrot.lane.b32.xlu0 %v2154, 21
    %v2238 = vpop.permute.xlu0 %2237
    %2239 = vrot.lane.b32.xlu0 %v2157, 21
    %v2240 = vpop.permute.xlu0 %2239
    %s2241 = scalar_lea.vmem %s4, 2
    %v2242 = vld [vmem:[%s2241] sm:$0x1]
    %v2244 = vlaneseq
    %v2245 = vshrl.u32 %v2244, 7
    %v2246 = vsub.s32 0, %v2245
    %v2247 = vrot.slane %v2242, %v2246
    %v2249 = vmul.f32 %v2238, %v2247
    %v2250 = vmul.f32 %v2240, %v2247
    %v2251 = vadd.f32 %v2235, %v2249
    %v2252 = vadd.f32 %v2236, %v2250
    %2253 = vrot.lane.b32.xlu0 %v2162, 3
    %v2254 = vpop.permute.xlu0 %2253
    %2255 = vrot.lane.b32.xlu0 %v2165, 3
    %v2256 = vpop.permute.xlu0 %2255
    %s2257 = scalar_lea.vmem %s4, 3
    %v2258 = vld [vmem:[%s2257] sm:$0x1]
    %v2260 = vlaneseq
    %v2261 = vshrl.u32 %v2260, 7
    %v2262 = vsub.s32 0, %v2261
    %v2263 = vrot.slane %v2258, %v2262
    %v2265 = vmul.f32 %v2254, %v2263
    %v2266 = vmul.f32 %v2256, %v2263
    %v2267 = vadd.f32 %v2251, %v2265
    %v2268 = vadd.f32 %v2252, %v2266
    %s2269 = scalar_lea.vmem %s4, 4
    %v2270 = vld [vmem:[%s2269] sm:$0x1]
    %v2272 = vlaneseq
    %v2273 = vshrl.u32 %v2272, 7
    %v2274 = vsub.s32 0, %v2273
    %v2275 = vrot.slane %v2270, %v2274
    %v2277 = vmul.f32 %v2170, %v2275
    %v2278 = vmul.f32 %v2173, %v2275
    %v2279 = vadd.f32 %v2267, %v2277
    %v2280 = vadd.f32 %v2268, %v2278
    %2281 = vrot.lane.b32.xlu0 %v2178, 125
    %v2282 = vpop.permute.xlu0 %2281
    %2283 = vrot.lane.b32.xlu0 %v2181, 125
    %v2284 = vpop.permute.xlu0 %2283
    %s2285 = scalar_lea.vmem %s4, 5
    %v2286 = vld [vmem:[%s2285] sm:$0x1]
    %v2288 = vlaneseq
    %v2289 = vshrl.u32 %v2288, 7
    %v2290 = vsub.s32 0, %v2289
    %v2291 = vrot.slane %v2286, %v2290
    %v2293 = vmul.f32 %v2282, %v2291
    %v2294 = vmul.f32 %v2284, %v2291
    %v2295 = vadd.f32 %v2279, %v2293
    %v2296 = vadd.f32 %v2280, %v2294
    %2297 = vrot.lane.b32.xlu0 %v2186, 107
    %v2298 = vpop.permute.xlu0 %2297
    %2299 = vrot.lane.b32.xlu0 %v2189, 107
    %v2300 = vpop.permute.xlu0 %2299
    %s2301 = scalar_lea.vmem %s4, 6
    %v2302 = vld [vmem:[%s2301] sm:$0x1]
    %v2304 = vlaneseq
    %v2305 = vshrl.u32 %v2304, 7
    %v2306 = vsub.s32 0, %v2305
    %v2307 = vrot.slane %v2302, %v2306
    %v2309 = vmul.f32 %v2298, %v2307
    %v2310 = vmul.f32 %v2300, %v2307
    %v2311 = vadd.f32 %v2295, %v2309
    %v2312 = vadd.f32 %v2296, %v2310
    %2313 = vrot.lane.b32.xlu0 %v2194, 104
    %v2314 = vpop.permute.xlu0 %2313
    %2315 = vrot.lane.b32.xlu0 %v2197, 104
    %v2316 = vpop.permute.xlu0 %2315
    %s2317 = scalar_lea.vmem %s4, 7
    %v2318 = vld [vmem:[%s2317] sm:$0x1]
    %v2320 = vlaneseq
    %v2321 = vshrl.u32 %v2320, 7
    %v2322 = vsub.s32 0, %v2321
    %v2323 = vrot.slane %v2318, %v2322
    %v2325 = vmul.f32 %v2314, %v2323
    %v2326 = vmul.f32 %v2316, %v2323
    %v2327 = vadd.f32 %v2311, %v2325
    %v2328 = vadd.f32 %v2312, %v2326
    %2329 = vrot.lane.b32.xlu0 %v2202, 101
    %v2330 = vpop.permute.xlu0 %2329
    %2331 = vrot.lane.b32.xlu0 %v2205, 101
    %v2332 = vpop.permute.xlu0 %2331
    %s2333 = scalar_lea.vmem %s4, 8
    %v2334 = vld [vmem:[%s2333] sm:$0x1]
    %v2336 = vlaneseq
    %v2337 = vshrl.u32 %v2336, 7
    %v2338 = vsub.s32 0, %v2337
    %v2339 = vrot.slane %v2334, %v2338
    %v2341 = vmul.f32 %v2330, %v2339
    %v2342 = vmul.f32 %v2332, %v2339
    %v2343 = vadd.f32 %v2327, %v2341
    %v2344 = vadd.f32 %v2328, %v2342
    %v2345 = vld [vmem:[%s16] sm:$0xff]
    %v2346 = vld [vmem:[%s16 + $0x8] sm:$0xff]
    %2348 = vset.pattern.permute.xlu0 0
    %2349 = vperm.xlu0 %2348, %v2345
    %v2350 = vpop.permute.xlu0 %2349
    %2353 = vset.pattern.permute.xlu0 0
    %2354 = vperm.xlu0 %2353, %v2346
    %v2355 = vpop.permute.xlu0 %2354
    %v2357 = vadd.f32 %v2343, %v2350
    %v2358 = vadd.f32 %v2344, %v2355
    %v2359 = vld [vmem:[%s17] sm:$0xf]
    %v2360 = vld [vmem:[%s17 + $0x4] sm:$0xf]
    %v2361 = vld [vmem:[%s17 + $0x8] sm:$0xf]
    %v2362 = vld [vmem:[%s17 + $0xc] sm:$0xf]
    %v2363 = vld [vmem:[%s17 + $0x10] sm:$0xf]
    %v2364 = vld [vmem:[%s17 + $0x14] sm:$0xf]
    %v2365 = vld [vmem:[%s17 + $0x18] sm:$0xf]
    %v2366 = vld [vmem:[%s17 + $0x1c] sm:$0xf]
    %v2367 = vld [vmem:[%s17 + $0x20] sm:$0xf]
    %v2368 = vld [vmem:[%s17 + $0x24] sm:$0xf]
    %v2369 = vld [vmem:[%s17 + $0x28] sm:$0xf]
    %v2370 = vld [vmem:[%s17 + $0x2c] sm:$0xf]
    %v2371 = vld [vmem:[%s17 + $0x30] sm:$0xf]
    %v2372 = vld [vmem:[%s17 + $0x34] sm:$0xf]
    %v2373 = vld [vmem:[%s17 + $0x38] sm:$0xf]
    %v2374 = vld [vmem:[%s17 + $0x3c] sm:$0xf]
    %v2375 = vld [vmem:[%s17 + $0x40] sm:$0xf]
    %v2376 = vld [vmem:[%s17 + $0x44] sm:$0xf]
    %v2395 = vunpack.c.l.b16 %v2359
    %v2396 = vunpack.c.l.b16 %v2360
    %v2397 = vunpack.c.l.b16 %v2361
    %v2398 = vunpack.c.l.b16 %v2362
    %v2399 = vunpack.c.l.b16 %v2363
    %v2400 = vunpack.c.l.b16 %v2364
    %v2401 = vunpack.c.l.b16 %v2365
    %v2402 = vunpack.c.l.b16 %v2366
    %v2403 = vunpack.c.l.b16 %v2367
    %v2404 = vunpack.c.l.b16 %v2368
    %v2405 = vunpack.c.l.b16 %v2369
    %v2406 = vunpack.c.l.b16 %v2370
    %v2407 = vunpack.c.l.b16 %v2371
    %v2408 = vunpack.c.l.b16 %v2372
    %v2409 = vunpack.c.l.b16 %v2373
    %v2410 = vunpack.c.l.b16 %v2374
    %v2411 = vunpack.c.l.b16 %v2375
    %v2412 = vunpack.c.l.b16 %v2376
    %v2413 = vpack.c.b16 %v2396, %v2395
    %v2414 = vpack.c.b16 %v2398, %v2397
    %v2415 = vpack.c.b16 %v2400, %v2399
    %v2416 = vpack.c.b16 %v2402, %v2401
    %v2417 = vpack.c.b16 %v2404, %v2403
    %v2418 = vpack.c.b16 %v2406, %v2405
    %v2419 = vpack.c.b16 %v2408, %v2407
    %v2420 = vpack.c.b16 %v2410, %v2409
    %v2421 = vpack.c.b16 %v2412, %v2411
    %v2423 = vsel %vm931, %v2413, 0
    %v2426 = vsel %vm931, %v2414, 0
    %v2429 = vsel %vm931, %v2415, 0
    %v2432 = vsel %vm931, %v2416, 0
    %v2435 = vsel %vm931, %v2417, 0
    %v2438 = vsel %vm931, %v2418, 0
    %v2441 = vsel %vm931, %v2419, 0
    %v2444 = vsel %vm931, %v2420, 0
    %v2447 = vsel %vm931, %v2421, 0
    %v2450 = vsel %vm959, %v307, 0
    %v2453 = vsel %vm959, %v308, 0
    %v2456 = vsel %vm959, %v309, 0
    %v2459 = vsel %vm959, %v310, 0
    %2461 = vmatprep.subr.bf16.mxu0 %v2453
    %2462 = vmatpush1.bf16.msra.mxu0 %v2450
    %2463 = vmatprep.subr.bf16.mxu0 0
    %2464 = vmatpush1.bf16.msra.mxu0 0
    %2465 = vmatprep.subr.bf16.mxu0 0
    %2466 = vmatpush1.bf16.msra.mxu0 0
    %2467 = vmatprep.subr.bf16.mxu0 0
    %2468 = vmatpush1.bf16.msra.mxu0 0
    %2469 = vmatprep.subr.bf16.mxu0 0
    %2470 = vmatpush1.bf16.msra.mxu0 0
    %2471 = vmatprep.subr.bf16.mxu0 0
    %2472 = vmatpush1.bf16.msra.mxu0 0
    %2473 = vmatprep.subr.bf16.mxu0 0
    %2474 = vmatpush1.bf16.msra.mxu0 0
    %2475 = vmatprep.subr.bf16.mxu0 0
    %2476 = vmatpush1.bf16.msra.mxu0 0
    %2477 = vmatprep.subr.bf16.mxu0 0
    %2478 = vmatpush1.bf16.msra.mxu0 0
    %2479 = vmatprep.subr.bf16.mxu0 0
    %2480 = vmatpush1.bf16.msra.mxu0 0
    %2481 = vmatprep.subr.bf16.mxu0 0
    %2482 = vmatpush1.bf16.msra.mxu0 0
    %2483 = vmatprep.subr.bf16.mxu0 0
    %2484 = vmatpush1.bf16.msra.mxu0 0
    %2485 = vmatprep.subr.bf16.mxu0 0
    %2486 = vmatpush1.bf16.msra.mxu0 0
    %2487 = vmatprep.subr.bf16.mxu0 0
    %2488 = vmatpush1.bf16.msra.mxu0 0
    %2489 = vmatprep.subr.bf16.mxu0 0
    %2490 = vmatpush1.bf16.msra.mxu0 0
    %2491 = vmatprep.subr.bf16.mxu0 0
    %2492 = vmatpush1.bf16.msra.mxu0 0
    %2493 = vmatprep.mubr.bf16.mxu0 0
    %2494 = vmatmul.mubr.bf16.gmra.mrb[0].mxu0 %v2423
    %v2495 = vpop.f32.mrb[0].mxu0
    %v2496 = vadd.f32 0.0, %v2495
    %v2497 = vpop.f32.mrb[0].mxu0
    %v2498 = vadd.f32 0.0, %v2497
    %v2499 = vpop.f32.mrb[0].mxu0
    %v2500 = vadd.f32 0.0, %v2499
    %v2501 = vpop.f32.mrb[0].mxu0
    %v2502 = vadd.f32 0.0, %v2501
    %2503 = vmatprep.mubr.bf16.mxu0 0
    %2504 = vmatmul.mubr.bf16.gmra.mrb[0].mxu0 %v2426
    %v2505 = vpop.f32.mrb[0].mxu0
    %v2506 = vadd.f32 0.0, %v2505
    %v2507 = vpop.f32.mrb[0].mxu0
    %v2508 = vadd.f32 0.0, %v2507
    %v2509 = vpop.f32.mrb[0].mxu0
    %v2510 = vadd.f32 0.0, %v2509
    %v2511 = vpop.f32.mrb[0].mxu0
    %v2512 = vadd.f32 0.0, %v2511
    %2513 = vmatprep.mubr.bf16.mxu0 0
    %2514 = vmatmul.mubr.bf16.gmra.mrb[0].mxu0 %v2429
    %v2515 = vpop.f32.mrb[0].mxu0
    %v2516 = vadd.f32 0.0, %v2515
    %v2517 = vpop.f32.mrb[0].mxu0
    %v2518 = vadd.f32 0.0, %v2517
    %v2519 = vpop.f32.mrb[0].mxu0
    %v2520 = vadd.f32 0.0, %v2519
    %v2521 = vpop.f32.mrb[0].mxu0
    %v2522 = vadd.f32 0.0, %v2521
    %2523 = vmatprep.mubr.bf16.mxu0 0
    %2524 = vmatmul.mubr.bf16.gmra.mrb[0].mxu0 %v2432
    %v2525 = vpop.f32.mrb[0].mxu0
    %v2526 = vadd.f32 0.0, %v2525
    %v2527 = vpop.f32.mrb[0].mxu0
    %v2528 = vadd.f32 0.0, %v2527
    %v2529 = vpop.f32.mrb[0].mxu0
    %v2530 = vadd.f32 0.0, %v2529
    %v2531 = vpop.f32.mrb[0].mxu0
    %v2532 = vadd.f32 0.0, %v2531
    %2533 = vmatprep.mubr.bf16.mxu0 0
    %2534 = vmatmul.mubr.bf16.gmra.mrb[0].mxu0 %v2435
    %v2535 = vpop.f32.mrb[0].mxu0
    %v2536 = vadd.f32 0.0, %v2535
    %v2537 = vpop.f32.mrb[0].mxu0
    %v2538 = vadd.f32 0.0, %v2537
    %v2539 = vpop.f32.mrb[0].mxu0
    %v2540 = vadd.f32 0.0, %v2539
    %v2541 = vpop.f32.mrb[0].mxu0
    %v2542 = vadd.f32 0.0, %v2541
    %2543 = vmatprep.mubr.bf16.mxu0 0
    %2544 = vmatmul.mubr.bf16.gmra.mrb[0].mxu0 %v2438
    %v2545 = vpop.f32.mrb[0].mxu0
    %v2546 = vadd.f32 0.0, %v2545
    %v2547 = vpop.f32.mrb[0].mxu0
    %v2548 = vadd.f32 0.0, %v2547
    %v2549 = vpop.f32.mrb[0].mxu0
    %v2550 = vadd.f32 0.0, %v2549
    %v2551 = vpop.f32.mrb[0].mxu0
    %v2552 = vadd.f32 0.0, %v2551
    %2553 = vmatprep.mubr.bf16.mxu0 0
    %2554 = vmatmul.mubr.bf16.gmra.mrb[0].mxu0 %v2441
    %v2555 = vpop.f32.mrb[0].mxu0
    %v2556 = vadd.f32 0.0, %v2555
    %v2557 = vpop.f32.mrb[0].mxu0
    %v2558 = vadd.f32 0.0, %v2557
    %v2559 = vpop.f32.mrb[0].mxu0
    %v2560 = vadd.f32 0.0, %v2559
    %v2561 = vpop.f32.mrb[0].mxu0
    %v2562 = vadd.f32 0.0, %v2561
    %2563 = vmatprep.mubr.bf16.mxu0 0
    %2564 = vmatmul.mubr.bf16.gmra.mrb[0].mxu0 %v2444
    %v2565 = vpop.f32.mrb[0].mxu0
    %v2566 = vadd.f32 0.0, %v2565
    %v2567 = vpop.f32.mrb[0].mxu0
    %v2568 = vadd.f32 0.0, %v2567
    %v2569 = vpop.f32.mrb[0].mxu0
    %v2570 = vadd.f32 0.0, %v2569
    %v2571 = vpop.f32.mrb[0].mxu0
    %v2572 = vadd.f32 0.0, %v2571
    %2573 = vmatprep.mubr.bf16.mxu0 0
    %2574 = vmatmul.mubr.bf16.gmra.mrb[0].mxu0 %v2447
    %v2575 = vpop.f32.mrb[0].mxu0
    %v2576 = vadd.f32 0.0, %v2575
    %v2577 = vpop.f32.mrb[0].mxu0
    %v2578 = vadd.f32 0.0, %v2577
    %v2579 = vpop.f32.mrb[0].mxu0
    %v2580 = vadd.f32 0.0, %v2579
    %v2581 = vpop.f32.mrb[0].mxu0
    %v2582 = vadd.f32 0.0, %v2581
    %2583 = vdwg.mxu0
    %2584 = vmatprep.subr.bf16.mxu0 %v2459
    %2585 = vmatpush1.bf16.msra.mxu0 %v2456
    %2586 = vmatprep.subr.bf16.mxu0 0
    %2587 = vmatpush1.bf16.msra.mxu0 0
    %2588 = vmatprep.subr.bf16.mxu0 0
    %2589 = vmatpush1.bf16.msra.mxu0 0
    %2590 = vmatprep.subr.bf16.mxu0 0
    %2591 = vmatpush1.bf16.msra.mxu0 0
    %2592 = vmatprep.subr.bf16.mxu0 0
    %2593 = vmatpush1.bf16.msra.mxu0 0
    %2594 = vmatprep.subr.bf16.mxu0 0
    %2595 = vmatpush1.bf16.msra.mxu0 0
    %2596 = vmatprep.subr.bf16.mxu0 0
    %2597 = vmatpush1.bf16.msra.mxu0 0
    %2598 = vmatprep.subr.bf16.mxu0 0
    %2599 = vmatpush1.bf16.msra.mxu0 0
    %2600 = vmatprep.subr.bf16.mxu0 0
    %2601 = vmatpush1.bf16.msra.mxu0 0
    %2602 = vmatprep.subr.bf16.mxu0 0
    %2603 = vmatpush1.bf16.msra.mxu0 0
    %2604 = vmatprep.subr.bf16.mxu0 0
    %2605 = vmatpush1.bf16.msra.mxu0 0
    %2606 = vmatprep.subr.bf16.mxu0 0
    %2607 = vmatpush1.bf16.msra.mxu0 0
    %2608 = vmatprep.subr.bf16.mxu0 0
    %2609 = vmatpush1.bf16.msra.mxu0 0
    %2610 = vmatprep.subr.bf16.mxu0 0
    %2611 = vmatpush1.bf16.msra.mxu0 0
    %2612 = vmatprep.subr.bf16.mxu0 0
    %2613 = vmatpush1.bf16.msra.mxu0 0
    %2614 = vmatprep.subr.bf16.mxu0 0
    %2615 = vmatpush1.bf16.msra.mxu0 0
    %2616 = vmatprep.mubr.bf16.mxu0 0
    %2617 = vmatmul.mubr.bf16.gmra.mrb[0].mxu0 %v2423
    %v2618 = vpop.f32.mrb[0].mxu0
    %v2619 = vadd.f32 0.0, %v2618
    %v2620 = vpop.f32.mrb[0].mxu0
    %v2621 = vadd.f32 0.0, %v2620
    %v2622 = vpop.f32.mrb[0].mxu0
    %v2623 = vadd.f32 0.0, %v2622
    %v2624 = vpop.f32.mrb[0].mxu0
    %v2625 = vadd.f32 0.0, %v2624
    %2626 = vmatprep.mubr.bf16.mxu0 0
    %2627 = vmatmul.mubr.bf16.gmra.mrb[0].mxu0 %v2426
    %v2628 = vpop.f32.mrb[0].mxu0
    %v2629 = vadd.f32 0.0, %v2628
    %v2630 = vpop.f32.mrb[0].mxu0
    %v2631 = vadd.f32 0.0, %v2630
    %v2632 = vpop.f32.mrb[0].mxu0
    %v2633 = vadd.f32 0.0, %v2632
    %v2634 = vpop.f32.mrb[0].mxu0
    %v2635 = vadd.f32 0.0, %v2634
    %2636 = vmatprep.mubr.bf16.mxu0 0
    %2637 = vmatmul.mubr.bf16.gmra.mrb[0].mxu0 %v2429
    %v2638 = vpop.f32.mrb[0].mxu0
    %v2639 = vadd.f32 0.0, %v2638
    %v2640 = vpop.f32.mrb[0].mxu0
    %v2641 = vadd.f32 0.0, %v2640
    %v2642 = vpop.f32.mrb[0].mxu0
    %v2643 = vadd.f32 0.0, %v2642
    %v2644 = vpop.f32.mrb[0].mxu0
    %v2645 = vadd.f32 0.0, %v2644
    %2646 = vmatprep.mubr.bf16.mxu0 0
    %2647 = vmatmul.mubr.bf16.gmra.mrb[0].mxu0 %v2432
    %v2648 = vpop.f32.mrb[0].mxu0
    %v2649 = vadd.f32 0.0, %v2648
    %v2650 = vpop.f32.mrb[0].mxu0
    %v2651 = vadd.f32 0.0, %v2650
    %v2652 = vpop.f32.mrb[0].mxu0
    %v2653 = vadd.f32 0.0, %v2652
    %v2654 = vpop.f32.mrb[0].mxu0
    %v2655 = vadd.f32 0.0, %v2654
    %2656 = vmatprep.mubr.bf16.mxu0 0
    %2657 = vmatmul.mubr.bf16.gmra.mrb[0].mxu0 %v2435
    %v2658 = vpop.f32.mrb[0].mxu0
    %v2659 = vadd.f32 0.0, %v2658
    %v2660 = vpop.f32.mrb[0].mxu0
    %v2661 = vadd.f32 0.0, %v2660
    %v2662 = vpop.f32.mrb[0].mxu0
    %v2663 = vadd.f32 0.0, %v2662
    %v2664 = vpop.f32.mrb[0].mxu0
    %v2665 = vadd.f32 0.0, %v2664
    %2666 = vmatprep.mubr.bf16.mxu0 0
    %2667 = vmatmul.mubr.bf16.gmra.mrb[0].mxu0 %v2438
    %v2668 = vpop.f32.mrb[0].mxu0
    %v2669 = vadd.f32 0.0, %v2668
    %v2670 = vpop.f32.mrb[0].mxu0
    %v2671 = vadd.f32 0.0, %v2670
    %v2672 = vpop.f32.mrb[0].mxu0
    %v2673 = vadd.f32 0.0, %v2672
    %v2674 = vpop.f32.mrb[0].mxu0
    %v2675 = vadd.f32 0.0, %v2674
    %2676 = vmatprep.mubr.bf16.mxu0 0
    %2677 = vmatmul.mubr.bf16.gmra.mrb[0].mxu0 %v2441
    %v2678 = vpop.f32.mrb[0].mxu0
    %v2679 = vadd.f32 0.0, %v2678
    %v2680 = vpop.f32.mrb[0].mxu0
    %v2681 = vadd.f32 0.0, %v2680
    %v2682 = vpop.f32.mrb[0].mxu0
    %v2683 = vadd.f32 0.0, %v2682
    %v2684 = vpop.f32.mrb[0].mxu0
    %v2685 = vadd.f32 0.0, %v2684
    %2686 = vmatprep.mubr.bf16.mxu0 0
    %2687 = vmatmul.mubr.bf16.gmra.mrb[0].mxu0 %v2444
    %v2688 = vpop.f32.mrb[0].mxu0
    %v2689 = vadd.f32 0.0, %v2688
    %v2690 = vpop.f32.mrb[0].mxu0
    %v2691 = vadd.f32 0.0, %v2690
    %v2692 = vpop.f32.mrb[0].mxu0
    %v2693 = vadd.f32 0.0, %v2692
    %v2694 = vpop.f32.mrb[0].mxu0
    %v2695 = vadd.f32 0.0, %v2694
    %2696 = vmatprep.mubr.bf16.mxu0 0
    %2697 = vmatmul.mubr.bf16.gmra.mrb[0].mxu0 %v2447
    %v2698 = vpop.f32.mrb[0].mxu0
    %v2699 = vadd.f32 0.0, %v2698
    %v2700 = vpop.f32.mrb[0].mxu0
    %v2701 = vadd.f32 0.0, %v2700
    %v2702 = vpop.f32.mrb[0].mxu0
    %v2703 = vadd.f32 0.0, %v2702
    %v2704 = vpop.f32.mrb[0].mxu0
    %v2705 = vadd.f32 0.0, %v2704
    %2706 = vdwg.mxu0
    %2707 = vrot.lane.b32.xlu0 %v2496, 17
    %v2708 = vpop.permute.xlu0 %2707
    %2709 = vrot.lane.b32.xlu0 %v2500, 17
    %v2710 = vpop.permute.xlu0 %2709
    %2711 = vrot.lane.b32.xlu0 %v2498, 17
    %v2712 = vpop.permute.xlu0 %2711
    %2713 = vrot.lane.b32.xlu0 %v2502, 17
    %v2714 = vpop.permute.xlu0 %2713
    %2715 = vrot.lane.b32.xlu0 %v2619, 17
    %v2716 = vpop.permute.xlu0 %2715
    %2717 = vrot.lane.b32.xlu0 %v2623, 17
    %v2718 = vpop.permute.xlu0 %2717
    %2719 = vrot.lane.b32.xlu0 %v2621, 17
    %v2720 = vpop.permute.xlu0 %2719
    %2721 = vrot.lane.b32.xlu0 %v2625, 17
    %v2722 = vpop.permute.xlu0 %2721
    %v2723 = vsel %vm1236, %v2716, %v2720
    %v2724 = vsel %vm1236, %v2718, %v2722
    %v2725 = vsel %vm1236, %v2712, %v2716
    %v2726 = vsel %vm1236, %v2714, %v2718
    %v2727 = vsel %vm1236, %v2708, %v2712
    %v2728 = vsel %vm1236, %v2710, %v2714
    %v2729 = vsel %vm1236, %v2720, %v2708
    %v2730 = vsel %vm1236, %v2722, %v2710
    %v2731 = vmul.f32 %v2729, %v1250
    %v2732 = vmul.f32 %v2727, %v1254
    %v2733 = vmul.f32 %v2725, %v1258
    %v2734 = vmul.f32 %v2723, %v1262
    %v2735 = vmul.f32 %v2730, %v1250
    %v2736 = vmul.f32 %v2728, %v1254
    %v2737 = vmul.f32 %v2726, %v1258
    %v2738 = vmul.f32 %v2724, %v1262
    %2739 = vrot.lane.b32.xlu0 %v2506, 16
    %v2740 = vpop.permute.xlu0 %2739
    %2741 = vrot.lane.b32.xlu0 %v2510, 16
    %v2742 = vpop.permute.xlu0 %2741
    %2743 = vrot.lane.b32.xlu0 %v2508, 16
    %v2744 = vpop.permute.xlu0 %2743
    %2745 = vrot.lane.b32.xlu0 %v2512, 16
    %v2746 = vpop.permute.xlu0 %2745
    %2747 = vrot.lane.b32.xlu0 %v2629, 16
    %v2748 = vpop.permute.xlu0 %2747
    %2749 = vrot.lane.b32.xlu0 %v2633, 16
    %v2750 = vpop.permute.xlu0 %2749
    %2751 = vrot.lane.b32.xlu0 %v2631, 16
    %v2752 = vpop.permute.xlu0 %2751
    %2753 = vrot.lane.b32.xlu0 %v2635, 16
    %v2754 = vpop.permute.xlu0 %2753
    %v2755 = vsel %vm1291, %v2748, %v2752
    %v2756 = vsel %vm1291, %v2750, %v2754
    %v2757 = vsel %vm1291, %v2744, %v2748
    %v2758 = vsel %vm1291, %v2746, %v2750
    %v2759 = vsel %vm1291, %v2740, %v2744
    %v2760 = vsel %vm1291, %v2742, %v2746
    %v2761 = vsel %vm1291, %v2752, %v2740
    %v2762 = vsel %vm1291, %v2754, %v2742
    %v2763 = vmul.f32 %v2761, %v1306
    %v2764 = vmul.f32 %v2759, %v1310
    %v2765 = vmul.f32 %v2757, %v1314
    %v2766 = vmul.f32 %v2755, %v1318
    %v2767 = vmul.f32 %v2762, %v1306
    %v2768 = vmul.f32 %v2760, %v1310
    %v2769 = vmul.f32 %v2758, %v1314
    %v2770 = vmul.f32 %v2756, %v1318
    %v2771 = vadd.f32 %v2731, %v2763
    %v2772 = vadd.f32 %v2732, %v2764
    %v2773 = vadd.f32 %v2733, %v2765
    %v2774 = vadd.f32 %v2734, %v2766
    %v2775 = vadd.f32 %v2735, %v2767
    %v2776 = vadd.f32 %v2736, %v2768
    %v2777 = vadd.f32 %v2737, %v2769
    %v2778 = vadd.f32 %v2738, %v2770
    %2779 = vrot.lane.b32.xlu0 %v2516, 15
    %v2780 = vpop.permute.xlu0 %2779
    %2781 = vrot.lane.b32.xlu0 %v2520, 15
    %v2782 = vpop.permute.xlu0 %2781
    %2783 = vrot.lane.b32.xlu0 %v2518, 15
    %v2784 = vpop.permute.xlu0 %2783
    %2785 = vrot.lane.b32.xlu0 %v2522, 15
    %v2786 = vpop.permute.xlu0 %2785
    %2787 = vrot.lane.b32.xlu0 %v2639, 15
    %v2788 = vpop.permute.xlu0 %2787
    %2789 = vrot.lane.b32.xlu0 %v2643, 15
    %v2790 = vpop.permute.xlu0 %2789
    %2791 = vrot.lane.b32.xlu0 %v2641, 15
    %v2792 = vpop.permute.xlu0 %2791
    %2793 = vrot.lane.b32.xlu0 %v2645, 15
    %v2794 = vpop.permute.xlu0 %2793
    %v2795 = vsel %vm1355, %v2788, %v2792
    %v2796 = vsel %vm1355, %v2790, %v2794
    %v2797 = vsel %vm1355, %v2784, %v2788
    %v2798 = vsel %vm1355, %v2786, %v2790
    %v2799 = vsel %vm1355, %v2780, %v2784
    %v2800 = vsel %vm1355, %v2782, %v2786
    %v2801 = vsel %vm1355, %v2792, %v2780
    %v2802 = vsel %vm1355, %v2794, %v2782
    %v2803 = vmul.f32 %v2801, %v1370
    %v2804 = vmul.f32 %v2799, %v1374
    %v2805 = vmul.f32 %v2797, %v1378
    %v2806 = vmul.f32 %v2795, %v1382
    %v2807 = vmul.f32 %v2802, %v1370
    %v2808 = vmul.f32 %v2800, %v1374
    %v2809 = vmul.f32 %v2798, %v1378
    %v2810 = vmul.f32 %v2796, %v1382
    %v2811 = vadd.f32 %v2771, %v2803
    %v2812 = vadd.f32 %v2772, %v2804
    %v2813 = vadd.f32 %v2773, %v2805
    %v2814 = vadd.f32 %v2774, %v2806
    %v2815 = vadd.f32 %v2775, %v2807
    %v2816 = vadd.f32 %v2776, %v2808
    %v2817 = vadd.f32 %v2777, %v2809
    %v2818 = vadd.f32 %v2778, %v2810
    %2819 = vrot.lane.b32.xlu0 %v2526, 1
    %v2820 = vpop.permute.xlu0 %2819
    %2821 = vrot.lane.b32.xlu0 %v2530, 1
    %v2822 = vpop.permute.xlu0 %2821
    %2823 = vrot.lane.b32.xlu0 %v2528, 1
    %v2824 = vpop.permute.xlu0 %2823
    %2825 = vrot.lane.b32.xlu0 %v2532, 1
    %v2826 = vpop.permute.xlu0 %2825
    %2827 = vrot.lane.b32.xlu0 %v2649, 1
    %v2828 = vpop.permute.xlu0 %2827
    %2829 = vrot.lane.b32.xlu0 %v2653, 1
    %v2830 = vpop.permute.xlu0 %2829
    %2831 = vrot.lane.b32.xlu0 %v2651, 1
    %v2832 = vpop.permute.xlu0 %2831
    %2833 = vrot.lane.b32.xlu0 %v2655, 1
    %v2834 = vpop.permute.xlu0 %2833
    %v2835 = vsel %vm1419, %v2828, %v2832
    %v2836 = vsel %vm1419, %v2830, %v2834
    %v2837 = vsel %vm1419, %v2824, %v2828
    %v2838 = vsel %vm1419, %v2826, %v2830
    %v2839 = vsel %vm1419, %v2820, %v2824
    %v2840 = vsel %vm1419, %v2822, %v2826
    %v2841 = vsel %vm1419, %v2832, %v2820
    %v2842 = vsel %vm1419, %v2834, %v2822
    %v2843 = vmul.f32 %v2841, %v1434
    %v2844 = vmul.f32 %v2839, %v1438
    %v2845 = vmul.f32 %v2837, %v1442
    %v2846 = vmul.f32 %v2835, %v1446
    %v2847 = vmul.f32 %v2842, %v1434
    %v2848 = vmul.f32 %v2840, %v1438
    %v2849 = vmul.f32 %v2838, %v1442
    %v2850 = vmul.f32 %v2836, %v1446
    %v2851 = vadd.f32 %v2811, %v2843
    %v2852 = vadd.f32 %v2812, %v2844
    %v2853 = vadd.f32 %v2813, %v2845
    %v2854 = vadd.f32 %v2814, %v2846
    %v2855 = vadd.f32 %v2815, %v2847
    %v2856 = vadd.f32 %v2816, %v2848
    %v2857 = vadd.f32 %v2817, %v2849
    %v2858 = vadd.f32 %v2818, %v2850
    %v2859 = vmul.f32 %v2536, %v1473
    %v2860 = vmul.f32 %v2538, %v1477
    %v2861 = vmul.f32 %v2659, %v1481
    %v2862 = vmul.f32 %v2661, %v1485
    %v2863 = vmul.f32 %v2540, %v1473
    %v2864 = vmul.f32 %v2542, %v1477
    %v2865 = vmul.f32 %v2663, %v1481
    %v2866 = vmul.f32 %v2665, %v1485
    %v2867 = vadd.f32 %v2851, %v2859
    %v2868 = vadd.f32 %v2852, %v2860
    %v2869 = vadd.f32 %v2853, %v2861
    %v2870 = vadd.f32 %v2854, %v2862
    %v2871 = vadd.f32 %v2855, %v2863
    %v2872 = vadd.f32 %v2856, %v2864
    %v2873 = vadd.f32 %v2857, %v2865
    %v2874 = vadd.f32 %v2858, %v2866
    %2875 = vrot.lane.b32.xlu0 %v2546, 127
    %v2876 = vpop.permute.xlu0 %2875
    %2877 = vrot.lane.b32.xlu0 %v2550, 127
    %v2878 = vpop.permute.xlu0 %2877
    %2879 = vrot.lane.b32.xlu0 %v2548, 127
    %v2880 = vpop.permute.xlu0 %2879
    %2881 = vrot.lane.b32.xlu0 %v2552, 127
    %v2882 = vpop.permute.xlu0 %2881
    %2883 = vrot.lane.b32.xlu0 %v2669, 127
    %v2884 = vpop.permute.xlu0 %2883
    %2885 = vrot.lane.b32.xlu0 %v2673, 127
    %v2886 = vpop.permute.xlu0 %2885
    %2887 = vrot.lane.b32.xlu0 %v2671, 127
    %v2888 = vpop.permute.xlu0 %2887
    %2889 = vrot.lane.b32.xlu0 %v2675, 127
    %v2890 = vpop.permute.xlu0 %2889
    %v2891 = vsel %vm1522, %v2884, %v2888
    %v2892 = vsel %vm1522, %v2886, %v2890
    %v2893 = vsel %vm1522, %v2880, %v2884
    %v2894 = vsel %vm1522, %v2882, %v2886
    %v2895 = vsel %vm1522, %v2876, %v2880
    %v2896 = vsel %vm1522, %v2878, %v2882
    %v2897 = vsel %vm1522, %v2888, %v2876
    %v2898 = vsel %vm1522, %v2890, %v2878
    %v2899 = vmul.f32 %v2895, %v1537
    %v2900 = vmul.f32 %v2893, %v1541
    %v2901 = vmul.f32 %v2891, %v1545
    %v2902 = vmul.f32 %v2897, %v1549
    %v2903 = vmul.f32 %v2896, %v1537
    %v2904 = vmul.f32 %v2894, %v1541
    %v2905 = vmul.f32 %v2892, %v1545
    %v2906 = vmul.f32 %v2898, %v1549
    %v2907 = vadd.f32 %v2867, %v2899
    %v2908 = vadd.f32 %v2868, %v2900
    %v2909 = vadd.f32 %v2869, %v2901
    %v2910 = vadd.f32 %v2870, %v2902
    %v2911 = vadd.f32 %v2871, %v2903
    %v2912 = vadd.f32 %v2872, %v2904
    %v2913 = vadd.f32 %v2873, %v2905
    %v2914 = vadd.f32 %v2874, %v2906
    %2915 = vrot.lane.b32.xlu0 %v2556, 113
    %v2916 = vpop.permute.xlu0 %2915
    %2917 = vrot.lane.b32.xlu0 %v2560, 113
    %v2918 = vpop.permute.xlu0 %2917
    %2919 = vrot.lane.b32.xlu0 %v2558, 113
    %v2920 = vpop.permute.xlu0 %2919
    %2921 = vrot.lane.b32.xlu0 %v2562, 113
    %v2922 = vpop.permute.xlu0 %2921
    %2923 = vrot.lane.b32.xlu0 %v2679, 113
    %v2924 = vpop.permute.xlu0 %2923
    %2925 = vrot.lane.b32.xlu0 %v2683, 113
    %v2926 = vpop.permute.xlu0 %2925
    %2927 = vrot.lane.b32.xlu0 %v2681, 113
    %v2928 = vpop.permute.xlu0 %2927
    %2929 = vrot.lane.b32.xlu0 %v2685, 113
    %v2930 = vpop.permute.xlu0 %2929
    %v2931 = vsel %vm1586, %v2924, %v2928
    %v2932 = vsel %vm1586, %v2926, %v2930
    %v2933 = vsel %vm1586, %v2920, %v2924
    %v2934 = vsel %vm1586, %v2922, %v2926
    %v2935 = vsel %vm1586, %v2916, %v2920
    %v2936 = vsel %vm1586, %v2918, %v2922
    %v2937 = vsel %vm1586, %v2928, %v2916
    %v2938 = vsel %vm1586, %v2930, %v2918
    %v2939 = vmul.f32 %v2935, %v1601
    %v2940 = vmul.f32 %v2933, %v1605
    %v2941 = vmul.f32 %v2931, %v1609
    %v2942 = vmul.f32 %v2937, %v1613
    %v2943 = vmul.f32 %v2936, %v1601
    %v2944 = vmul.f32 %v2934, %v1605
    %v2945 = vmul.f32 %v2932, %v1609
    %v2946 = vmul.f32 %v2938, %v1613
    %v2947 = vadd.f32 %v2907, %v2939
    %v2948 = vadd.f32 %v2908, %v2940
    %v2949 = vadd.f32 %v2909, %v2941
    %v2950 = vadd.f32 %v2910, %v2942
    %v2951 = vadd.f32 %v2911, %v2943
    %v2952 = vadd.f32 %v2912, %v2944
    %v2953 = vadd.f32 %v2913, %v2945
    %v2954 = vadd.f32 %v2914, %v2946
    %2955 = vrot.lane.b32.xlu0 %v2566, 112
    %v2956 = vpop.permute.xlu0 %2955
    %2957 = vrot.lane.b32.xlu0 %v2570, 112
    %v2958 = vpop.permute.xlu0 %2957
    %2959 = vrot.lane.b32.xlu0 %v2568, 112
    %v2960 = vpop.permute.xlu0 %2959
    %2961 = vrot.lane.b32.xlu0 %v2572, 112
    %v2962 = vpop.permute.xlu0 %2961
    %2963 = vrot.lane.b32.xlu0 %v2689, 112
    %v2964 = vpop.permute.xlu0 %2963
    %2965 = vrot.lane.b32.xlu0 %v2693, 112
    %v2966 = vpop.permute.xlu0 %2965
    %2967 = vrot.lane.b32.xlu0 %v2691, 112
    %v2968 = vpop.permute.xlu0 %2967
    %2969 = vrot.lane.b32.xlu0 %v2695, 112
    %v2970 = vpop.permute.xlu0 %2969
    %v2971 = vsel %vm1650, %v2964, %v2968
    %v2972 = vsel %vm1650, %v2966, %v2970
    %v2973 = vsel %vm1650, %v2960, %v2964
    %v2974 = vsel %vm1650, %v2962, %v2966
    %v2975 = vsel %vm1650, %v2956, %v2960
    %v2976 = vsel %vm1650, %v2958, %v2962
    %v2977 = vsel %vm1650, %v2968, %v2956
    %v2978 = vsel %vm1650, %v2970, %v2958
    %v2979 = vmul.f32 %v2975, %v1665
    %v2980 = vmul.f32 %v2973, %v1669
    %v2981 = vmul.f32 %v2971, %v1673
    %v2982 = vmul.f32 %v2977, %v1677
    %v2983 = vmul.f32 %v2976, %v1665
    %v2984 = vmul.f32 %v2974, %v1669
    %v2985 = vmul.f32 %v2972, %v1673
    %v2986 = vmul.f32 %v2978, %v1677
    %v2987 = vadd.f32 %v2947, %v2979
    %v2988 = vadd.f32 %v2948, %v2980
    %v2989 = vadd.f32 %v2949, %v2981
    %v2990 = vadd.f32 %v2950, %v2982
    %v2991 = vadd.f32 %v2951, %v2983
    %v2992 = vadd.f32 %v2952, %v2984
    %v2993 = vadd.f32 %v2953, %v2985
    %v2994 = vadd.f32 %v2954, %v2986
    %2995 = vrot.lane.b32.xlu0 %v2576, 111
    %v2996 = vpop.permute.xlu0 %2995
    %2997 = vrot.lane.b32.xlu0 %v2580, 111
    %v2998 = vpop.permute.xlu0 %2997
    %2999 = vrot.lane.b32.xlu0 %v2578, 111
    %v3000 = vpop.permute.xlu0 %2999
    %3001 = vrot.lane.b32.xlu0 %v2582, 111
    %v3002 = vpop.permute.xlu0 %3001
    %3003 = vrot.lane.b32.xlu0 %v2699, 111
    %v3004 = vpop.permute.xlu0 %3003
    %3005 = vrot.lane.b32.xlu0 %v2703, 111
    %v3006 = vpop.permute.xlu0 %3005
    %3007 = vrot.lane.b32.xlu0 %v2701, 111
    %v3008 = vpop.permute.xlu0 %3007
    %3009 = vrot.lane.b32.xlu0 %v2705, 111
    %v3010 = vpop.permute.xlu0 %3009
    %v3011 = vsel %vm1714, %v3004, %v3008
    %v3012 = vsel %vm1714, %v3006, %v3010
    %v3013 = vsel %vm1714, %v3000, %v3004
    %v3014 = vsel %vm1714, %v3002, %v3006
    %v3015 = vsel %vm1714, %v2996, %v3000
    %v3016 = vsel %vm1714, %v2998, %v3002
    %v3017 = vsel %vm1714, %v3008, %v2996
    %v3018 = vsel %vm1714, %v3010, %v2998
    %v3019 = vmul.f32 %v3015, %v1729
    %v3020 = vmul.f32 %v3013, %v1733
    %v3021 = vmul.f32 %v3011, %v1737
    %v3022 = vmul.f32 %v3017, %v1741
    %v3023 = vmul.f32 %v3016, %v1729
    %v3024 = vmul.f32 %v3014, %v1733
    %v3025 = vmul.f32 %v3012, %v1737
    %v3026 = vmul.f32 %v3018, %v1741
    %v3027 = vadd.f32 %v2987, %v3019
    %v3028 = vadd.f32 %v2988, %v3020
    %v3029 = vadd.f32 %v2989, %v3021
    %v3030 = vadd.f32 %v2990, %v3022
    %v3031 = vadd.f32 %v2991, %v3023
    %v3032 = vadd.f32 %v2992, %v3024
    %v3033 = vadd.f32 %v2993, %v3025
    %v3034 = vadd.f32 %v2994, %v3026
    %v3035 = vld [vmem:[%s18] sm:$0xff]
    %v3036 = vld [vmem:[%s18 + $0x8] sm:$0xff]
    %3038 = vset.pattern.permute.xlu0 0
    %3039 = vperm.xlu0 %3038, %v3035
    %v3040 = vpop.permute.xlu0 %3039
    %3043 = vset.pattern.permute.xlu0 0
    %3044 = vperm.xlu0 %3043, %v3036
    %v3045 = vpop.permute.xlu0 %3044
    %v3047 = vadd.f32 %v3027, %v3040
    %v3048 = vadd.f32 %v3028, %v3040
    %v3049 = vadd.f32 %v3029, %v3040
    %v3050 = vadd.f32 %v3030, %v3040
    %v3051 = vadd.f32 %v3031, %v3045
    %v3052 = vadd.f32 %v3032, %v3045
    %v3053 = vadd.f32 %v3033, %v3045
    %v3054 = vadd.f32 %v3034, %v3045
    %v3055 = vmax.f32 %v3047, 0.0
    %v3056 = vmax.f32 %v3048, 0.0
    %v3057 = vmax.f32 %v3049, 0.0
    %v3058 = vmax.f32 %v3050, 0.0
    %v3059 = vmax.f32 %v3051, 0.0
    %v3060 = vmax.f32 %v3052, 0.0
    %v3061 = vmax.f32 %v3053, 0.0
    %v3062 = vmax.f32 %v3054, 0.0
    %v3063 = vpack.c.bf16 %v3059, %v3055
    %v3064 = vpack.c.bf16 %v3060, %v3056
    %v3065 = vpack.c.bf16 %v3061, %v3057
    %v3066 = vpack.c.bf16 %v3062, %v3058
    %v3067 = vld [vmem:[%s19] sm:$0xf]
    %v3068 = vld [vmem:[%s19 + $0x4] sm:$0xf]
    %v3069 = vld [vmem:[%s19 + $0x8] sm:$0xf]
    %v3070 = vld [vmem:[%s19 + $0xc] sm:$0xf]
    %v3071 = vld [vmem:[%s19 + $0x10] sm:$0xf]
    %v3072 = vld [vmem:[%s19 + $0x14] sm:$0xf]
    %v3073 = vld [vmem:[%s19 + $0x18] sm:$0xf]
    %v3074 = vld [vmem:[%s19 + $0x1c] sm:$0xf]
    %v3075 = vld [vmem:[%s19 + $0x20] sm:$0xf]
    %v3076 = vld [vmem:[%s19 + $0x24] sm:$0xf]
    %v3077 = vld [vmem:[%s19 + $0x28] sm:$0xf]
    %v3078 = vld [vmem:[%s19 + $0x2c] sm:$0xf]
    %v3079 = vld [vmem:[%s19 + $0x30] sm:$0xf]
    %v3080 = vld [vmem:[%s19 + $0x34] sm:$0xf]
    %v3081 = vld [vmem:[%s19 + $0x38] sm:$0xf]
    %v3082 = vld [vmem:[%s19 + $0x3c] sm:$0xf]
    %v3083 = vld [vmem:[%s19 + $0x40] sm:$0xf]
    %v3084 = vld [vmem:[%s19 + $0x44] sm:$0xf]
    %v3103 = vunpack.c.l.b16 %v3067
    %v3104 = vunpack.c.l.b16 %v3068
    %v3105 = vunpack.c.l.b16 %v3069
    %v3106 = vunpack.c.l.b16 %v3070
    %v3107 = vunpack.c.l.b16 %v3071
    %v3108 = vunpack.c.l.b16 %v3072
    %v3109 = vunpack.c.l.b16 %v3073
    %v3110 = vunpack.c.l.b16 %v3074
    %v3111 = vunpack.c.l.b16 %v3075
    %v3112 = vunpack.c.l.b16 %v3076
    %v3113 = vunpack.c.l.b16 %v3077
    %v3114 = vunpack.c.l.b16 %v3078
    %v3115 = vunpack.c.l.b16 %v3079
    %v3116 = vunpack.c.l.b16 %v3080
    %v3117 = vunpack.c.l.b16 %v3081
    %v3118 = vunpack.c.l.b16 %v3082
    %v3119 = vunpack.c.l.b16 %v3083
    %v3120 = vunpack.c.l.b16 %v3084
    %v3121 = vpack.c.b16 %v3104, %v3103
    %v3122 = vpack.c.b16 %v3106, %v3105
    %v3123 = vpack.c.b16 %v3108, %v3107
    %v3124 = vpack.c.b16 %v3110, %v3109
    %v3125 = vpack.c.b16 %v3112, %v3111
    %v3126 = vpack.c.b16 %v3114, %v3113
    %v3127 = vpack.c.b16 %v3116, %v3115
    %v3128 = vpack.c.b16 %v3118, %v3117
    %v3129 = vpack.c.b16 %v3120, %v3119
    %v3131 = vsel %vm584, %v3121, 0
    %v3134 = vsel %vm584, %v3122, 0
    %v3137 = vsel %vm584, %v3123, 0
    %v3140 = vsel %vm584, %v3124, 0
    %v3143 = vsel %vm584, %v3125, 0
    %v3146 = vsel %vm584, %v3126, 0
    %v3149 = vsel %vm584, %v3127, 0
    %v3152 = vsel %vm584, %v3128, 0
    %v3155 = vsel %vm584, %v3129, 0
    %3157 = vmatprep.subr.bf16.mxu0 %v3064
    %3158 = vmatpush1.bf16.msra.mxu0 %v3063
    %3159 = vmatprep.subr.bf16.mxu0 0
    %3160 = vmatpush1.bf16.msra.mxu0 0
    %3161 = vmatprep.subr.bf16.mxu0 0
    %3162 = vmatpush1.bf16.msra.mxu0 0
    %3163 = vmatprep.subr.bf16.mxu0 0
    %3164 = vmatpush1.bf16.msra.mxu0 0
    %3165 = vmatprep.subr.bf16.mxu0 0
    %3166 = vmatpush1.bf16.msra.mxu0 0
    %3167 = vmatprep.subr.bf16.mxu0 0
    %3168 = vmatpush1.bf16.msra.mxu0 0
    %3169 = vmatprep.subr.bf16.mxu0 0
    %3170 = vmatpush1.bf16.msra.mxu0 0
    %3171 = vmatprep.subr.bf16.mxu0 0
    %3172 = vmatpush1.bf16.msra.mxu0 0
    %3173 = vmatprep.subr.bf16.mxu0 0
    %3174 = vmatpush1.bf16.msra.mxu0 0
    %3175 = vmatprep.subr.bf16.mxu0 0
    %3176 = vmatpush1.bf16.msra.mxu0 0
    %3177 = vmatprep.subr.bf16.mxu0 0
    %3178 = vmatpush1.bf16.msra.mxu0 0
    %3179 = vmatprep.subr.bf16.mxu0 0
    %3180 = vmatpush1.bf16.msra.mxu0 0
    %3181 = vmatprep.subr.bf16.mxu0 0
    %3182 = vmatpush1.bf16.msra.mxu0 0
    %3183 = vmatprep.subr.bf16.mxu0 0
    %3184 = vmatpush1.bf16.msra.mxu0 0
    %3185 = vmatprep.subr.bf16.mxu0 0
    %3186 = vmatpush1.bf16.msra.mxu0 0
    %3187 = vmatprep.subr.bf16.mxu0 0
    %3188 = vmatpush1.bf16.msra.mxu0 0
    %3189 = vmatprep.mubr.bf16.mxu0 0
    %3190 = vmatmul.mubr.bf16.gmra.mrb[0].mxu0 %v3131
    %v3191 = vpop.f32.mrb[0].mxu0
    %v3192 = vadd.f32 0.0, %v3191
    %v3193 = vpop.f32.mrb[0].mxu0
    %v3194 = vadd.f32 0.0, %v3193
    %v3195 = vpop.f32.mrb[0].mxu0
    %v3196 = vadd.f32 0.0, %v3195
    %v3197 = vpop.f32.mrb[0].mxu0
    %v3198 = vadd.f32 0.0, %v3197
    %3199 = vmatprep.mubr.bf16.mxu0 0
    %3200 = vmatmul.mubr.bf16.gmra.mrb[0].mxu0 %v3134
    %v3201 = vpop.f32.mrb[0].mxu0
    %v3202 = vadd.f32 0.0, %v3201
    %v3203 = vpop.f32.mrb[0].mxu0
    %v3204 = vadd.f32 0.0, %v3203
    %v3205 = vpop.f32.mrb[0].mxu0
    %v3206 = vadd.f32 0.0, %v3205
    %v3207 = vpop.f32.mrb[0].mxu0
    %v3208 = vadd.f32 0.0, %v3207
    %3209 = vmatprep.mubr.bf16.mxu0 0
    %3210 = vmatmul.mubr.bf16.gmra.mrb[0].mxu0 %v3137
    %v3211 = vpop.f32.mrb[0].mxu0
    %v3212 = vadd.f32 0.0, %v3211
    %v3213 = vpop.f32.mrb[0].mxu0
    %v3214 = vadd.f32 0.0, %v3213
    %v3215 = vpop.f32.mrb[0].mxu0
    %v3216 = vadd.f32 0.0, %v3215
    %v3217 = vpop.f32.mrb[0].mxu0
    %v3218 = vadd.f32 0.0, %v3217
    %3219 = vmatprep.mubr.bf16.mxu0 0
    %3220 = vmatmul.mubr.bf16.gmra.mrb[0].mxu0 %v3140
    %v3221 = vpop.f32.mrb[0].mxu0
    %v3222 = vadd.f32 0.0, %v3221
    %v3223 = vpop.f32.mrb[0].mxu0
    %v3224 = vadd.f32 0.0, %v3223
    %v3225 = vpop.f32.mrb[0].mxu0
    %v3226 = vadd.f32 0.0, %v3225
    %v3227 = vpop.f32.mrb[0].mxu0
    %v3228 = vadd.f32 0.0, %v3227
    %3229 = vmatprep.mubr.bf16.mxu0 0
    %3230 = vmatmul.mubr.bf16.gmra.mrb[0].mxu0 %v3143
    %v3231 = vpop.f32.mrb[0].mxu0
    %v3232 = vadd.f32 0.0, %v3231
    %v3233 = vpop.f32.mrb[0].mxu0
    %v3234 = vadd.f32 0.0, %v3233
    %v3235 = vpop.f32.mrb[0].mxu0
    %v3236 = vadd.f32 0.0, %v3235
    %v3237 = vpop.f32.mrb[0].mxu0
    %v3238 = vadd.f32 0.0, %v3237
    %3239 = vmatprep.mubr.bf16.mxu0 0
    %3240 = vmatmul.mubr.bf16.gmra.mrb[0].mxu0 %v3146
    %v3241 = vpop.f32.mrb[0].mxu0
    %v3242 = vadd.f32 0.0, %v3241
    %v3243 = vpop.f32.mrb[0].mxu0
    %v3244 = vadd.f32 0.0, %v3243
    %v3245 = vpop.f32.mrb[0].mxu0
    %v3246 = vadd.f32 0.0, %v3245
    %v3247 = vpop.f32.mrb[0].mxu0
    %v3248 = vadd.f32 0.0, %v3247
    %3249 = vmatprep.mubr.bf16.mxu0 0
    %3250 = vmatmul.mubr.bf16.gmra.mrb[0].mxu0 %v3149
    %v3251 = vpop.f32.mrb[0].mxu0
    %v3252 = vadd.f32 0.0, %v3251
    %v3253 = vpop.f32.mrb[0].mxu0
    %v3254 = vadd.f32 0.0, %v3253
    %v3255 = vpop.f32.mrb[0].mxu0
    %v3256 = vadd.f32 0.0, %v3255
    %v3257 = vpop.f32.mrb[0].mxu0
    %v3258 = vadd.f32 0.0, %v3257
    %3259 = vmatprep.mubr.bf16.mxu0 0
    %3260 = vmatmul.mubr.bf16.gmra.mrb[0].mxu0 %v3152
    %v3261 = vpop.f32.mrb[0].mxu0
    %v3262 = vadd.f32 0.0, %v3261
    %v3263 = vpop.f32.mrb[0].mxu0
    %v3264 = vadd.f32 0.0, %v3263
    %v3265 = vpop.f32.mrb[0].mxu0
    %v3266 = vadd.f32 0.0, %v3265
    %v3267 = vpop.f32.mrb[0].mxu0
    %v3268 = vadd.f32 0.0, %v3267
    %3269 = vmatprep.mubr.bf16.mxu0 0
    %3270 = vmatmul.mubr.bf16.gmra.mrb[0].mxu0 %v3155
    %v3271 = vpop.f32.mrb[0].mxu0
    %v3272 = vadd.f32 0.0, %v3271
    %v3273 = vpop.f32.mrb[0].mxu0
    %v3274 = vadd.f32 0.0, %v3273
    %v3275 = vpop.f32.mrb[0].mxu0
    %v3276 = vadd.f32 0.0, %v3275
    %v3277 = vpop.f32.mrb[0].mxu0
    %v3278 = vadd.f32 0.0, %v3277
    %3279 = vdwg.mxu0
    %3280 = vmatprep.subr.bf16.mxu0 %v3066
    %3281 = vmatpush1.bf16.msra.mxu0 %v3065
    %3282 = vmatprep.subr.bf16.mxu0 0
    %3283 = vmatpush1.bf16.msra.mxu0 0
    %3284 = vmatprep.subr.bf16.mxu0 0
    %3285 = vmatpush1.bf16.msra.mxu0 0
    %3286 = vmatprep.subr.bf16.mxu0 0
    %3287 = vmatpush1.bf16.msra.mxu0 0
    %3288 = vmatprep.subr.bf16.mxu0 0
    %3289 = vmatpush1.bf16.msra.mxu0 0
    %3290 = vmatprep.subr.bf16.mxu0 0
    %3291 = vmatpush1.bf16.msra.mxu0 0
    %3292 = vmatprep.subr.bf16.mxu0 0
    %3293 = vmatpush1.bf16.msra.mxu0 0
    %3294 = vmatprep.subr.bf16.mxu0 0
    %3295 = vmatpush1.bf16.msra.mxu0 0
    %3296 = vmatprep.subr.bf16.mxu0 0
    %3297 = vmatpush1.bf16.msra.mxu0 0
    %3298 = vmatprep.subr.bf16.mxu0 0
    %3299 = vmatpush1.bf16.msra.mxu0 0
    %3300 = vmatprep.subr.bf16.mxu0 0
    %3301 = vmatpush1.bf16.msra.mxu0 0
    %3302 = vmatprep.subr.bf16.mxu0 0
    %3303 = vmatpush1.bf16.msra.mxu0 0
    %3304 = vmatprep.subr.bf16.mxu0 0
    %3305 = vmatpush1.bf16.msra.mxu0 0
    %3306 = vmatprep.subr.bf16.mxu0 0
    %3307 = vmatpush1.bf16.msra.mxu0 0
    %3308 = vmatprep.subr.bf16.mxu0 0
    %3309 = vmatpush1.bf16.msra.mxu0 0
    %3310 = vmatprep.subr.bf16.mxu0 0
    %3311 = vmatpush1.bf16.msra.mxu0 0
    %3312 = vmatprep.mubr.bf16.mxu0 0
    %3313 = vmatmul.mubr.bf16.gmra.mrb[0].mxu0 %v3131
    %v3314 = vpop.f32.mrb[0].mxu0
    %v3315 = vadd.f32 0.0, %v3314
    %v3316 = vpop.f32.mrb[0].mxu0
    %v3317 = vadd.f32 0.0, %v3316
    %v3318 = vpop.f32.mrb[0].mxu0
    %v3319 = vadd.f32 0.0, %v3318
    %v3320 = vpop.f32.mrb[0].mxu0
    %v3321 = vadd.f32 0.0, %v3320
    %3322 = vmatprep.mubr.bf16.mxu0 0
    %3323 = vmatmul.mubr.bf16.gmra.mrb[0].mxu0 %v3134
    %v3324 = vpop.f32.mrb[0].mxu0
    %v3325 = vadd.f32 0.0, %v3324
    %v3326 = vpop.f32.mrb[0].mxu0
    %v3327 = vadd.f32 0.0, %v3326
    %v3328 = vpop.f32.mrb[0].mxu0
    %v3329 = vadd.f32 0.0, %v3328
    %v3330 = vpop.f32.mrb[0].mxu0
    %v3331 = vadd.f32 0.0, %v3330
    %3332 = vmatprep.mubr.bf16.mxu0 0
    %3333 = vmatmul.mubr.bf16.gmra.mrb[0].mxu0 %v3137
    %v3334 = vpop.f32.mrb[0].mxu0
    %v3335 = vadd.f32 0.0, %v3334
    %v3336 = vpop.f32.mrb[0].mxu0
    %v3337 = vadd.f32 0.0, %v3336
    %v3338 = vpop.f32.mrb[0].mxu0
    %v3339 = vadd.f32 0.0, %v3338
    %v3340 = vpop.f32.mrb[0].mxu0
    %v3341 = vadd.f32 0.0, %v3340
    %3342 = vmatprep.mubr.bf16.mxu0 0
    %3343 = vmatmul.mubr.bf16.gmra.mrb[0].mxu0 %v3140
    %v3344 = vpop.f32.mrb[0].mxu0
    %v3345 = vadd.f32 0.0, %v3344
    %v3346 = vpop.f32.mrb[0].mxu0
    %v3347 = vadd.f32 0.0, %v3346
    %v3348 = vpop.f32.mrb[0].mxu0
    %v3349 = vadd.f32 0.0, %v3348
    %v3350 = vpop.f32.mrb[0].mxu0
    %v3351 = vadd.f32 0.0, %v3350
    %3352 = vmatprep.mubr.bf16.mxu0 0
    %3353 = vmatmul.mubr.bf16.gmra.mrb[0].mxu0 %v3143
    %v3354 = vpop.f32.mrb[0].mxu0
    %v3355 = vadd.f32 0.0, %v3354
    %v3356 = vpop.f32.mrb[0].mxu0
    %v3357 = vadd.f32 0.0, %v3356
    %v3358 = vpop.f32.mrb[0].mxu0
    %v3359 = vadd.f32 0.0, %v3358
    %v3360 = vpop.f32.mrb[0].mxu0
    %v3361 = vadd.f32 0.0, %v3360
    %3362 = vmatprep.mubr.bf16.mxu0 0
    %3363 = vmatmul.mubr.bf16.gmra.mrb[0].mxu0 %v3146
    %v3364 = vpop.f32.mrb[0].mxu0
    %v3365 = vadd.f32 0.0, %v3364
    %v3366 = vpop.f32.mrb[0].mxu0
    %v3367 = vadd.f32 0.0, %v3366
    %v3368 = vpop.f32.mrb[0].mxu0
    %v3369 = vadd.f32 0.0, %v3368
    %v3370 = vpop.f32.mrb[0].mxu0
    %v3371 = vadd.f32 0.0, %v3370
    %3372 = vmatprep.mubr.bf16.mxu0 0
    %3373 = vmatmul.mubr.bf16.gmra.mrb[0].mxu0 %v3149
    %v3374 = vpop.f32.mrb[0].mxu0
    %v3375 = vadd.f32 0.0, %v3374
    %v3376 = vpop.f32.mrb[0].mxu0
    %v3377 = vadd.f32 0.0, %v3376
    %v3378 = vpop.f32.mrb[0].mxu0
    %v3379 = vadd.f32 0.0, %v3378
    %v3380 = vpop.f32.mrb[0].mxu0
    %v3381 = vadd.f32 0.0, %v3380
    %3382 = vmatprep.mubr.bf16.mxu0 0
    %3383 = vmatmul.mubr.bf16.gmra.mrb[0].mxu0 %v3152
    %v3384 = vpop.f32.mrb[0].mxu0
    %v3385 = vadd.f32 0.0, %v3384
    %v3386 = vpop.f32.mrb[0].mxu0
    %v3387 = vadd.f32 0.0, %v3386
    %v3388 = vpop.f32.mrb[0].mxu0
    %v3389 = vadd.f32 0.0, %v3388
    %v3390 = vpop.f32.mrb[0].mxu0
    %v3391 = vadd.f32 0.0, %v3390
    %3392 = vmatprep.mubr.bf16.mxu0 0
    %3393 = vmatmul.mubr.bf16.gmra.mrb[0].mxu0 %v3155
    %v3394 = vpop.f32.mrb[0].mxu0
    %v3395 = vadd.f32 0.0, %v3394
    %v3396 = vpop.f32.mrb[0].mxu0
    %v3397 = vadd.f32 0.0, %v3396
    %v3398 = vpop.f32.mrb[0].mxu0
    %v3399 = vadd.f32 0.0, %v3398
    %v3400 = vpop.f32.mrb[0].mxu0
    %v3401 = vadd.f32 0.0, %v3400
    %3402 = vdwg.mxu0
    %3403 = vrot.lane.b32.xlu0 %v3192, 17
    %v3404 = vpop.permute.xlu0 %3403
    %3405 = vrot.lane.b32.xlu0 %v3196, 17
    %v3406 = vpop.permute.xlu0 %3405
    %3407 = vrot.lane.b32.xlu0 %v3194, 17
    %v3408 = vpop.permute.xlu0 %3407
    %3409 = vrot.lane.b32.xlu0 %v3198, 17
    %v3410 = vpop.permute.xlu0 %3409
    %3411 = vrot.lane.b32.xlu0 %v3315, 17
    %v3412 = vpop.permute.xlu0 %3411
    %3413 = vrot.lane.b32.xlu0 %v3319, 17
    %v3414 = vpop.permute.xlu0 %3413
    %3415 = vrot.lane.b32.xlu0 %v3317, 17
    %v3416 = vpop.permute.xlu0 %3415
    %3417 = vrot.lane.b32.xlu0 %v3321, 17
    %v3418 = vpop.permute.xlu0 %3417
    %v3419 = vsel %vm1236, %v3412, %v3416
    %v3420 = vsel %vm1236, %v3414, %v3418
    %v3421 = vsel %vm1236, %v3408, %v3412
    %v3422 = vsel %vm1236, %v3410, %v3414
    %v3423 = vsel %vm1236, %v3404, %v3408
    %v3424 = vsel %vm1236, %v3406, %v3410
    %v3425 = vsel %vm1236, %v3416, %v3404
    %v3426 = vsel %vm1236, %v3418, %v3406
    %v3427 = vmul.f32 %v3425, %v1250
    %v3428 = vmul.f32 %v3423, %v1254
    %v3429 = vmul.f32 %v3421, %v1258
    %v3430 = vmul.f32 %v3419, %v1262
    %v3431 = vmul.f32 %v3426, %v1250
    %v3432 = vmul.f32 %v3424, %v1254
    %v3433 = vmul.f32 %v3422, %v1258
    %v3434 = vmul.f32 %v3420, %v1262
    %3435 = vrot.lane.b32.xlu0 %v3202, 16
    %v3436 = vpop.permute.xlu0 %3435
    %3437 = vrot.lane.b32.xlu0 %v3206, 16
    %v3438 = vpop.permute.xlu0 %3437
    %3439 = vrot.lane.b32.xlu0 %v3204, 16
    %v3440 = vpop.permute.xlu0 %3439
    %3441 = vrot.lane.b32.xlu0 %v3208, 16
    %v3442 = vpop.permute.xlu0 %3441
    %3443 = vrot.lane.b32.xlu0 %v3325, 16
    %v3444 = vpop.permute.xlu0 %3443
    %3445 = vrot.lane.b32.xlu0 %v3329, 16
    %v3446 = vpop.permute.xlu0 %3445
    %3447 = vrot.lane.b32.xlu0 %v3327, 16
    %v3448 = vpop.permute.xlu0 %3447
    %3449 = vrot.lane.b32.xlu0 %v3331, 16
    %v3450 = vpop.permute.xlu0 %3449
    %v3451 = vsel %vm1291, %v3444, %v3448
    %v3452 = vsel %vm1291, %v3446, %v3450
    %v3453 = vsel %vm1291, %v3440, %v3444
    %v3454 = vsel %vm1291, %v3442, %v3446
    %v3455 = vsel %vm1291, %v3436, %v3440
    %v3456 = vsel %vm1291, %v3438, %v3442
    %v3457 = vsel %vm1291, %v3448, %v3436
    %v3458 = vsel %vm1291, %v3450, %v3438
    %v3459 = vmul.f32 %v3457, %v1306
    %v3460 = vmul.f32 %v3455, %v1310
    %v3461 = vmul.f32 %v3453, %v1314
    %v3462 = vmul.f32 %v3451, %v1318
    %v3463 = vmul.f32 %v3458, %v1306
    %v3464 = vmul.f32 %v3456, %v1310
    %v3465 = vmul.f32 %v3454, %v1314
    %v3466 = vmul.f32 %v3452, %v1318
    %v3467 = vadd.f32 %v3427, %v3459
    %v3468 = vadd.f32 %v3428, %v3460
    %v3469 = vadd.f32 %v3429, %v3461
    %v3470 = vadd.f32 %v3430, %v3462
    %v3471 = vadd.f32 %v3431, %v3463
    %v3472 = vadd.f32 %v3432, %v3464
    %v3473 = vadd.f32 %v3433, %v3465
    %v3474 = vadd.f32 %v3434, %v3466
    %3475 = vrot.lane.b32.xlu0 %v3212, 15
    %v3476 = vpop.permute.xlu0 %3475
    %3477 = vrot.lane.b32.xlu0 %v3216, 15
    %v3478 = vpop.permute.xlu0 %3477
    %3479 = vrot.lane.b32.xlu0 %v3214, 15
    %v3480 = vpop.permute.xlu0 %3479
    %3481 = vrot.lane.b32.xlu0 %v3218, 15
    %v3482 = vpop.permute.xlu0 %3481
    %3483 = vrot.lane.b32.xlu0 %v3335, 15
    %v3484 = vpop.permute.xlu0 %3483
    %3485 = vrot.lane.b32.xlu0 %v3339, 15
    %v3486 = vpop.permute.xlu0 %3485
    %3487 = vrot.lane.b32.xlu0 %v3337, 15
    %v3488 = vpop.permute.xlu0 %3487
    %3489 = vrot.lane.b32.xlu0 %v3341, 15
    %v3490 = vpop.permute.xlu0 %3489
    %v3491 = vsel %vm1355, %v3484, %v3488
    %v3492 = vsel %vm1355, %v3486, %v3490
    %v3493 = vsel %vm1355, %v3480, %v3484
    %v3494 = vsel %vm1355, %v3482, %v3486
    %v3495 = vsel %vm1355, %v3476, %v3480
    %v3496 = vsel %vm1355, %v3478, %v3482
    %v3497 = vsel %vm1355, %v3488, %v3476
    %v3498 = vsel %vm1355, %v3490, %v3478
    %v3499 = vmul.f32 %v3497, %v1370
    %v3500 = vmul.f32 %v3495, %v1374
    %v3501 = vmul.f32 %v3493, %v1378
    %v3502 = vmul.f32 %v3491, %v1382
    %v3503 = vmul.f32 %v3498, %v1370
    %v3504 = vmul.f32 %v3496, %v1374
    %v3505 = vmul.f32 %v3494, %v1378
    %v3506 = vmul.f32 %v3492, %v1382
    %v3507 = vadd.f32 %v3467, %v3499
    %v3508 = vadd.f32 %v3468, %v3500
    %v3509 = vadd.f32 %v3469, %v3501
    %v3510 = vadd.f32 %v3470, %v3502
    %v3511 = vadd.f32 %v3471, %v3503
    %v3512 = vadd.f32 %v3472, %v3504
    %v3513 = vadd.f32 %v3473, %v3505
    %v3514 = vadd.f32 %v3474, %v3506
    %3515 = vrot.lane.b32.xlu0 %v3222, 1
    %v3516 = vpop.permute.xlu0 %3515
    %3517 = vrot.lane.b32.xlu0 %v3226, 1
    %v3518 = vpop.permute.xlu0 %3517
    %3519 = vrot.lane.b32.xlu0 %v3224, 1
    %v3520 = vpop.permute.xlu0 %3519
    %3521 = vrot.lane.b32.xlu0 %v3228, 1
    %v3522 = vpop.permute.xlu0 %3521
    %3523 = vrot.lane.b32.xlu0 %v3345, 1
    %v3524 = vpop.permute.xlu0 %3523
    %3525 = vrot.lane.b32.xlu0 %v3349, 1
    %v3526 = vpop.permute.xlu0 %3525
    %3527 = vrot.lane.b32.xlu0 %v3347, 1
    %v3528 = vpop.permute.xlu0 %3527
    %3529 = vrot.lane.b32.xlu0 %v3351, 1
    %v3530 = vpop.permute.xlu0 %3529
    %v3531 = vsel %vm1419, %v3524, %v3528
    %v3532 = vsel %vm1419, %v3526, %v3530
    %v3533 = vsel %vm1419, %v3520, %v3524
    %v3534 = vsel %vm1419, %v3522, %v3526
    %v3535 = vsel %vm1419, %v3516, %v3520
    %v3536 = vsel %vm1419, %v3518, %v3522
    %v3537 = vsel %vm1419, %v3528, %v3516
    %v3538 = vsel %vm1419, %v3530, %v3518
    %v3539 = vmul.f32 %v3537, %v1434
    %v3540 = vmul.f32 %v3535, %v1438
    %v3541 = vmul.f32 %v3533, %v1442
    %v3542 = vmul.f32 %v3531, %v1446
    %v3543 = vmul.f32 %v3538, %v1434
    %v3544 = vmul.f32 %v3536, %v1438
    %v3545 = vmul.f32 %v3534, %v1442
    %v3546 = vmul.f32 %v3532, %v1446
    %v3547 = vadd.f32 %v3507, %v3539
    %v3548 = vadd.f32 %v3508, %v3540
    %v3549 = vadd.f32 %v3509, %v3541
    %v3550 = vadd.f32 %v3510, %v3542
    %v3551 = vadd.f32 %v3511, %v3543
    %v3552 = vadd.f32 %v3512, %v3544
    %v3553 = vadd.f32 %v3513, %v3545
    %v3554 = vadd.f32 %v3514, %v3546
    %v3555 = vmul.f32 %v3232, %v1473
    %v3556 = vmul.f32 %v3234, %v1477
    %v3557 = vmul.f32 %v3355, %v1481
    %v3558 = vmul.f32 %v3357, %v1485
    %v3559 = vmul.f32 %v3236, %v1473
    %v3560 = vmul.f32 %v3238, %v1477
    %v3561 = vmul.f32 %v3359, %v1481
    %v3562 = vmul.f32 %v3361, %v1485
    %v3563 = vadd.f32 %v3547, %v3555
    %v3564 = vadd.f32 %v3548, %v3556
    %v3565 = vadd.f32 %v3549, %v3557
    %v3566 = vadd.f32 %v3550, %v3558
    %v3567 = vadd.f32 %v3551, %v3559
    %v3568 = vadd.f32 %v3552, %v3560
    %v3569 = vadd.f32 %v3553, %v3561
    %v3570 = vadd.f32 %v3554, %v3562
    %3571 = vrot.lane.b32.xlu0 %v3242, 127
    %v3572 = vpop.permute.xlu0 %3571
    %3573 = vrot.lane.b32.xlu0 %v3246, 127
    %v3574 = vpop.permute.xlu0 %3573
    %3575 = vrot.lane.b32.xlu0 %v3244, 127
    %v3576 = vpop.permute.xlu0 %3575
    %3577 = vrot.lane.b32.xlu0 %v3248, 127
    %v3578 = vpop.permute.xlu0 %3577
    %3579 = vrot.lane.b32.xlu0 %v3365, 127
    %v3580 = vpop.permute.xlu0 %3579
    %3581 = vrot.lane.b32.xlu0 %v3369, 127
    %v3582 = vpop.permute.xlu0 %3581
    %3583 = vrot.lane.b32.xlu0 %v3367, 127
    %v3584 = vpop.permute.xlu0 %3583
    %3585 = vrot.lane.b32.xlu0 %v3371, 127
    %v3586 = vpop.permute.xlu0 %3585
    %v3587 = vsel %vm1522, %v3580, %v3584
    %v3588 = vsel %vm1522, %v3582, %v3586
    %v3589 = vsel %vm1522, %v3576, %v3580
    %v3590 = vsel %vm1522, %v3578, %v3582
    %v3591 = vsel %vm1522, %v3572, %v3576
    %v3592 = vsel %vm1522, %v3574, %v3578
    %v3593 = vsel %vm1522, %v3584, %v3572
    %v3594 = vsel %vm1522, %v3586, %v3574
    %v3595 = vmul.f32 %v3591, %v1537
    %v3596 = vmul.f32 %v3589, %v1541
    %v3597 = vmul.f32 %v3587, %v1545
    %v3598 = vmul.f32 %v3593, %v1549
    %v3599 = vmul.f32 %v3592, %v1537
    %v3600 = vmul.f32 %v3590, %v1541
    %v3601 = vmul.f32 %v3588, %v1545
    %v3602 = vmul.f32 %v3594, %v1549
    %v3603 = vadd.f32 %v3563, %v3595
    %v3604 = vadd.f32 %v3564, %v3596
    %v3605 = vadd.f32 %v3565, %v3597
    %v3606 = vadd.f32 %v3566, %v3598
    %v3607 = vadd.f32 %v3567, %v3599
    %v3608 = vadd.f32 %v3568, %v3600
    %v3609 = vadd.f32 %v3569, %v3601
    %v3610 = vadd.f32 %v3570, %v3602
    %3611 = vrot.lane.b32.xlu0 %v3252, 113
    %v3612 = vpop.permute.xlu0 %3611
    %3613 = vrot.lane.b32.xlu0 %v3256, 113
    %v3614 = vpop.permute.xlu0 %3613
    %3615 = vrot.lane.b32.xlu0 %v3254, 113
    %v3616 = vpop.permute.xlu0 %3615
    %3617 = vrot.lane.b32.xlu0 %v3258, 113
    %v3618 = vpop.permute.xlu0 %3617
    %3619 = vrot.lane.b32.xlu0 %v3375, 113
    %v3620 = vpop.permute.xlu0 %3619
    %3621 = vrot.lane.b32.xlu0 %v3379, 113
    %v3622 = vpop.permute.xlu0 %3621
    %3623 = vrot.lane.b32.xlu0 %v3377, 113
    %v3624 = vpop.permute.xlu0 %3623
    %3625 = vrot.lane.b32.xlu0 %v3381, 113
    %v3626 = vpop.permute.xlu0 %3625
    %v3627 = vsel %vm1586, %v3620, %v3624
    %v3628 = vsel %vm1586, %v3622, %v3626
    %v3629 = vsel %vm1586, %v3616, %v3620
    %v3630 = vsel %vm1586, %v3618, %v3622
    %v3631 = vsel %vm1586, %v3612, %v3616
    %v3632 = vsel %vm1586, %v3614, %v3618
    %v3633 = vsel %vm1586, %v3624, %v3612
    %v3634 = vsel %vm1586, %v3626, %v3614
    %v3635 = vmul.f32 %v3631, %v1601
    %v3636 = vmul.f32 %v3629, %v1605
    %v3637 = vmul.f32 %v3627, %v1609
    %v3638 = vmul.f32 %v3633, %v1613
    %v3639 = vmul.f32 %v3632, %v1601
    %v3640 = vmul.f32 %v3630, %v1605
    %v3641 = vmul.f32 %v3628, %v1609
    %v3642 = vmul.f32 %v3634, %v1613
    %v3643 = vadd.f32 %v3603, %v3635
    %v3644 = vadd.f32 %v3604, %v3636
    %v3645 = vadd.f32 %v3605, %v3637
    %v3646 = vadd.f32 %v3606, %v3638
    %v3647 = vadd.f32 %v3607, %v3639
    %v3648 = vadd.f32 %v3608, %v3640
    %v3649 = vadd.f32 %v3609, %v3641
    %v3650 = vadd.f32 %v3610, %v3642
    %3651 = vrot.lane.b32.xlu0 %v3262, 112
    %v3652 = vpop.permute.xlu0 %3651
    %3653 = vrot.lane.b32.xlu0 %v3266, 112
    %v3654 = vpop.permute.xlu0 %3653
    %3655 = vrot.lane.b32.xlu0 %v3264, 112
    %v3656 = vpop.permute.xlu0 %3655
    %3657 = vrot.lane.b32.xlu0 %v3268, 112
    %v3658 = vpop.permute.xlu0 %3657
    %3659 = vrot.lane.b32.xlu0 %v3385, 112
    %v3660 = vpop.permute.xlu0 %3659
    %3661 = vrot.lane.b32.xlu0 %v3389, 112
    %v3662 = vpop.permute.xlu0 %3661
    %3663 = vrot.lane.b32.xlu0 %v3387, 112
    %v3664 = vpop.permute.xlu0 %3663
    %3665 = vrot.lane.b32.xlu0 %v3391, 112
    %v3666 = vpop.permute.xlu0 %3665
    %v3667 = vsel %vm1650, %v3660, %v3664
    %v3668 = vsel %vm1650, %v3662, %v3666
    %v3669 = vsel %vm1650, %v3656, %v3660
    %v3670 = vsel %vm1650, %v3658, %v3662
    %v3671 = vsel %vm1650, %v3652, %v3656
    %v3672 = vsel %vm1650, %v3654, %v3658
    %v3673 = vsel %vm1650, %v3664, %v3652
    %v3674 = vsel %vm1650, %v3666, %v3654
    %v3675 = vmul.f32 %v3671, %v1665
    %v3676 = vmul.f32 %v3669, %v1669
    %v3677 = vmul.f32 %v3667, %v1673
    %v3678 = vmul.f32 %v3673, %v1677
    %v3679 = vmul.f32 %v3672, %v1665
    %v3680 = vmul.f32 %v3670, %v1669
    %v3681 = vmul.f32 %v3668, %v1673
    %v3682 = vmul.f32 %v3674, %v1677
    %v3683 = vadd.f32 %v3643, %v3675
    %v3684 = vadd.f32 %v3644, %v3676
    %v3685 = vadd.f32 %v3645, %v3677
    %v3686 = vadd.f32 %v3646, %v3678
    %v3687 = vadd.f32 %v3647, %v3679
    %v3688 = vadd.f32 %v3648, %v3680
    %v3689 = vadd.f32 %v3649, %v3681
    %v3690 = vadd.f32 %v3650, %v3682
    %3691 = vrot.lane.b32.xlu0 %v3272, 111
    %v3692 = vpop.permute.xlu0 %3691
    %3693 = vrot.lane.b32.xlu0 %v3276, 111
    %v3694 = vpop.permute.xlu0 %3693
    %3695 = vrot.lane.b32.xlu0 %v3274, 111
    %v3696 = vpop.permute.xlu0 %3695
    %3697 = vrot.lane.b32.xlu0 %v3278, 111
    %v3698 = vpop.permute.xlu0 %3697
    %3699 = vrot.lane.b32.xlu0 %v3395, 111
    %v3700 = vpop.permute.xlu0 %3699
    %3701 = vrot.lane.b32.xlu0 %v3399, 111
    %v3702 = vpop.permute.xlu0 %3701
    %3703 = vrot.lane.b32.xlu0 %v3397, 111
    %v3704 = vpop.permute.xlu0 %3703
    %3705 = vrot.lane.b32.xlu0 %v3401, 111
    %v3706 = vpop.permute.xlu0 %3705
    %v3707 = vsel %vm1714, %v3700, %v3704
    %v3708 = vsel %vm1714, %v3702, %v3706
    %v3709 = vsel %vm1714, %v3696, %v3700
    %v3710 = vsel %vm1714, %v3698, %v3702
    %v3711 = vsel %vm1714, %v3692, %v3696
    %v3712 = vsel %vm1714, %v3694, %v3698
    %v3713 = vsel %vm1714, %v3704, %v3692
    %v3714 = vsel %vm1714, %v3706, %v3694
    %v3715 = vmul.f32 %v3711, %v1729
    %v3716 = vmul.f32 %v3709, %v1733
    %v3717 = vmul.f32 %v3707, %v1737
    %v3718 = vmul.f32 %v3713, %v1741
    %v3719 = vmul.f32 %v3712, %v1729
    %v3720 = vmul.f32 %v3710, %v1733
    %v3721 = vmul.f32 %v3708, %v1737
    %v3722 = vmul.f32 %v3714, %v1741
    %v3723 = vadd.f32 %v3683, %v3715
    %v3724 = vadd.f32 %v3684, %v3716
    %v3725 = vadd.f32 %v3685, %v3717
    %v3726 = vadd.f32 %v3686, %v3718
    %v3727 = vadd.f32 %v3687, %v3719
    %v3728 = vadd.f32 %v3688, %v3720
    %v3729 = vadd.f32 %v3689, %v3721
    %v3730 = vadd.f32 %v3690, %v3722
    %v3731 = vld [vmem:[%s20] sm:$0xff]
    %v3732 = vld [vmem:[%s20 + $0x8] sm:$0xff]
    %3734 = vset.pattern.permute.xlu0 0
    %3735 = vperm.xlu0 %3734, %v3731
    %v3736 = vpop.permute.xlu0 %3735
    %3739 = vset.pattern.permute.xlu0 0
    %3740 = vperm.xlu0 %3739, %v3732
    %v3741 = vpop.permute.xlu0 %3740
    %v3743 = vadd.f32 %v3723, %v3736
    %v3744 = vadd.f32 %v3724, %v3736
    %v3745 = vadd.f32 %v3725, %v3736
    %v3746 = vadd.f32 %v3726, %v3736
    %v3747 = vadd.f32 %v3727, %v3741
    %v3748 = vadd.f32 %v3728, %v3741
    %v3749 = vadd.f32 %v3729, %v3741
    %v3750 = vadd.f32 %v3730, %v3741
    %v3751 = vmax.f32 %v3743, 0.0
    %v3752 = vmax.f32 %v3744, 0.0
    %v3753 = vmax.f32 %v3745, 0.0
    %v3754 = vmax.f32 %v3746, 0.0
    %v3755 = vmax.f32 %v3747, 0.0
    %v3756 = vmax.f32 %v3748, 0.0
    %v3757 = vmax.f32 %v3749, 0.0
    %v3758 = vmax.f32 %v3750, 0.0
    %v3759 = vpack.c.bf16 %v3755, %v3751
    %v3760 = vpack.c.bf16 %v3756, %v3752
    %v3761 = vpack.c.bf16 %v3757, %v3753
    %v3762 = vpack.c.bf16 %v3758, %v3754
    %3763 = vmatprep.subr.bf16.mxu0 0
    %3764 = vmatpush1.bf16.msra.mxu0 %v1890
    %3765 = vmatprep.subr.bf16.mxu0 0
    %3766 = vmatpush1.bf16.msra.mxu0 %v1891
    %3767 = vmatprep.subr.bf16.mxu0 0
    %3768 = vmatpush1.bf16.msra.mxu0 %v1892
    %3769 = vmatprep.subr.bf16.mxu0 0
    %3770 = vmatpush1.bf16.msra.mxu0 %v1893
    %3771 = vmatprep.subr.bf16.mxu0 0
    %3772 = vmatpush1.bf16.msra.mxu0 %v1894
    %3773 = vmatprep.subr.bf16.mxu0 0
    %3774 = vmatpush1.bf16.msra.mxu0 %v1895
    %3775 = vmatprep.subr.bf16.mxu0 0
    %3776 = vmatpush1.bf16.msra.mxu0 %v1896
    %3777 = vmatprep.subr.bf16.mxu0 0
    %3778 = vmatpush1.bf16.msra.mxu0 %v1897
    %3779 = vmatprep.subr.bf16.mxu0 0
    %3780 = vmatpush1.bf16.msra.mxu0 %v1898
    %3781 = vmatprep.subr.bf16.mxu0 0
    %3782 = vmatpush1.bf16.msra.mxu0 %v1899
    %3783 = vmatprep.subr.bf16.mxu0 0
    %3784 = vmatpush1.bf16.msra.mxu0 %v1900
    %3785 = vmatprep.subr.bf16.mxu0 0
    %3786 = vmatpush1.bf16.msra.mxu0 %v1901
    %3787 = vmatprep.subr.bf16.mxu0 0
    %3788 = vmatpush1.bf16.msra.mxu0 %v1902
    %3789 = vmatprep.subr.bf16.mxu0 0
    %3790 = vmatpush1.bf16.msra.mxu0 %v1903
    %3791 = vmatprep.subr.bf16.mxu0 0
    %3792 = vmatpush1.bf16.msra.mxu0 %v1904
    %3793 = vmatprep.subr.bf16.mxu0 0
    %3794 = vmatpush1.bf16.msra.mxu0 %v1905
    %3795 = vmatprep.mubr.bf16.mxu0 %v3760
    %3796 = vmatmul.mubr.bf16.gmra.mrb[0].mxu0 %v3759
    %v3797 = vpop.f32.mrb[0].mxu0
    %v3798 = vadd.f32 0.0, %v3797
    %v3799 = vpop.f32.mrb[0].mxu0
    %v3800 = vpop.f32.mrb[0].mxu0
    %v3801 = vadd.f32 0.0, %v3800
    %v3802 = vpop.f32.mrb[0].mxu0
    %3803 = vdwg.mxu0
    %v3804 = vpack.c.bf16 %v3801, %v3798
    %3805 = vmatprep.subr.bf16.mxu0 0
    %3806 = vmatpush1.bf16.msra.mxu0 %v1890
    %3807 = vmatprep.subr.bf16.mxu0 0
    %3808 = vmatpush1.bf16.msra.mxu0 %v1891
    %3809 = vmatprep.subr.bf16.mxu0 0
    %3810 = vmatpush1.bf16.msra.mxu0 %v1892
    %3811 = vmatprep.subr.bf16.mxu0 0
    %3812 = vmatpush1.bf16.msra.mxu0 %v1893
    %3813 = vmatprep.subr.bf16.mxu0 0
    %3814 = vmatpush1.bf16.msra.mxu0 %v1894
    %3815 = vmatprep.subr.bf16.mxu0 0
    %3816 = vmatpush1.bf16.msra.mxu0 %v1895
    %3817 = vmatprep.subr.bf16.mxu0 0
    %3818 = vmatpush1.bf16.msra.mxu0 %v1896
    %3819 = vmatprep.subr.bf16.mxu0 0
    %3820 = vmatpush1.bf16.msra.mxu0 %v1897
    %3821 = vmatprep.subr.bf16.mxu0 0
    %3822 = vmatpush1.bf16.msra.mxu0 %v1898
    %3823 = vmatprep.subr.bf16.mxu0 0
    %3824 = vmatpush1.bf16.msra.mxu0 %v1899
    %3825 = vmatprep.subr.bf16.mxu0 0
    %3826 = vmatpush1.bf16.msra.mxu0 %v1900
    %3827 = vmatprep.subr.bf16.mxu0 0
    %3828 = vmatpush1.bf16.msra.mxu0 %v1901
    %3829 = vmatprep.subr.bf16.mxu0 0
    %3830 = vmatpush1.bf16.msra.mxu0 %v1902
    %3831 = vmatprep.subr.bf16.mxu0 0
    %3832 = vmatpush1.bf16.msra.mxu0 %v1903
    %3833 = vmatprep.subr.bf16.mxu0 0
    %3834 = vmatpush1.bf16.msra.mxu0 %v1904
    %3835 = vmatprep.subr.bf16.mxu0 0
    %3836 = vmatpush1.bf16.msra.mxu0 %v1905
    %3837 = vmatprep.mubr.bf16.mxu0 %v3762
    %3838 = vmatmul.mubr.bf16.gmra.mrb[0].mxu0 %v3761
    %v3839 = vpop.f32.mrb[0].mxu0
    %v3840 = vadd.f32 0.0, %v3839
    %v3841 = vpop.f32.mrb[0].mxu0
    %v3842 = vpop.f32.mrb[0].mxu0
    %v3843 = vadd.f32 0.0, %v3842
    %v3844 = vpop.f32.mrb[0].mxu0
    %3845 = vdwg.mxu0
    %v3846 = vpack.c.bf16 %v3843, %v3840
    %3848 = vrot.lane.b32.xlu0 %v3846, 64
    %v3849 = vpop.permute.xlu0 %3848
    %v3852 = vsel %vm205, %v3804, %v3849
    %v3854 = vld [vmem:[%s21] sm:$0xf]
    %v3855 = vld [vmem:[%s21 + $0x4] sm:$0xf]
    %v3856 = vld [vmem:[%s21 + $0x8] sm:$0xf]
    %v3857 = vld [vmem:[%s21 + $0xc] sm:$0xf]
    %v3858 = vld [vmem:[%s21 + $0x10] sm:$0xf]
    %v3859 = vld [vmem:[%s21 + $0x14] sm:$0xf]
    %v3860 = vld [vmem:[%s21 + $0x18] sm:$0xf]
    %v3861 = vld [vmem:[%s21 + $0x1c] sm:$0xf]
    %v3862 = vld [vmem:[%s21 + $0x20] sm:$0xf]
    %v3863 = vld [vmem:[%s21 + $0x24] sm:$0xf]
    %v3864 = vld [vmem:[%s21 + $0x28] sm:$0xf]
    %v3865 = vld [vmem:[%s21 + $0x2c] sm:$0xf]
    %v3866 = vld [vmem:[%s21 + $0x30] sm:$0xf]
    %v3867 = vld [vmem:[%s21 + $0x34] sm:$0xf]
    %v3868 = vld [vmem:[%s21 + $0x38] sm:$0xf]
    %v3869 = vld [vmem:[%s21 + $0x3c] sm:$0xf]
    %v3870 = vld [vmem:[%s21 + $0x40] sm:$0xf]
    %v3871 = vld [vmem:[%s21 + $0x44] sm:$0xf]
    %v3890 = vunpack.c.l.b16 %v3854
    %v3891 = vunpack.c.l.b16 %v3855
    %v3892 = vunpack.c.l.b16 %v3856
    %v3893 = vunpack.c.l.b16 %v3857
    %v3894 = vunpack.c.l.b16 %v3858
    %v3895 = vunpack.c.l.b16 %v3859
    %v3896 = vunpack.c.l.b16 %v3860
    %v3897 = vunpack.c.l.b16 %v3861
    %v3898 = vunpack.c.l.b16 %v3862
    %v3899 = vunpack.c.l.b16 %v3863
    %v3900 = vunpack.c.l.b16 %v3864
    %v3901 = vunpack.c.l.b16 %v3865
    %v3902 = vunpack.c.l.b16 %v3866
    %v3903 = vunpack.c.l.b16 %v3867
    %v3904 = vunpack.c.l.b16 %v3868
    %v3905 = vunpack.c.l.b16 %v3869
    %v3906 = vunpack.c.l.b16 %v3870
    %v3907 = vunpack.c.l.b16 %v3871
    %v3908 = vpack.c.b16 %v3891, %v3890
    %v3909 = vpack.c.b16 %v3893, %v3892
    %v3910 = vpack.c.b16 %v3895, %v3894
    %v3911 = vpack.c.b16 %v3897, %v3896
    %v3912 = vpack.c.b16 %v3899, %v3898
    %v3913 = vpack.c.b16 %v3901, %v3900
    %v3914 = vpack.c.b16 %v3903, %v3902
    %v3915 = vpack.c.b16 %v3905, %v3904
    %v3916 = vpack.c.b16 %v3907, %v3906
    %v3918 = vsel %vm584, %v3908, 0
    %v3921 = vsel %vm584, %v3909, 0
    %v3924 = vsel %vm584, %v3910, 0
    %v3927 = vsel %vm584, %v3911, 0
    %v3930 = vsel %vm584, %v3912, 0
    %v3933 = vsel %vm584, %v3913, 0
    %v3936 = vsel %vm584, %v3914, 0
    %v3939 = vsel %vm584, %v3915, 0
    %v3942 = vsel %vm584, %v3916, 0
    %3944 = vmatprep.subr.bf16.mxu0 0
    %3945 = vmatpush1.bf16.msra.mxu0 %v3852
    %3946 = vmatprep.subr.bf16.mxu0 0
    %3947 = vmatpush1.bf16.msra.mxu0 0
    %3948 = vmatprep.subr.bf16.mxu0 0
    %3949 = vmatpush1.bf16.msra.mxu0 0
    %3950 = vmatprep.subr.bf16.mxu0 0
    %3951 = vmatpush1.bf16.msra.mxu0 0
    %3952 = vmatprep.subr.bf16.mxu0 0
    %3953 = vmatpush1.bf16.msra.mxu0 0
    %3954 = vmatprep.subr.bf16.mxu0 0
    %3955 = vmatpush1.bf16.msra.mxu0 0
    %3956 = vmatprep.subr.bf16.mxu0 0
    %3957 = vmatpush1.bf16.msra.mxu0 0
    %3958 = vmatprep.subr.bf16.mxu0 0
    %3959 = vmatpush1.bf16.msra.mxu0 0
    %3960 = vmatprep.subr.bf16.mxu0 0
    %3961 = vmatpush1.bf16.msra.mxu0 0
    %3962 = vmatprep.subr.bf16.mxu0 0
    %3963 = vmatpush1.bf16.msra.mxu0 0
    %3964 = vmatprep.subr.bf16.mxu0 0
    %3965 = vmatpush1.bf16.msra.mxu0 0
    %3966 = vmatprep.subr.bf16.mxu0 0
    %3967 = vmatpush1.bf16.msra.mxu0 0
    %3968 = vmatprep.subr.bf16.mxu0 0
    %3969 = vmatpush1.bf16.msra.mxu0 0
    %3970 = vmatprep.subr.bf16.mxu0 0
    %3971 = vmatpush1.bf16.msra.mxu0 0
    %3972 = vmatprep.subr.bf16.mxu0 0
    %3973 = vmatpush1.bf16.msra.mxu0 0
    %3974 = vmatprep.subr.bf16.mxu0 0
    %3975 = vmatpush1.bf16.msra.mxu0 0
    %3976 = vmatprep.mubr.bf16.mxu0 0
    %3977 = vmatmul.mubr.bf16.gmra.mrb[0].mxu0 %v3918
    %v3978 = vpop.f32.mrb[0].mxu0
    %v3979 = vadd.f32 0.0, %v3978
    %v3980 = vpop.f32.mrb[0].mxu0
    %v3981 = vpop.f32.mrb[0].mxu0
    %v3982 = vadd.f32 0.0, %v3981
    %v3983 = vpop.f32.mrb[0].mxu0
    %3984 = vmatprep.mubr.bf16.mxu0 0
    %3985 = vmatmul.mubr.bf16.gmra.mrb[0].mxu0 %v3921
    %v3986 = vpop.f32.mrb[0].mxu0
    %v3987 = vadd.f32 0.0, %v3986
    %v3988 = vpop.f32.mrb[0].mxu0
    %v3989 = vpop.f32.mrb[0].mxu0
    %v3990 = vadd.f32 0.0, %v3989
    %v3991 = vpop.f32.mrb[0].mxu0
    %3992 = vmatprep.mubr.bf16.mxu0 0
    %3993 = vmatmul.mubr.bf16.gmra.mrb[0].mxu0 %v3924
    %v3994 = vpop.f32.mrb[0].mxu0
    %v3995 = vadd.f32 0.0, %v3994
    %v3996 = vpop.f32.mrb[0].mxu0
    %v3997 = vpop.f32.mrb[0].mxu0
    %v3998 = vadd.f32 0.0, %v3997
    %v3999 = vpop.f32.mrb[0].mxu0
    %4000 = vmatprep.mubr.bf16.mxu0 0
    %4001 = vmatmul.mubr.bf16.gmra.mrb[0].mxu0 %v3927
    %v4002 = vpop.f32.mrb[0].mxu0
    %v4003 = vadd.f32 0.0, %v4002
    %v4004 = vpop.f32.mrb[0].mxu0
    %v4005 = vpop.f32.mrb[0].mxu0
    %v4006 = vadd.f32 0.0, %v4005
    %v4007 = vpop.f32.mrb[0].mxu0
    %4008 = vmatprep.mubr.bf16.mxu0 0
    %4009 = vmatmul.mubr.bf16.gmra.mrb[0].mxu0 %v3930
    %v4010 = vpop.f32.mrb[0].mxu0
    %v4011 = vadd.f32 0.0, %v4010
    %v4012 = vpop.f32.mrb[0].mxu0
    %v4013 = vpop.f32.mrb[0].mxu0
    %v4014 = vadd.f32 0.0, %v4013
    %v4015 = vpop.f32.mrb[0].mxu0
    %4016 = vmatprep.mubr.bf16.mxu0 0
    %4017 = vmatmul.mubr.bf16.gmra.mrb[0].mxu0 %v3933
    %v4018 = vpop.f32.mrb[0].mxu0
    %v4019 = vadd.f32 0.0, %v4018
    %v4020 = vpop.f32.mrb[0].mxu0
    %v4021 = vpop.f32.mrb[0].mxu0
    %v4022 = vadd.f32 0.0, %v4021
    %v4023 = vpop.f32.mrb[0].mxu0
    %4024 = vmatprep.mubr.bf16.mxu0 0
    %4025 = vmatmul.mubr.bf16.gmra.mrb[0].mxu0 %v3936
    %v4026 = vpop.f32.mrb[0].mxu0
    %v4027 = vadd.f32 0.0, %v4026
    %v4028 = vpop.f32.mrb[0].mxu0
    %v4029 = vpop.f32.mrb[0].mxu0
    %v4030 = vadd.f32 0.0, %v4029
    %v4031 = vpop.f32.mrb[0].mxu0
    %4032 = vmatprep.mubr.bf16.mxu0 0
    %4033 = vmatmul.mubr.bf16.gmra.mrb[0].mxu0 %v3939
    %v4034 = vpop.f32.mrb[0].mxu0
    %v4035 = vadd.f32 0.0, %v4034
    %v4036 = vpop.f32.mrb[0].mxu0
    %v4037 = vpop.f32.mrb[0].mxu0
    %v4038 = vadd.f32 0.0, %v4037
    %v4039 = vpop.f32.mrb[0].mxu0
    %4040 = vmatprep.mubr.bf16.mxu0 0
    %4041 = vmatmul.mubr.bf16.gmra.mrb[0].mxu0 %v3942
    %v4042 = vpop.f32.mrb[0].mxu0
    %v4043 = vadd.f32 0.0, %v4042
    %v4044 = vpop.f32.mrb[0].mxu0
    %v4045 = vpop.f32.mrb[0].mxu0
    %v4046 = vadd.f32 0.0, %v4045
    %v4047 = vpop.f32.mrb[0].mxu0
    %4048 = vdwg.mxu0
    %4049 = vrot.lane.b32.xlu0 %v3979, 45
    %v4050 = vpop.permute.xlu0 %4049
    %4051 = vrot.lane.b32.xlu0 %v3982, 45
    %v4052 = vpop.permute.xlu0 %4051
    %v4053 = vld [vmem:[%s5] sm:$0x1]
    %v4055 = vlaneseq
    %v4056 = vshrl.u32 %v4055, 7
    %v4057 = vsub.s32 0, %v4056
    %v4058 = vrot.slane %v4053, %v4057
    %v4060 = vmul.f32 %v4050, %v4058
    %v4061 = vmul.f32 %v4052, %v4058
    %4062 = vrot.lane.b32.xlu0 %v3987, 40
    %v4063 = vpop.permute.xlu0 %4062
    %4064 = vrot.lane.b32.xlu0 %v3990, 40
    %v4065 = vpop.permute.xlu0 %4064
    %s4066 = scalar_lea.vmem %s5, 1
    %v4067 = vld [vmem:[%s4066] sm:$0x1]
    %v4069 = vlaneseq
    %v4070 = vshrl.u32 %v4069, 7
    %v4071 = vsub.s32 0, %v4070
    %v4072 = vrot.slane %v4067, %v4071
    %v4074 = vmul.f32 %v4063, %v4072
    %v4075 = vmul.f32 %v4065, %v4072
    %v4076 = vadd.f32 %v4060, %v4074
    %v4077 = vadd.f32 %v4061, %v4075
    %4078 = vrot.lane.b32.xlu0 %v3995, 35
    %v4079 = vpop.permute.xlu0 %4078
    %4080 = vrot.lane.b32.xlu0 %v3998, 35
    %v4081 = vpop.permute.xlu0 %4080
    %s4082 = scalar_lea.vmem %s5, 2
    %v4083 = vld [vmem:[%s4082] sm:$0x1]
    %v4085 = vlaneseq
    %v4086 = vshrl.u32 %v4085, 7
    %v4087 = vsub.s32 0, %v4086
    %v4088 = vrot.slane %v4083, %v4087
    %v4090 = vmul.f32 %v4079, %v4088
    %v4091 = vmul.f32 %v4081, %v4088
    %v4092 = vadd.f32 %v4076, %v4090
    %v4093 = vadd.f32 %v4077, %v4091
    %4094 = vrot.lane.b32.xlu0 %v4003, 5
    %v4095 = vpop.permute.xlu0 %4094
    %4096 = vrot.lane.b32.xlu0 %v4006, 5
    %v4097 = vpop.permute.xlu0 %4096
    %s4098 = scalar_lea.vmem %s5, 3
    %v4099 = vld [vmem:[%s4098] sm:$0x1]
    %v4101 = vlaneseq
    %v4102 = vshrl.u32 %v4101, 7
    %v4103 = vsub.s32 0, %v4102
    %v4104 = vrot.slane %v4099, %v4103
    %v4106 = vmul.f32 %v4095, %v4104
    %v4107 = vmul.f32 %v4097, %v4104
    %v4108 = vadd.f32 %v4092, %v4106
    %v4109 = vadd.f32 %v4093, %v4107
    %s4110 = scalar_lea.vmem %s5, 4
    %v4111 = vld [vmem:[%s4110] sm:$0x1]
    %v4113 = vlaneseq
    %v4114 = vshrl.u32 %v4113, 7
    %v4115 = vsub.s32 0, %v4114
    %v4116 = vrot.slane %v4111, %v4115
    %v4118 = vmul.f32 %v4011, %v4116
    %v4119 = vmul.f32 %v4014, %v4116
    %v4120 = vadd.f32 %v4108, %v4118
    %v4121 = vadd.f32 %v4109, %v4119
    %4122 = vrot.lane.b32.xlu0 %v4019, 123
    %v4123 = vpop.permute.xlu0 %4122
    %4124 = vrot.lane.b32.xlu0 %v4022, 123
    %v4125 = vpop.permute.xlu0 %4124
    %s4126 = scalar_lea.vmem %s5, 5
    %v4127 = vld [vmem:[%s4126] sm:$0x1]
    %v4129 = vlaneseq
    %v4130 = vshrl.u32 %v4129, 7
    %v4131 = vsub.s32 0, %v4130
    %v4132 = vrot.slane %v4127, %v4131
    %v4134 = vmul.f32 %v4123, %v4132
    %v4135 = vmul.f32 %v4125, %v4132
    %v4136 = vadd.f32 %v4120, %v4134
    %v4137 = vadd.f32 %v4121, %v4135
    %4138 = vrot.lane.b32.xlu0 %v4027, 93
    %v4139 = vpop.permute.xlu0 %4138
    %4140 = vrot.lane.b32.xlu0 %v4030, 93
    %v4141 = vpop.permute.xlu0 %4140
    %s4142 = scalar_lea.vmem %s5, 6
    %v4143 = vld [vmem:[%s4142] sm:$0x1]
    %v4145 = vlaneseq
    %v4146 = vshrl.u32 %v4145, 7
    %v4147 = vsub.s32 0, %v4146
    %v4148 = vrot.slane %v4143, %v4147
    %v4150 = vmul.f32 %v4139, %v4148
    %v4151 = vmul.f32 %v4141, %v4148
    %v4152 = vadd.f32 %v4136, %v4150
    %v4153 = vadd.f32 %v4137, %v4151
    %4154 = vrot.lane.b32.xlu0 %v4035, 88
    %v4155 = vpop.permute.xlu0 %4154
    %4156 = vrot.lane.b32.xlu0 %v4038, 88
    %v4157 = vpop.permute.xlu0 %4156
    %s4158 = scalar_lea.vmem %s5, 7
    %v4159 = vld [vmem:[%s4158] sm:$0x1]
    %v4161 = vlaneseq
    %v4162 = vshrl.u32 %v4161, 7
    %v4163 = vsub.s32 0, %v4162
    %v4164 = vrot.slane %v4159, %v4163
    %v4166 = vmul.f32 %v4155, %v4164
    %v4167 = vmul.f32 %v4157, %v4164
    %v4168 = vadd.f32 %v4152, %v4166
    %v4169 = vadd.f32 %v4153, %v4167
    %4170 = vrot.lane.b32.xlu0 %v4043, 83
    %v4171 = vpop.permute.xlu0 %4170
    %4172 = vrot.lane.b32.xlu0 %v4046, 83
    %v4173 = vpop.permute.xlu0 %4172
    %s4174 = scalar_lea.vmem %s5, 8
    %v4175 = vld [vmem:[%s4174] sm:$0x1]
    %v4177 = vlaneseq
    %v4178 = vshrl.u32 %v4177, 7
    %v4179 = vsub.s32 0, %v4178
    %v4180 = vrot.slane %v4175, %v4179
    %v4182 = vmul.f32 %v4171, %v4180
    %v4183 = vmul.f32 %v4173, %v4180
    %v4184 = vadd.f32 %v4168, %v4182
    %v4185 = vadd.f32 %v4169, %v4183
    %v4186 = vld [vmem:[%s22] sm:$0xff]
    %v4187 = vld [vmem:[%s22 + $0x8] sm:$0xff]
    %4189 = vset.pattern.permute.xlu0 0
    %4190 = vperm.xlu0 %4189, %v4186
    %v4191 = vpop.permute.xlu0 %4190
    %4194 = vset.pattern.permute.xlu0 0
    %4195 = vperm.xlu0 %4194, %v4187
    %v4196 = vpop.permute.xlu0 %4195
    %v4198 = vadd.f32 %v4184, %v4191
    %v4199 = vadd.f32 %v4185, %v4196
    %v4200 = vpack.c.bf16 %v867, %v866
    %v4201 = vpack.c.bf16 %v2358, %v2357
    %v4202 = vpack.c.bf16 %v4199, %v4198
    %v4203 = vld [vmem:[%s23] sm:$0xf]
    %v4204 = vld [vmem:[%s23 + $0x4] sm:$0xf]
    %v4205 = vld [vmem:[%s23 + $0x8] sm:$0xf]
    %v4206 = vld [vmem:[%s23 + $0xc] sm:$0xf]
    %v4207 = vld [vmem:[%s23 + $0x10] sm:$0xf]
    %v4208 = vld [vmem:[%s23 + $0x14] sm:$0xf]
    %v4209 = vld [vmem:[%s23 + $0x18] sm:$0xf]
    %v4210 = vld [vmem:[%s23 + $0x1c] sm:$0xf]
    %v4211 = vld [vmem:[%s24] sm:$0xff]
    %v4212 = vld [vmem:[%s24 + $0x8] sm:$0xff]
    %v4213 = vld [vmem:[%s24 + $0x10] sm:$0xff]
    %v4214 = vld [vmem:[%s24 + $0x18] sm:$0xff]
    %v4215 = vld [vmem:[%s24 + $0x20] sm:$0xff]
    %v4216 = vld [vmem:[%s24 + $0x28] sm:$0xff]
    %v4217 = vld [vmem:[%s24 + $0x30] sm:$0xff]
    %v4218 = vld [vmem:[%s24 + $0x38] sm:$0xff]
    %4220 = vset.pattern.permute.xlu0 0
    %4221 = vperm.xlu0 %4220, %v4211
    %v4222 = vpop.permute.xlu0 %4221
    %4225 = vset.pattern.permute.xlu0 0
    %4226 = vperm.xlu0 %4225, %v4212
    %v4227 = vpop.permute.xlu0 %4226
    %4230 = vset.pattern.permute.xlu0 0
    %4231 = vperm.xlu0 %4230, %v4213
    %v4232 = vpop.permute.xlu0 %4231
    %4235 = vset.pattern.permute.xlu0 0
    %4236 = vperm.xlu0 %4235, %v4214
    %v4237 = vpop.permute.xlu0 %4236
    %4240 = vset.pattern.permute.xlu0 0
    %4241 = vperm.xlu0 %4240, %v4215
    %v4242 = vpop.permute.xlu0 %4241
    %4245 = vset.pattern.permute.xlu0 0
    %4246 = vperm.xlu0 %4245, %v4216
    %v4247 = vpop.permute.xlu0 %4246
    %4250 = vset.pattern.permute.xlu0 0
    %4251 = vperm.xlu0 %4250, %v4217
    %v4252 = vpop.permute.xlu0 %4251
    %4255 = vset.pattern.permute.xlu0 0
    %4256 = vperm.xlu0 %4255, %v4218
    %v4257 = vpop.permute.xlu0 %4256
    %v4267 = vunpack.c.l.b16 %v4203
    %v4268 = vunpack.c.l.b16 %v4204
    %v4269 = vunpack.c.l.b16 %v4205
    %v4270 = vunpack.c.l.b16 %v4206
    %v4271 = vunpack.c.l.b16 %v4207
    %v4272 = vunpack.c.l.b16 %v4208
    %v4273 = vunpack.c.l.b16 %v4209
    %v4274 = vunpack.c.l.b16 %v4210
    %v4275 = vpack.c.b16 %v4268, %v4267
    %v4276 = vpack.c.b16 %v4270, %v4269
    %v4277 = vpack.c.b16 %v4272, %v4271
    %v4278 = vpack.c.b16 %v4274, %v4273
    %vm4279 = vcmask 392192
    %v4281 = vsel %vm4279, %v4275, 0
    %v4284 = vsel %vm4279, %v4276, 0
    %v4287 = vsel %vm4279, %v4277, 0
    %v4290 = vsel %vm4279, %v4278, 0
    %4292 = vmatprep.subr.bf16.mxu0 0
    %4293 = vmatpush1.bf16.msra.mxu0 %v4200
    %4294 = vmatprep.subr.bf16.mxu0 0
    %4295 = vmatpush1.bf16.msra.mxu0 %v4201
    %4296 = vmatprep.subr.bf16.mxu0 0
    %4297 = vmatpush1.bf16.msra.mxu0 %v4202
    %4298 = vmatprep.subr.bf16.mxu0 0
    %4299 = vmatpush1.bf16.msra.mxu0 0
    %4300 = vmatprep.subr.bf16.mxu0 0
    %4301 = vmatpush1.bf16.msra.mxu0 0
    %4302 = vmatprep.subr.bf16.mxu0 0
    %4303 = vmatpush1.bf16.msra.mxu0 0
    %4304 = vmatprep.subr.bf16.mxu0 0
    %4305 = vmatpush1.bf16.msra.mxu0 0
    %4306 = vmatprep.subr.bf16.mxu0 0
    %4307 = vmatpush1.bf16.msra.mxu0 0
    %4308 = vmatprep.subr.bf16.mxu0 0
    %4309 = vmatpush1.bf16.msra.mxu0 0
    %4310 = vmatprep.subr.bf16.mxu0 0
    %4311 = vmatpush1.bf16.msra.mxu0 0
    %4312 = vmatprep.subr.bf16.mxu0 0
    %4313 = vmatpush1.bf16.msra.mxu0 0
    %4314 = vmatprep.subr.bf16.mxu0 0
    %4315 = vmatpush1.bf16.msra.mxu0 0
    %4316 = vmatprep.subr.bf16.mxu0 0
    %4317 = vmatpush1.bf16.msra.mxu0 0
    %4318 = vmatprep.subr.bf16.mxu0 0
    %4319 = vmatpush1.bf16.msra.mxu0 0
    %4320 = vmatprep.subr.bf16.mxu0 0
    %4321 = vmatpush1.bf16.msra.mxu0 0
    %4322 = vmatprep.subr.bf16.mxu0 0
    %4323 = vmatpush1.bf16.msra.mxu0 0
    %4324 = vmatprep.mubr.bf16.mxu0 0
    %4325 = vmatmul.mubr.bf16.gmra.mrb[0].mxu0 %v4281
    %v4326 = vpop.f32.mrb[0].mxu0
    %v4327 = vadd.f32 %v4222, %v4326
    %v4328 = vpop.f32.mrb[0].mxu0
    %v4329 = vpop.f32.mrb[0].mxu0
    %v4330 = vadd.f32 %v4227, %v4329
    %v4331 = vpop.f32.mrb[0].mxu0
    %4332 = vmatprep.mubr.bf16.mxu0 0
    %4333 = vmatmul.mubr.bf16.gmra.mrb[0].mxu0 %v4284
    %v4334 = vpop.f32.mrb[0].mxu0
    %v4335 = vadd.f32 %v4232, %v4334
    %v4336 = vpop.f32.mrb[0].mxu0
    %v4337 = vpop.f32.mrb[0].mxu0
    %v4338 = vadd.f32 %v4237, %v4337
    %v4339 = vpop.f32.mrb[0].mxu0
    %4340 = vmatprep.mubr.bf16.mxu0 0
    %4341 = vmatmul.mubr.bf16.gmra.mrb[0].mxu0 %v4287
    %v4342 = vpop.f32.mrb[0].mxu0
    %v4343 = vadd.f32 %v4242, %v4342
    %v4344 = vpop.f32.mrb[0].mxu0
    %v4345 = vpop.f32.mrb[0].mxu0
    %v4346 = vadd.f32 %v4247, %v4345
    %v4347 = vpop.f32.mrb[0].mxu0
    %4348 = vmatprep.mubr.bf16.mxu0 0
    %4349 = vmatmul.mubr.bf16.gmra.mrb[0].mxu0 %v4290
    %v4350 = vpop.f32.mrb[0].mxu0
    %v4351 = vadd.f32 %v4252, %v4350
    %v4352 = vpop.f32.mrb[0].mxu0
    %v4353 = vpop.f32.mrb[0].mxu0
    %v4354 = vadd.f32 %v4257, %v4353
    %v4355 = vpop.f32.mrb[0].mxu0
    %4356 = vdwg.mxu0
    %v4357 = vadd.f32 %v4327, %v488
    %v4358 = vadd.f32 %v4330, %v491
    %v4359 = vadd.f32 %v4335, %v496
    %v4360 = vadd.f32 %v4338, %v499
    %v4361 = vadd.f32 %v4343, %v504
    %v4362 = vadd.f32 %v4346, %v507
    %v4363 = vadd.f32 %v4351, %v512
    %v4364 = vadd.f32 %v4354, %v515
    %v4365 = vmax.f32 %v4357, 0.0
    %v4366 = vmax.f32 %v4358, 0.0
    %v4367 = vmax.f32 %v4359, 0.0
    %v4368 = vmax.f32 %v4360, 0.0
    %v4369 = vmax.f32 %v4361, 0.0
    %v4370 = vmax.f32 %v4362, 0.0
    %v4371 = vmax.f32 %v4363, 0.0
    %v4372 = vmax.f32 %v4364, 0.0
    %4373 = vst [vmem:[#allocation2] sm:$0xff] %v4365
    %4374 = vst [vmem:[#allocation2 + $0x8] sm:$0xff] %v4366
    %4375 = vst [vmem:[#allocation2 + $0x10] sm:$0xff] %v4367
    %4376 = vst [vmem:[#allocation2 + $0x18] sm:$0xff] %v4368
    %4377 = vst [vmem:[#allocation2 + $0x20] sm:$0xff] %v4369
    %4378 = vst [vmem:[#allocation2 + $0x28] sm:$0xff] %v4370
    %4379 = vst [vmem:[#allocation2 + $0x30] sm:$0xff] %v4371
    %4380 = vst [vmem:[#allocation2 + $0x38] sm:$0xff] %v4372
    // Predicated region
    $region102: #{tpu_custom_call.1} parent=1 // pred_check
      _
    $region103: #{tpu_custom_call.1} parent=1 // pred_check_branch
      %4382 = sbr.rel (0) target = $region105
    $region104: #{tpu_custom_call.1} parent=1 // pred_region
      %s4384 = ssub.s32 1024, 1024
      %4385 = vsyncadd [#allocation3], %s4384
      %s4386 = sshll.u32 [#allocation2], 4
      %s4387 = int_to_ptr.vmem [resolvable:$true] %s4386
      %4392 = dma.vmem_to_hbm [thread:$0]  %s4387, 1024, %s25, [#allocation3], 128, 128, 8
    $region105: #{tpu_custom_call.1} parent=1 // pred_fallthru
      _
    // Predicated region
    $region106: #{tpu_custom_call.1} parent=1 // pred_check
      _
    $region107: #{tpu_custom_call.1} parent=1 // pred_check_branch
      %4394 = sbr.rel (0) target = $region109
    $region108: #{tpu_custom_call.1} parent=1 // pred_region
      %4395 = dma.done [#allocation3], 1024
    $region109: #{tpu_custom_call.1} parent=1 // pred_fallthru
      _
    %4396 = vsyncpa [#allocation3], 1

</llo_original>
